<compile_context>
chip_gen: v7x
topology: tpu7x:2x2x1
jax: 0.10.0
libtpu: 0.0.40
codegen_flags: <defaults>
</compile_context>

<pallas_src>
import functools

import jax
import jax.numpy as jnp
from jax.experimental import pallas as pl
from jax.experimental.pallas import tpu as pltpu


# ------------------------------ fused kernel --------------------------------

def _decoder_kernel(
    tgt_ref, mem_ref,
    wq_ref, bq_ref, wkv_ref, bkv_ref, wo_ref, bo_ref,
    g1_ref, be1_ref, w1_ref, b1f_ref, w2_ref, b2f_ref, g2_ref, be2_ref,
    wf_ref, bf_ref,
    out_ref,
    x_scratch,
    *, num_heads, dim_k, dim_v, compute_dtype,
):
    l = pl.program_id(1)
    n_layers = pl.num_programs(1)
    inv_scale = 1.0 / (float(dim_k) ** 0.5)

    def mm(a, w):
        # MXU matmul, optionally in bf16 operands, always f32 accumulation.
        return jnp.dot(a.astype(compute_dtype), w.astype(compute_dtype),
                       preferred_element_type=jnp.float32)

    def layernorm(z, g, b):
        mean = jnp.mean(z, axis=-1, keepdims=True)
        var = jnp.mean(jnp.square(z - mean), axis=-1, keepdims=True)
        return (z - mean) * jax.lax.rsqrt(var + 1e-5) * g + b

    # carry the running activation across the layer axis
    @pl.when(l == 0)
    def _():
        x_scratch[...] = tgt_ref[0]

    x = x_scratch[...]                    # (S_q, D) f32
    mem = mem_ref[0]                      # (S_k, D)

    # ---- multi-head attention: q from tgt, k/v from memory (fused K,V matmul) ----
    q = mm(x, wq_ref[0]) + bq_ref[0]          # (S_q, H*dk)
    kv = mm(mem, wkv_ref[0]) + bkv_ref[0]     # (S_k, H*(dk+dv))
    hk = num_heads * dim_k
    k = kv[:, :hk]
    v = kv[:, hk:]

    wo = wo_ref[0]                            # (H*dv, D)
    s_q, d_model = x.shape
    attn = jnp.zeros((s_q, d_model), jnp.float32)
    for h in range(num_heads):                # static unroll; all operands already on-chip
        qh = q[:, h * dim_k:(h + 1) * dim_k]
        kh = k[:, h * dim_k:(h + 1) * dim_k]
        vh = v[:, h * dim_v:(h + 1) * dim_v]
        # contract on dk of BOTH operands -> no explicit K transpose
        s = jax.lax.dot_general(
            qh.astype(compute_dtype), kh.astype(compute_dtype),
            dimension_numbers=(((1,), (1,)), ((), ())),
            preferred_element_type=jnp.float32) * inv_scale
        s = s - jnp.max(s, axis=-1, keepdims=True)
        p = jnp.exp(s)
        p = p * pl.reciprocal(jnp.sum(p, axis=-1, keepdims=True), approx=True)
        oh = mm(p, vh)                        # (S_q, dv)
        # concat-over-heads followed by output Linear == sum_h oh @ Wo[h*dv:(h+1)*dv, :]
        attn = attn + mm(oh, wo[h * dim_v:(h + 1) * dim_v, :])
    attn = attn + bo_ref[0]

    x1 = layernorm(x + attn, g1_ref[0], be1_ref[0])

    # ---- feed-forward + residual ----
    hdn = jnp.maximum(mm(x1, w1_ref[0]) + b1f_ref[0], 0.0)
    y = mm(hdn, w2_ref[0]) + b2f_ref[0]
    x2 = layernorm(x1 + y, g2_ref[0], be2_ref[0])

    x_scratch[...] = x2

    # final Linear fused into the last layer's step
    @pl.when(l == n_layers - 1)
    def _():
        out_ref[0] = (mm(x2, wf_ref[...]) + bf_ref[...]).astype(out_ref.dtype)


# ------------------------------ host wrapper ---------------------------------

def transformer_decoder(tgt, memory, params, *, num_heads, compute_dtype=jnp.float32):
    B, S_q, D = tgt.shape
    _, S_k, _ = memory.shape
    num_layers = params["wq"].shape[0]
    dim_k = params["wq"].shape[2] // num_heads
    dim_v = params["wo"].shape[1] // num_heads

    layer_names = ["wq", "bq", "wkv", "bkv", "wo", "bo",
                   "ln1_g", "ln1_b", "w1", "b1", "w2", "b2", "ln2_g", "ln2_b"]
    layer_args = [params[n] for n in layer_names]

    def act_spec(seq):
        return pl.BlockSpec((1, seq, D), lambda b, l: (b, 0, 0))

    def layer_spec(p):
        return pl.BlockSpec((1,) + p.shape[1:], lambda b, l: (l, 0, 0))

    in_specs = (
        [act_spec(S_q), act_spec(S_k)]
        + [layer_spec(p) for p in layer_args]
        + [pl.BlockSpec(params["wf"].shape, lambda b, l: (0, 0)),
           pl.BlockSpec(params["bf"].shape, lambda b, l: (0, 0))]
    )

    kernel = functools.partial(
        _decoder_kernel, num_heads=num_heads, dim_k=dim_k, dim_v=dim_v,
        compute_dtype=compute_dtype)

    return pl.pallas_call(
        kernel,
        out_shape=jax.ShapeDtypeStruct((B, S_q, D), jnp.float32),
        grid=(B, num_layers),
        in_specs=in_specs,
        out_specs=pl.BlockSpec((1, S_q, D), lambda b, l: (b, 0, 0)),
        scratch_shapes=[pltpu.VMEM((S_q, D), jnp.float32)],
        compiler_params=pltpu.CompilerParams(
            dimension_semantics=("parallel", "arbitrary")),
    )(tgt, memory, *layer_args, params["wf"], params["bf"])


# ------------------------------ param init -----------------------------------

def init_params(key, num_layers, dim_model, num_heads, dim_feedforward):
    dim_k = dim_v = dim_model // num_heads
    L = num_layers

    def uniform(k, shape, fan_in):
        bound = 1.0 / (fan_in ** 0.5)
        return jax.random.uniform(k, shape, jnp.float32, -bound, bound)

    ks = jax.random.split(key, 12)
    return dict(
        wq=uniform(ks[0], (L, dim_model, num_heads * dim_k), dim_model),
        bq=uniform(ks[1], (L, 1, num_heads * dim_k), dim_model),
        wkv=uniform(ks[2], (L, dim_model, num_heads * (dim_k + dim_v)), dim_model),
        bkv=uniform(ks[3], (L, 1, num_heads * (dim_k + dim_v)), dim_model),
        wo=uniform(ks[4], (L, num_heads * dim_v, dim_model), num_heads * dim_v),
        bo=uniform(ks[5], (L, 1, dim_model), num_heads * dim_v),
        ln1_g=jnp.ones((L, 1, dim_model), jnp.float32),
        ln1_b=jnp.zeros((L, 1, dim_model), jnp.float32),
        w1=uniform(ks[6], (L, dim_model, dim_feedforward), dim_model),
        b1=uniform(ks[7], (L, 1, dim_feedforward), dim_model),
        w2=uniform(ks[8], (L, dim_feedforward, dim_model), dim_feedforward),
        b2=uniform(ks[9], (L, 1, dim_model), dim_feedforward),
        ln2_g=jnp.ones((L, 1, dim_model), jnp.float32),
        ln2_b=jnp.zeros((L, 1, dim_model), jnp.float32),
        wf=uniform(ks[10], (dim_model, dim_model), dim_model),
        bf=uniform(ks[11], (1, dim_model), dim_model),
    )


# --------------------------------- main ---------------------------------------

if __name__ == "__main__":
    num_layers = 2
    dim_model = 32
    num_heads = 4
    dim_feedforward = 64
    B, S_tgt, S_mem = 2, 8, 16

    key = jax.random.PRNGKey(0)
    k_p, k_t, k_m = jax.random.split(key, 3)

    params = init_params(k_p, num_layers, dim_model, num_heads, dim_feedforward)
    tgt = jax.random.normal(k_t, (B, S_tgt, dim_model), jnp.float32)
    memory = jax.random.normal(k_m, (B, S_mem, dim_model), jnp.float32)

    # compute_dtype=jnp.bfloat16 can be passed here for extra MXU throughput on v6e/v7x.
    fwd = jax.jit(functools.partial(transformer_decoder, num_heads=num_heads))
    out = fwd(tgt, memory, params)
    jax.block_until_ready(out)

    assert out.shape == (B, S_tgt, dim_model)
    assert out.dtype == jnp.float32
    assert bool(jnp.all(jnp.isfinite(out)))
    print("KERNEL_OK")
</pallas_src>

<mosaic_0001>
module attributes {stable_mosaic.version = 11 : i64} {
  func.func @_decoder_kernel(%arg0: i32, %arg1: i32, %arg2: memref<1x8x32xf32, #tpu.memory_space<vmem>>, %arg3: memref<1x16x32xf32, #tpu.memory_space<vmem>>, %arg4: memref<1x32x32xf32, #tpu.memory_space<vmem>>, %arg5: memref<1x1x32xf32, #tpu.memory_space<vmem>>, %arg6: memref<1x32x64xf32, #tpu.memory_space<vmem>>, %arg7: memref<1x1x64xf32, #tpu.memory_space<vmem>>, %arg8: memref<1x32x32xf32, #tpu.memory_space<vmem>>, %arg9: memref<1x1x32xf32, #tpu.memory_space<vmem>>, %arg10: memref<1x1x32xf32, #tpu.memory_space<vmem>>, %arg11: memref<1x1x32xf32, #tpu.memory_space<vmem>>, %arg12: memref<1x32x64xf32, #tpu.memory_space<vmem>>, %arg13: memref<1x1x64xf32, #tpu.memory_space<vmem>>, %arg14: memref<1x64x32xf32, #tpu.memory_space<vmem>>, %arg15: memref<1x1x32xf32, #tpu.memory_space<vmem>>, %arg16: memref<1x1x32xf32, #tpu.memory_space<vmem>>, %arg17: memref<1x1x32xf32, #tpu.memory_space<vmem>>, %arg18: memref<32x32xf32, #tpu.memory_space<vmem>>, %arg19: memref<1x32xf32, #tpu.memory_space<vmem>>, %arg20: memref<1x8x32xf32, #tpu.memory_space<vmem>>, %arg21: memref<8x32xf32, #tpu.memory_space<vmem>>) attributes {dimension_semantics = [#tpu.dimension_semantics<parallel>, #tpu.dimension_semantics<arbitrary>], iteration_bounds = array<i64: 2, 2>, scalar_prefetch = 0 : i64, scratch_operands = 1 : i64, tpu.core_type = #tpu.core_type<tc>, window_params = [{transform_indices = @transform_0, window_bounds = array<i64: 1, 8, 32>}, {transform_indices = @transform_1, window_bounds = array<i64: 1, 16, 32>}, {transform_indices = @transform_2, window_bounds = array<i64: 1, 32, 32>}, {transform_indices = @transform_3, window_bounds = array<i64: 1, 1, 32>}, {transform_indices = @transform_4, window_bounds = array<i64: 1, 32, 64>}, {transform_indices = @transform_5, window_bounds = array<i64: 1, 1, 64>}, {transform_indices = @transform_6, window_bounds = array<i64: 1, 32, 32>}, {transform_indices = @transform_7, window_bounds = array<i64: 1, 1, 32>}, {transform_indices = @transform_8, window_bounds = array<i64: 1, 1, 32>}, {transform_indices = @transform_9, window_bounds = array<i64: 1, 1, 32>}, {transform_indices = @transform_10, window_bounds = array<i64: 1, 32, 64>}, {transform_indices = @transform_11, window_bounds = array<i64: 1, 1, 64>}, {transform_indices = @transform_12, window_bounds = array<i64: 1, 64, 32>}, {transform_indices = @transform_13, window_bounds = array<i64: 1, 1, 32>}, {transform_indices = @transform_14, window_bounds = array<i64: 1, 1, 32>}, {transform_indices = @transform_15, window_bounds = array<i64: 1, 1, 32>}, {pipeline_mode = #tpu.pipeline_mode<synchronous>, transform_indices = @transform_16, window_bounds = array<i64: 32, 32>}, {pipeline_mode = #tpu.pipeline_mode<synchronous>, transform_indices = @transform_17, window_bounds = array<i64: 1, 32>}, {transform_indices = @transform_18, window_bounds = array<i64: 1, 8, 32>}]} {
    %c0_i32 = arith.constant 0 : i32
    %0 = arith.cmpi eq, %arg1, %c0_i32 : i32
    %1 = arith.extui %0 : i1 to i32
    %c0_i32_0 = arith.constant 0 : i32
    %2 = arith.cmpi ne, %1, %c0_i32_0 : i32
    scf.if %2 {
      %c0_89 = arith.constant 0 : index
      %c0_90 = arith.constant 0 : index
      %c0_91 = arith.constant 0 : index
      %183 = vector.load %arg2[%c0_89, %c0_90, %c0_91] : memref<1x8x32xf32, #tpu.memory_space<vmem>>, vector<1x8x32xf32>
      %184 = vector.shape_cast %183 : vector<1x8x32xf32> to vector<8x32xf32>
      %c0_92 = arith.constant 0 : index
      %c0_93 = arith.constant 0 : index
      %185 = vector.load %arg21[%c0_92, %c0_93] : memref<8x32xf32, #tpu.memory_space<vmem>>, vector<8x32xf32>
      tpu.vector_store %arg21[%c0_92, %c0_93], %184 {strides = array<i32>} : memref<8x32xf32, #tpu.memory_space<vmem>>, vector<8x32xf32>,
    } else {
    }
    %c0 = arith.constant 0 : index
    %c0_1 = arith.constant 0 : index
    %3 = vector.load %arg21[%c0, %c0_1] : memref<8x32xf32, #tpu.memory_space<vmem>>, vector<8x32xf32>
    %c0_2 = arith.constant 0 : index
    %c0_3 = arith.constant 0 : index
    %c0_4 = arith.constant 0 : index
    %4 = vector.load %arg3[%c0_2, %c0_3, %c0_4] : memref<1x16x32xf32, #tpu.memory_space<vmem>>, vector<1x16x32xf32>
    %5 = vector.shape_cast %4 : vector<1x16x32xf32> to vector<16x32xf32>
    %c0_5 = arith.constant 0 : index
    %c0_6 = arith.constant 0 : index
    %c0_7 = arith.constant 0 : index
    %6 = vector.load %arg4[%c0_5, %c0_6, %c0_7] : memref<1x32x32xf32, #tpu.memory_space<vmem>>, vector<1x32x32xf32>
    %7 = vector.shape_cast %6 : vector<1x32x32xf32> to vector<32x32xf32>
    %cst = arith.constant dense<0.000000e+00> : vector<8x32xf32>
    %8 = tpu.matmul %3, %7, %cst {dimension_numbers = #tpu.dot_dimension_numbers<[1], [0], [0], [1], [0, 0, 1, 1], [], []>} : vector<8x32xf32>, vector<32x32xf32>, vector<8x32xf32> -> vector<8x32xf32>
    %c0_8 = arith.constant 0 : index
    %c0_9 = arith.constant 0 : index
    %c0_10 = arith.constant 0 : index
    %9 = vector.load %arg5[%c0_8, %c0_9, %c0_10] : memref<1x1x32xf32, #tpu.memory_space<vmem>>, vector<1x1x32xf32>
    %10 = vector.shape_cast %9 : vector<1x1x32xf32> to vector<1x32xf32>
    %11 = vector.broadcast %10 : vector<1x32xf32> to vector<8x32xf32>
    %12 = arith.addf %8, %11 : vector<8x32xf32>
    %c0_11 = arith.constant 0 : index
    %c0_12 = arith.constant 0 : index
    %c0_13 = arith.constant 0 : index
    %13 = vector.load %arg6[%c0_11, %c0_12, %c0_13] : memref<1x32x64xf32, #tpu.memory_space<vmem>>, vector<1x32x64xf32>
    %14 = vector.shape_cast %13 : vector<1x32x64xf32> to vector<32x64xf32>
    %cst_14 = arith.constant dense<0.000000e+00> : vector<16x64xf32>
    %15 = tpu.matmul %5, %14, %cst_14 {dimension_numbers = #tpu.dot_dimension_numbers<[1], [0], [0], [1], [0, 0, 1, 1], [], []>} : vector<16x32xf32>, vector<32x64xf32>, vector<16x64xf32> -> vector<16x64xf32>
    %c0_15 = arith.constant 0 : index
    %c0_16 = arith.constant 0 : index
    %c0_17 = arith.constant 0 : index
    %16 = vector.load %arg7[%c0_15, %c0_16, %c0_17] : memref<1x1x64xf32, #tpu.memory_space<vmem>>, vector<1x1x64xf32>
    %17 = vector.shape_cast %16 : vector<1x1x64xf32> to vector<1x64xf32>
    %18 = vector.broadcast %17 : vector<1x64xf32> to vector<16x64xf32>
    %19 = arith.addf %15, %18 : vector<16x64xf32>
    %20 = vector.extract_strided_slice %19 {offsets = [0, 0], sizes = [16, 32], strides = [1, 1]} : vector<16x64xf32> to vector<16x32xf32>
    %21 = vector.extract_strided_slice %19 {offsets = [0, 32], sizes = [16, 32], strides = [1, 1]} : vector<16x64xf32> to vector<16x32xf32>
    %c0_18 = arith.constant 0 : index
    %c0_19 = arith.constant 0 : index
    %c0_20 = arith.constant 0 : index
    %22 = vector.load %arg8[%c0_18, %c0_19, %c0_20] : memref<1x32x32xf32, #tpu.memory_space<vmem>>, vector<1x32x32xf32>
    %23 = vector.shape_cast %22 : vector<1x32x32xf32> to vector<32x32xf32>
    %cst_21 = arith.constant 0.000000e+00 : f32
    %24 = vector.broadcast %cst_21 : f32 to vector<8x32xf32>
    %25 = vector.extract_strided_slice %12 {offsets = [0, 0], sizes = [8, 8], strides = [1, 1]} : vector<8x32xf32> to vector<8x8xf32>
    %26 = vector.extract_strided_slice %20 {offsets = [0, 0], sizes = [16, 8], strides = [1, 1]} : vector<16x32xf32> to vector<16x8xf32>
    %27 = vector.extract_strided_slice %21 {offsets = [0, 0], sizes = [16, 8], strides = [1, 1]} : vector<16x32xf32> to vector<16x8xf32>
    %cst_22 = arith.constant dense<0.000000e+00> : vector<8x16xf32>
    %28 = tpu.matmul %25, %26, %cst_22 {dimension_numbers = #tpu.dot_dimension_numbers<[1], [1], [0], [0], [0, 0, 1, 0], [], []>} : vector<8x8xf32>, vector<16x8xf32>, vector<8x16xf32> -> vector<8x16xf32>
    %cst_23 = arith.constant 0.353553385 : f32
    %29 = vector.broadcast %cst_23 : f32 to vector<8x16xf32>
    %30 = arith.mulf %28, %29 : vector<8x16xf32>
    %cst_24 = arith.constant dense<0xFF800000> : vector<8xf32>
    %31 = vector.multi_reduction <maximumf>, %30, %cst_24 [1] : vector<8x16xf32> to vector<8xf32>
    %32 = vector.shape_cast %31 : vector<8xf32> to vector<8x1xf32>
    %33 = vector.broadcast %32 : vector<8x1xf32> to vector<8x16xf32>
    %34 = arith.subf %30, %33 : vector<8x16xf32>
    %35 = math.exp %34 : vector<8x16xf32>
    %cst_25 = arith.constant dense<0.000000e+00> : vector<8xf32>
    %36 = vector.multi_reduction <add>, %35, %cst_25 [1] : vector<8x16xf32> to vector<8xf32>
    %37 = vector.shape_cast %36 : vector<8xf32> to vector<8x1xf32>
    %38 = tpu.reciprocal %37 {approx = true} : vector<8x1xf32> -> vector<8x1xf32>
    %39 = vector.broadcast %38 : vector<8x1xf32> to vector<8x16xf32>
    %40 = arith.mulf %35, %39 : vector<8x16xf32>
    %cst_26 = arith.constant dense<0.000000e+00> : vector<8x8xf32>
    %41 = tpu.matmul %40, %27, %cst_26 {dimension_numbers = #tpu.dot_dimension_numbers<[1], [0], [0], [1], [0, 0, 1, 1], [], []>} : vector<8x16xf32>, vector<16x8xf32>, vector<8x8xf32> -> vector<8x8xf32>
    %42 = vector.extract_strided_slice %23 {offsets = [0, 0], sizes = [8, 32], strides = [1, 1]} : vector<32x32xf32> to vector<8x32xf32>
    %cst_27 = arith.constant dense<0.000000e+00> : vector<8x32xf32>
    %43 = tpu.matmul %41, %42, %cst_27 {dimension_numbers = #tpu.dot_dimension_numbers<[1], [0], [0], [1], [0, 0, 1, 1], [], []>} : vector<8x8xf32>, vector<8x32xf32>, vector<8x32xf32> -> vector<8x32xf32>
    %44 = arith.addf %24, %43 : vector<8x32xf32>
    %45 = vector.extract_strided_slice %12 {offsets = [0, 8], sizes = [8, 8], strides = [1, 1]} : vector<8x32xf32> to vector<8x8xf32>
    %46 = vector.extract_strided_slice %20 {offsets = [0, 8], sizes = [16, 8], strides = [1, 1]} : vector<16x32xf32> to vector<16x8xf32>
    %47 = vector.extract_strided_slice %21 {offsets = [0, 8], sizes = [16, 8], strides = [1, 1]} : vector<16x32xf32> to vector<16x8xf32>
    %cst_28 = arith.constant dense<0.000000e+00> : vector<8x16xf32>
    %48 = tpu.matmul %45, %46, %cst_28 {dimension_numbers = #tpu.dot_dimension_numbers<[1], [1], [0], [0], [0, 0, 1, 0], [], []>} : vector<8x8xf32>, vector<16x8xf32>, vector<8x16xf32> -> vector<8x16xf32>
    %cst_29 = arith.constant 0.353553385 : f32
    %49 = vector.broadcast %cst_29 : f32 to vector<8x16xf32>
    %50 = arith.mulf %48, %49 : vector<8x16xf32>
    %cst_30 = arith.constant dense<0xFF800000> : vector<8xf32>
    %51 = vector.multi_reduction <maximumf>, %50, %cst_30 [1] : vector<8x16xf32> to vector<8xf32>
    %52 = vector.shape_cast %51 : vector<8xf32> to vector<8x1xf32>
    %53 = vector.broadcast %52 : vector<8x1xf32> to vector<8x16xf32>
    %54 = arith.subf %50, %53 : vector<8x16xf32>
    %55 = math.exp %54 : vector<8x16xf32>
    %cst_31 = arith.constant dense<0.000000e+00> : vector<8xf32>
    %56 = vector.multi_reduction <add>, %55, %cst_31 [1] : vector<8x16xf32> to vector<8xf32>
    %57 = vector.shape_cast %56 : vector<8xf32> to vector<8x1xf32>
    %58 = tpu.reciprocal %57 {approx = true} : vector<8x1xf32> -> vector<8x1xf32>
    %59 = vector.broadcast %58 : vector<8x1xf32> to vector<8x16xf32>
    %60 = arith.mulf %55, %59 : vector<8x16xf32>
    %cst_32 = arith.constant dense<0.000000e+00> : vector<8x8xf32>
    %61 = tpu.matmul %60, %47, %cst_32 {dimension_numbers = #tpu.dot_dimension_numbers<[1], [0], [0], [1], [0, 0, 1, 1], [], []>} : vector<8x16xf32>, vector<16x8xf32>, vector<8x8xf32> -> vector<8x8xf32>
    %62 = vector.extract_strided_slice %23 {offsets = [8, 0], sizes = [8, 32], strides = [1, 1]} : vector<32x32xf32> to vector<8x32xf32>
    %cst_33 = arith.constant dense<0.000000e+00> : vector<8x32xf32>
    %63 = tpu.matmul %61, %62, %cst_33 {dimension_numbers = #tpu.dot_dimension_numbers<[1], [0], [0], [1], [0, 0, 1, 1], [], []>} : vector<8x8xf32>, vector<8x32xf32>, vector<8x32xf32> -> vector<8x32xf32>
    %64 = arith.addf %44, %63 : vector<8x32xf32>
    %65 = vector.extract_strided_slice %12 {offsets = [0, 16], sizes = [8, 8], strides = [1, 1]} : vector<8x32xf32> to vector<8x8xf32>
    %66 = vector.extract_strided_slice %20 {offsets = [0, 16], sizes = [16, 8], strides = [1, 1]} : vector<16x32xf32> to vector<16x8xf32>
    %67 = vector.extract_strided_slice %21 {offsets = [0, 16], sizes = [16, 8], strides = [1, 1]} : vector<16x32xf32> to vector<16x8xf32>
    %cst_34 = arith.constant dense<0.000000e+00> : vector<8x16xf32>
    %68 = tpu.matmul %65, %66, %cst_34 {dimension_numbers = #tpu.dot_dimension_numbers<[1], [1], [0], [0], [0, 0, 1, 0], [], []>} : vector<8x8xf32>, vector<16x8xf32>, vector<8x16xf32> -> vector<8x16xf32>
    %cst_35 = arith.constant 0.353553385 : f32
    %69 = vector.broadcast %cst_35 : f32 to vector<8x16xf32>
    %70 = arith.mulf %68, %69 : vector<8x16xf32>
    %cst_36 = arith.constant dense<0xFF800000> : vector<8xf32>
    %71 = vector.multi_reduction <maximumf>, %70, %cst_36 [1] : vector<8x16xf32> to vector<8xf32>
    %72 = vector.shape_cast %71 : vector<8xf32> to vector<8x1xf32>
    %73 = vector.broadcast %72 : vector<8x1xf32> to vector<8x16xf32>
    %74 = arith.subf %70, %73 : vector<8x16xf32>
    %75 = math.exp %74 : vector<8x16xf32>
    %cst_37 = arith.constant dense<0.000000e+00> : vector<8xf32>
    %76 = vector.multi_reduction <add>, %75, %cst_37 [1] : vector<8x16xf32> to vector<8xf32>
    %77 = vector.shape_cast %76 : vector<8xf32> to vector<8x1xf32>
    %78 = tpu.reciprocal %77 {approx = true} : vector<8x1xf32> -> vector<8x1xf32>
    %79 = vector.broadcast %78 : vector<8x1xf32> to vector<8x16xf32>
    %80 = arith.mulf %75, %79 : vector<8x16xf32>
    %cst_38 = arith.constant dense<0.000000e+00> : vector<8x8xf32>
    %81 = tpu.matmul %80, %67, %cst_38 {dimension_numbers = #tpu.dot_dimension_numbers<[1], [0], [0], [1], [0, 0, 1, 1], [], []>} : vector<8x16xf32>, vector<16x8xf32>, vector<8x8xf32> -> vector<8x8xf32>
    %82 = vector.extract_strided_slice %23 {offsets = [16, 0], sizes = [8, 32], strides = [1, 1]} : vector<32x32xf32> to vector<8x32xf32>
    %cst_39 = arith.constant dense<0.000000e+00> : vector<8x32xf32>
    %83 = tpu.matmul %81, %82, %cst_39 {dimension_numbers = #tpu.dot_dimension_numbers<[1], [0], [0], [1], [0, 0, 1, 1], [], []>} : vector<8x8xf32>, vector<8x32xf32>, vector<8x32xf32> -> vector<8x32xf32>
    %84 = arith.addf %64, %83 : vector<8x32xf32>
    %85 = vector.extract_strided_slice %12 {offsets = [0, 24], sizes = [8, 8], strides = [1, 1]} : vector<8x32xf32> to vector<8x8xf32>
    %86 = vector.extract_strided_slice %20 {offsets = [0, 24], sizes = [16, 8], strides = [1, 1]} : vector<16x32xf32> to vector<16x8xf32>
    %87 = vector.extract_strided_slice %21 {offsets = [0, 24], sizes = [16, 8], strides = [1, 1]} : vector<16x32xf32> to vector<16x8xf32>
    %cst_40 = arith.constant dense<0.000000e+00> : vector<8x16xf32>
    %88 = tpu.matmul %85, %86, %cst_40 {dimension_numbers = #tpu.dot_dimension_numbers<[1], [1], [0], [0], [0, 0, 1, 0], [], []>} : vector<8x8xf32>, vector<16x8xf32>, vector<8x16xf32> -> vector<8x16xf32>
    %cst_41 = arith.constant 0.353553385 : f32
    %89 = vector.broadcast %cst_41 : f32 to vector<8x16xf32>
    %90 = arith.mulf %88, %89 : vector<8x16xf32>
    %cst_42 = arith.constant dense<0xFF800000> : vector<8xf32>
    %91 = vector.multi_reduction <maximumf>, %90, %cst_42 [1] : vector<8x16xf32> to vector<8xf32>
    %92 = vector.shape_cast %91 : vector<8xf32> to vector<8x1xf32>
    %93 = vector.broadcast %92 : vector<8x1xf32> to vector<8x16xf32>
    %94 = arith.subf %90, %93 : vector<8x16xf32>
    %95 = math.exp %94 : vector<8x16xf32>
    %cst_43 = arith.constant dense<0.000000e+00> : vector<8xf32>
    %96 = vector.multi_reduction <add>, %95, %cst_43 [1] : vector<8x16xf32> to vector<8xf32>
    %97 = vector.shape_cast %96 : vector<8xf32> to vector<8x1xf32>
    %98 = tpu.reciprocal %97 {approx = true} : vector<8x1xf32> -> vector<8x1xf32>
    %99 = vector.broadcast %98 : vector<8x1xf32> to vector<8x16xf32>
    %100 = arith.mulf %95, %99 : vector<8x16xf32>
    %cst_44 = arith.constant dense<0.000000e+00> : vector<8x8xf32>
    %101 = tpu.matmul %100, %87, %cst_44 {dimension_numbers = #tpu.dot_dimension_numbers<[1], [0], [0], [1], [0, 0, 1, 1], [], []>} : vector<8x16xf32>, vector<16x8xf32>, vector<8x8xf32> -> vector<8x8xf32>
    %102 = vector.extract_strided_slice %23 {offsets = [24, 0], sizes = [8, 32], strides = [1, 1]} : vector<32x32xf32> to vector<8x32xf32>
    %cst_45 = arith.constant dense<0.000000e+00> : vector<8x32xf32>
    %103 = tpu.matmul %101, %102, %cst_45 {dimension_numbers = #tpu.dot_dimension_numbers<[1], [0], [0], [1], [0, 0, 1, 1], [], []>} : vector<8x8xf32>, vector<8x32xf32>, vector<8x32xf32> -> vector<8x32xf32>
    %104 = arith.addf %84, %103 : vector<8x32xf32>
    %c0_46 = arith.constant 0 : index
    %c0_47 = arith.constant 0 : index
    %c0_48 = arith.constant 0 : index
    %105 = vector.load %arg9[%c0_46, %c0_47, %c0_48] : memref<1x1x32xf32, #tpu.memory_space<vmem>>, vector<1x1x32xf32>
    %106 = vector.shape_cast %105 : vector<1x1x32xf32> to vector<1x32xf32>
    %107 = vector.broadcast %106 : vector<1x32xf32> to vector<8x32xf32>
    %108 = arith.addf %104, %107 : vector<8x32xf32>
    %109 = arith.addf %3, %108 : vector<8x32xf32>
    %c0_49 = arith.constant 0 : index
    %c0_50 = arith.constant 0 : index
    %c0_51 = arith.constant 0 : index
    %110 = vector.load %arg10[%c0_49, %c0_50, %c0_51] : memref<1x1x32xf32, #tpu.memory_space<vmem>>, vector<1x1x32xf32>
    %111 = vector.shape_cast %110 : vector<1x1x32xf32> to vector<1x32xf32>
    %c0_52 = arith.constant 0 : index
    %c0_53 = arith.constant 0 : index
    %c0_54 = arith.constant 0 : index
    %112 = vector.load %arg11[%c0_52, %c0_53, %c0_54] : memref<1x1x32xf32, #tpu.memory_space<vmem>>, vector<1x1x32xf32>
    %113 = vector.shape_cast %112 : vector<1x1x32xf32> to vector<1x32xf32>
    %cst_55 = arith.constant dense<0.000000e+00> : vector<8xf32>
    %114 = vector.multi_reduction <add>, %109, %cst_55 [1] : vector<8x32xf32> to vector<8xf32>
    %115 = vector.shape_cast %114 : vector<8xf32> to vector<8x1xf32>
    %cst_56 = arith.constant 3.200000e+01 : f32
    %116 = vector.broadcast %cst_56 : f32 to vector<8x1xf32>
    %117 = arith.divf %115, %116 : vector<8x1xf32>
    %118 = vector.broadcast %117 : vector<8x1xf32> to vector<8x32xf32>
    %119 = arith.subf %109, %118 : vector<8x32xf32>
    %120 = arith.mulf %119, %119 : vector<8x32xf32>
    %cst_57 = arith.constant dense<0.000000e+00> : vector<8xf32>
    %121 = vector.multi_reduction <add>, %120, %cst_57 [1] : vector<8x32xf32> to vector<8xf32>
    %122 = vector.shape_cast %121 : vector<8xf32> to vector<8x1xf32>
    %cst_58 = arith.constant 3.200000e+01 : f32
    %123 = vector.broadcast %cst_58 : f32 to vector<8x1xf32>
    %124 = arith.divf %122, %123 : vector<8x1xf32>
    %125 = vector.broadcast %117 : vector<8x1xf32> to vector<8x32xf32>
    %126 = arith.subf %109, %125 : vector<8x32xf32>
    %cst_59 = arith.constant 9.99999974E-6 : f32
    %127 = vector.broadcast %cst_59 : f32 to vector<8x1xf32>
    %128 = arith.addf %124, %127 : vector<8x1xf32>
    %129 = math.rsqrt %128 : vector<8x1xf32>
    %130 = vector.broadcast %129 : vector<8x1xf32> to vector<8x32xf32>
    %131 = arith.mulf %126, %130 : vector<8x32xf32>
    %132 = vector.broadcast %111 : vector<1x32xf32> to vector<8x32xf32>
    %133 = arith.mulf %131, %132 : vector<8x32xf32>
    %134 = vector.broadcast %113 : vector<1x32xf32> to vector<8x32xf32>
    %135 = arith.addf %133, %134 : vector<8x32xf32>
    %c0_60 = arith.constant 0 : index
    %c0_61 = arith.constant 0 : index
    %c0_62 = arith.constant 0 : index
    %136 = vector.load %arg12[%c0_60, %c0_61, %c0_62] : memref<1x32x64xf32, #tpu.memory_space<vmem>>, vector<1x32x64xf32>
    %137 = vector.shape_cast %136 : vector<1x32x64xf32> to vector<32x64xf32>
    %cst_63 = arith.constant dense<0.000000e+00> : vector<8x64xf32>
    %138 = tpu.matmul %135, %137, %cst_63 {dimension_numbers = #tpu.dot_dimension_numbers<[1], [0], [0], [1], [0, 0, 1, 1], [], []>} : vector<8x32xf32>, vector<32x64xf32>, vector<8x64xf32> -> vector<8x64xf32>
    %c0_64 = arith.constant 0 : index
    %c0_65 = arith.constant 0 : index
    %c0_66 = arith.constant 0 : index
    %139 = vector.load %arg13[%c0_64, %c0_65, %c0_66] : memref<1x1x64xf32, #tpu.memory_space<vmem>>, vector<1x1x64xf32>
    %140 = vector.shape_cast %139 : vector<1x1x64xf32> to vector<1x64xf32>
    %141 = vector.broadcast %140 : vector<1x64xf32> to vector<8x64xf32>
    %142 = arith.addf %138, %141 : vector<8x64xf32>
    %cst_67 = arith.constant 0.000000e+00 : f32
    %143 = vector.broadcast %cst_67 : f32 to vector<8x64xf32>
    %144 = arith.maximumf %142, %143 : vector<8x64xf32>
    %c0_68 = arith.constant 0 : index
    %c0_69 = arith.constant 0 : index
    %c0_70 = arith.constant 0 : index
    %145 = vector.load %arg14[%c0_68, %c0_69, %c0_70] : memref<1x64x32xf32, #tpu.memory_space<vmem>>, vector<1x64x32xf32>
    %146 = vector.shape_cast %145 : vector<1x64x32xf32> to vector<64x32xf32>
    %cst_71 = arith.constant dense<0.000000e+00> : vector<8x32xf32>
    %147 = tpu.matmul %144, %146, %cst_71 {dimension_numbers = #tpu.dot_dimension_numbers<[1], [0], [0], [1], [0, 0, 1, 1], [], []>} : vector<8x64xf32>, vector<64x32xf32>, vector<8x32xf32> -> vector<8x32xf32>
    %c0_72 = arith.constant 0 : index
    %c0_73 = arith.constant 0 : index
    %c0_74 = arith.constant 0 : index
    %148 = vector.load %arg15[%c0_72, %c0_73, %c0_74] : memref<1x1x32xf32, #tpu.memory_space<vmem>>, vector<1x1x32xf32>
    %149 = vector.shape_cast %148 : vector<1x1x32xf32> to vector<1x32xf32>
    %150 = vector.broadcast %149 : vector<1x32xf32> to vector<8x32xf32>
    %151 = arith.addf %147, %150 : vector<8x32xf32>
    %152 = arith.addf %135, %151 : vector<8x32xf32>
    %c0_75 = arith.constant 0 : index
    %c0_76 = arith.constant 0 : index
    %c0_77 = arith.constant 0 : index
    %153 = vector.load %arg16[%c0_75, %c0_76, %c0_77] : memref<1x1x32xf32, #tpu.memory_space<vmem>>, vector<1x1x32xf32>
    %154 = vector.shape_cast %153 : vector<1x1x32xf32> to vector<1x32xf32>
    %c0_78 = arith.constant 0 : index
    %c0_79 = arith.constant 0 : index
    %c0_80 = arith.constant 0 : index
    %155 = vector.load %arg17[%c0_78, %c0_79, %c0_80] : memref<1x1x32xf32, #tpu.memory_space<vmem>>, vector<1x1x32xf32>
    %156 = vector.shape_cast %155 : vector<1x1x32xf32> to vector<1x32xf32>
    %cst_81 = arith.constant dense<0.000000e+00> : vector<8xf32>
    %157 = vector.multi_reduction <add>, %152, %cst_81 [1] : vector<8x32xf32> to vector<8xf32>
    %158 = vector.shape_cast %157 : vector<8xf32> to vector<8x1xf32>
    %cst_82 = arith.constant 3.200000e+01 : f32
    %159 = vector.broadcast %cst_82 : f32 to vector<8x1xf32>
    %160 = arith.divf %158, %159 : vector<8x1xf32>
    %161 = vector.broadcast %160 : vector<8x1xf32> to vector<8x32xf32>
    %162 = arith.subf %152, %161 : vector<8x32xf32>
    %163 = arith.mulf %162, %162 : vector<8x32xf32>
    %cst_83 = arith.constant dense<0.000000e+00> : vector<8xf32>
    %164 = vector.multi_reduction <add>, %163, %cst_83 [1] : vector<8x32xf32> to vector<8xf32>
    %165 = vector.shape_cast %164 : vector<8xf32> to vector<8x1xf32>
    %cst_84 = arith.constant 3.200000e+01 : f32
    %166 = vector.broadcast %cst_84 : f32 to vector<8x1xf32>
    %167 = arith.divf %165, %166 : vector<8x1xf32>
    %168 = vector.broadcast %160 : vector<8x1xf32> to vector<8x32xf32>
    %169 = arith.subf %152, %168 : vector<8x32xf32>
    %cst_85 = arith.constant 9.99999974E-6 : f32
    %170 = vector.broadcast %cst_85 : f32 to vector<8x1xf32>
    %171 = arith.addf %167, %170 : vector<8x1xf32>
    %172 = math.rsqrt %171 : vector<8x1xf32>
    %173 = vector.broadcast %172 : vector<8x1xf32> to vector<8x32xf32>
    %174 = arith.mulf %169, %173 : vector<8x32xf32>
    %175 = vector.broadcast %154 : vector<1x32xf32> to vector<8x32xf32>
    %176 = arith.mulf %174, %175 : vector<8x32xf32>
    %177 = vector.broadcast %156 : vector<1x32xf32> to vector<8x32xf32>
    %178 = arith.addf %176, %177 : vector<8x32xf32>
    %c0_86 = arith.constant 0 : index
    %c0_87 = arith.constant 0 : index
    %179 = vector.load %arg21[%c0_86, %c0_87] : memref<8x32xf32, #tpu.memory_space<vmem>>, vector<8x32xf32>
    tpu.vector_store %arg21[%c0_86, %c0_87], %178 {strides = array<i32>} : memref<8x32xf32, #tpu.memory_space<vmem>>, vector<8x32xf32>,
    %c1_i32 = arith.constant 1 : i32
    %180 = arith.cmpi eq, %arg1, %c1_i32 : i32
    %181 = arith.extui %180 : i1 to i32
    %c0_i32_88 = arith.constant 0 : i32
    %182 = arith.cmpi ne, %181, %c0_i32_88 : i32
    scf.if %182 {
      %c0_89 = arith.constant 0 : index
      %c0_90 = arith.constant 0 : index
      %183 = vector.load %arg18[%c0_89, %c0_90] : memref<32x32xf32, #tpu.memory_space<vmem>>, vector<32x32xf32>
      %cst_91 = arith.constant dense<0.000000e+00> : vector<8x32xf32>
      %184 = tpu.matmul %178, %183, %cst_91 {dimension_numbers = #tpu.dot_dimension_numbers<[1], [0], [0], [1], [0, 0, 1, 1], [], []>} : vector<8x32xf32>, vector<32x32xf32>, vector<8x32xf32> -> vector<8x32xf32>
      %c0_92 = arith.constant 0 : index
      %c0_93 = arith.constant 0 : index
      %185 = vector.load %arg19[%c0_92, %c0_93] : memref<1x32xf32, #tpu.memory_space<vmem>>, vector<1x32xf32>
      %186 = vector.broadcast %185 : vector<1x32xf32> to vector<8x32xf32>
      %187 = arith.addf %184, %186 : vector<8x32xf32>
      %c0_94 = arith.constant 0 : index
      %c0_95 = arith.constant 0 : index
      %c0_96 = arith.constant 0 : index
      %188 = vector.load %arg20[%c0_94, %c0_95, %c0_96] : memref<1x8x32xf32, #tpu.memory_space<vmem>>, vector<1x8x32xf32>
      %189 = vector.shape_cast %188 : vector<1x8x32xf32> to vector<8x32xf32>
      %190 = vector.shape_cast %187 : vector<8x32xf32> to vector<1x8x32xf32>
      tpu.vector_store %arg20[%c0_94, %c0_95, %c0_96], %190 {strides = array<i32>} : memref<1x8x32xf32, #tpu.memory_space<vmem>>, vector<1x8x32xf32>,
    } else {
    }
    return
  }
  func.func @transform_0(%arg0: i32, %arg1: i32) -> (i32, i32, i32) {
    %c0_i32 = arith.constant 0 : i32
    %c0_i32_0 = arith.constant 0 : i32
    %c0_i32_1 = arith.constant 0 : i32
    return %arg0, %c0_i32, %c0_i32_0 : i32, i32, i32
  }
  func.func @transform_1(%arg0: i32, %arg1: i32) -> (i32, i32, i32) {
    %c0_i32 = arith.constant 0 : i32
    %c0_i32_0 = arith.constant 0 : i32
    %c0_i32_1 = arith.constant 0 : i32
    return %arg0, %c0_i32, %c0_i32_0 : i32, i32, i32
  }
  func.func @transform_2(%arg0: i32, %arg1: i32) -> (i32, i32, i32) {
    %c0_i32 = arith.constant 0 : i32
    %c0_i32_0 = arith.constant 0 : i32
    %c0_i32_1 = arith.constant 0 : i32
    return %arg1, %c0_i32, %c0_i32_0 : i32, i32, i32
  }
  func.func @transform_3(%arg0: i32, %arg1: i32) -> (i32, i32, i32) {
    %c0_i32 = arith.constant 0 : i32
    %c0_i32_0 = arith.constant 0 : i32
    %c0_i32_1 = arith.constant 0 : i32
    return %arg1, %c0_i32, %c0_i32_0 : i32, i32, i32
  }
  func.func @transform_4(%arg0: i32, %arg1: i32) -> (i32, i32, i32) {
    %c0_i32 = arith.constant 0 : i32
    %c0_i32_0 = arith.constant 0 : i32
    %c0_i32_1 = arith.constant 0 : i32
    return %arg1, %c0_i32, %c0_i32_0 : i32, i32, i32
  }
  func.func @transform_5(%arg0: i32, %arg1: i32) -> (i32, i32, i32) {
    %c0_i32 = arith.constant 0 : i32
    %c0_i32_0 = arith.constant 0 : i32
    %c0_i32_1 = arith.constant 0 : i32
    return %arg1, %c0_i32, %c0_i32_0 : i32, i32, i32
  }
  func.func @transform_6(%arg0: i32, %arg1: i32) -> (i32, i32, i32) {
    %c0_i32 = arith.constant 0 : i32
    %c0_i32_0 = arith.constant 0 : i32
    %c0_i32_1 = arith.constant 0 : i32
    return %arg1, %c0_i32, %c0_i32_0 : i32, i32, i32
  }
  func.func @transform_7(%arg0: i32, %arg1: i32) -> (i32, i32, i32) {
    %c0_i32 = arith.constant 0 : i32
    %c0_i32_0 = arith.constant 0 : i32
    %c0_i32_1 = arith.constant 0 : i32
    return %arg1, %c0_i32, %c0_i32_0 : i32, i32, i32
  }
  func.func @transform_8(%arg0: i32, %arg1: i32) -> (i32, i32, i32) {
    %c0_i32 = arith.constant 0 : i32
    %c0_i32_0 = arith.constant 0 : i32
    %c0_i32_1 = arith.constant 0 : i32
    return %arg1, %c0_i32, %c0_i32_0 : i32, i32, i32
  }
  func.func @transform_9(%arg0: i32, %arg1: i32) -> (i32, i32, i32) {
    %c0_i32 = arith.constant 0 : i32
    %c0_i32_0 = arith.constant 0 : i32
    %c0_i32_1 = arith.constant 0 : i32
    return %arg1, %c0_i32, %c0_i32_0 : i32, i32, i32
  }
  func.func @transform_10(%arg0: i32, %arg1: i32) -> (i32, i32, i32) {
    %c0_i32 = arith.constant 0 : i32
    %c0_i32_0 = arith.constant 0 : i32
    %c0_i32_1 = arith.constant 0 : i32
    return %arg1, %c0_i32, %c0_i32_0 : i32, i32, i32
  }
  func.func @transform_11(%arg0: i32, %arg1: i32) -> (i32, i32, i32) {
    %c0_i32 = arith.constant 0 : i32
    %c0_i32_0 = arith.constant 0 : i32
    %c0_i32_1 = arith.constant 0 : i32
    return %arg1, %c0_i32, %c0_i32_0 : i32, i32, i32
  }
  func.func @transform_12(%arg0: i32, %arg1: i32) -> (i32, i32, i32) {
    %c0_i32 = arith.constant 0 : i32
    %c0_i32_0 = arith.constant 0 : i32
    %c0_i32_1 = arith.constant 0 : i32
    return %arg1, %c0_i32, %c0_i32_0 : i32, i32, i32
  }
  func.func @transform_13(%arg0: i32, %arg1: i32) -> (i32, i32, i32) {
    %c0_i32 = arith.constant 0 : i32
    %c0_i32_0 = arith.constant 0 : i32
    %c0_i32_1 = arith.constant 0 : i32
    return %arg1, %c0_i32, %c0_i32_0 : i32, i32, i32
  }
  func.func @transform_14(%arg0: i32, %arg1: i32) -> (i32, i32, i32) {
    %c0_i32 = arith.constant 0 : i32
    %c0_i32_0 = arith.constant 0 : i32
    %c0_i32_1 = arith.constant 0 : i32
    return %arg1, %c0_i32, %c0_i32_0 : i32, i32, i32
  }
  func.func @transform_15(%arg0: i32, %arg1: i32) -> (i32, i32, i32) {
    %c0_i32 = arith.constant 0 : i32
    %c0_i32_0 = arith.constant 0 : i32
    %c0_i32_1 = arith.constant 0 : i32
    return %arg1, %c0_i32, %c0_i32_0 : i32, i32, i32
  }
  func.func @transform_16(%arg0: i32, %arg1: i32) -> (i32, i32) {
    %c0_i32 = arith.constant 0 : i32
    %c0_i32_0 = arith.constant 0 : i32
    %c0_i32_1 = arith.constant 0 : i32
    return %c0_i32, %c0_i32_0 : i32, i32
  }
  func.func @transform_17(%arg0: i32, %arg1: i32) -> (i32, i32) {
    %c0_i32 = arith.constant 0 : i32
    %c0_i32_0 = arith.constant 0 : i32
    %c0_i32_1 = arith.constant 0 : i32
    return %c0_i32, %c0_i32_0 : i32, i32
  }
  func.func @transform_18(%arg0: i32, %arg1: i32) -> (i32, i32, i32) {
    %c0_i32 = arith.constant 0 : i32
    %c0_i32_0 = arith.constant 0 : i32
    %c0_i32_1 = arith.constant 0 : i32
    return %arg0, %c0_i32, %c0_i32_0 : i32, i32, i32
  }
}

</mosaic_0001>

<llo_original>
// kernel: transformer_decoder.1
$region0: #{transformer_decoder.1}
  #allocation0 [shape = 'u32[]', space=smem, size = 0x4, offset = 0x4, fixed_abs, tag = 'smem constant byte address 0x4 - core index']
  #allocation1 [shape = 'u32[144,128]{1,0:T(1,128)}', space=vmem, size = 0x12000, scoped, tag = 'internal scratch']
  #allocation2 [shape = 'f32[8,32]{1,0:T(8,128)}', space=vmem, size = 0x1000, scoped, tag = 'scratch operand']
  %s0 = inlined_call_operand.hbm [shape: f32[2,8,32], index: 0, kind: input, shape index: {}]
  %s1 = inlined_call_operand.hbm [shape: f32[2,16,32], index: 1, kind: input, shape index: {}]
  %s2 = inlined_call_operand.vmem [shape: f32[2,32,32], index: 2, kind: input, shape index: {}]
  %s3 = inlined_call_operand.vmem [shape: f32[2,1,32], index: 3, kind: input, shape index: {}]
  %s4 = inlined_call_operand.vmem [shape: f32[2,32,64], index: 4, kind: input, shape index: {}]
  %s5 = inlined_call_operand.hbm [shape: f32[2,1,64], index: 5, kind: input, shape index: {}]
  %s6 = inlined_call_operand.vmem [shape: f32[2,32,32], index: 6, kind: input, shape index: {}]
  %s7 = inlined_call_operand.hbm [shape: f32[2,1,32], index: 7, kind: input, shape index: {}]
  %s8 = inlined_call_operand.hbm [shape: f32[2,1,32], index: 8, kind: input, shape index: {}]
  %s9 = inlined_call_operand.hbm [shape: f32[2,1,32], index: 9, kind: input, shape index: {}]
  %s10 = inlined_call_operand.hbm [shape: f32[2,32,64], index: 10, kind: input, shape index: {}]
  %s11 = inlined_call_operand.hbm [shape: f32[2,1,64], index: 11, kind: input, shape index: {}]
  %s12 = inlined_call_operand.vmem [shape: f32[2,64,32], index: 12, kind: input, shape index: {}]
  %s13 = inlined_call_operand.hbm [shape: f32[2,1,32], index: 13, kind: input, shape index: {}]
  %s14 = inlined_call_operand.vmem [shape: f32[2,1,32], index: 14, kind: input, shape index: {}]
  %s15 = inlined_call_operand.hbm [shape: f32[2,1,32], index: 15, kind: input, shape index: {}]
  %s16 = inlined_call_operand.vmem [shape: f32[32,32], index: 16, kind: input, shape index: {}]
  %s17 = inlined_call_operand.hbm [shape: f32[1,32], index: 17, kind: input, shape index: {}]
  %s18 = inlined_call_operand.hbm [shape: f32[2,8,32], index: 18, kind: output, shape index: {}]
  %s19 = sld [smem:[#allocation0]]
  $region157: #{transformer_decoder.1} parent=0
    _
  %s21 = ssub.s32 1, %s19
  %s22 = scalar_select 0, %s21, %s19
  $region1: #{transformer_decoder.1} parent=0
    #allocation3 [shape = 'u8[8192]{0}', space=vmem, size = 0x2000, scoped, tag = 'input window, operand 0']
    #allocation4 [shape = 's32[2]{0}', space=sflag, size = 0x8, scoped, tag = 'scoped memory for transformer_decoder.1']
    #allocation5 [shape = 's32[2]{0}', space=sflag, size = 0x8, scoped, tag = 'scoped memory for transformer_decoder.1']
    #allocation6 [shape = 'u8[16384]{0}', space=vmem, size = 0x4000, scoped, tag = 'input window, operand 1']
    #allocation7 [shape = 's32[2]{0}', space=sflag, size = 0x8, scoped, tag = 'scoped memory for transformer_decoder.1']
    #allocation8 [shape = 'u8[1024]{0}', space=vmem, size = 0x400, scoped, tag = 'input window, operand 5']
    #allocation9 [shape = 'u8[1024]{0}', space=vmem, size = 0x400, scoped, tag = 'input window, operand 7']
    #allocation10 [shape = 's32[2]{0}', space=sflag, size = 0x8, scoped, tag = 'scoped memory for transformer_decoder.1']
    #allocation11 [shape = 'u8[1024]{0}', space=vmem, size = 0x400, scoped, tag = 'input window, operand 8']
    #allocation12 [shape = 'u8[1024]{0}', space=vmem, size = 0x400, scoped, tag = 'input window, operand 9']
    #allocation13 [shape = 's32[2]{0}', space=sflag, size = 0x8, scoped, tag = 'scoped memory for transformer_decoder.1']
    #allocation14 [shape = 'u8[32768]{0}', space=vmem, size = 0x8000, scoped, tag = 'input window, operand 10']
    #allocation15 [shape = 'u8[1024]{0}', space=vmem, size = 0x400, scoped, tag = 'input window, operand 11']
    #allocation16 [shape = 's32[2]{0}', space=sflag, size = 0x8, scoped, tag = 'scoped memory for transformer_decoder.1']
    #allocation17 [shape = 'u8[1024]{0}', space=vmem, size = 0x400, scoped, tag = 'input window, operand 13']
    #allocation18 [shape = 'u8[1024]{0}', space=vmem, size = 0x400, scoped, tag = 'input window, operand 15']
    #allocation19 [shape = 's32[2]{0}', space=sflag, size = 0x8, scoped, tag = 'scoped memory for transformer_decoder.1']
    #allocation20 [shape = 'u8[512]{0}', space=vmem, size = 0x400, scoped, tag = 'input window, operand 17, single buffered']
    #allocation21 [shape = 'u8[8192]{0}', space=vmem, size = 0x2000, scoped, tag = 'output window, operand 0']
    %23 = vsyncpa [#allocation4], 0
    %s24 = scalar_lea.sflag [#allocation4], 1
    %25 = vsyncpa %s24, 0
    %26 = vsyncpa [#allocation7], 0
    %s27 = scalar_lea.sflag [#allocation7], 1
    %28 = vsyncpa %s27, 0
    %29 = vsyncpa [#allocation10], 0
    %s30 = scalar_lea.sflag [#allocation10], 1
    %31 = vsyncpa %s30, 0
    %32 = vsyncpa [#allocation13], 0
    %s33 = scalar_lea.sflag [#allocation13], 1
    %34 = vsyncpa %s33, 0
    %35 = vsyncpa [#allocation16], 0
    %s36 = scalar_lea.sflag [#allocation16], 1
    %37 = vsyncpa %s36, 0
    %38 = vsyncpa [#allocation19], 0
    %s39 = scalar_lea.sflag [#allocation19], 1
    %40 = vsyncpa %s39, 0
    %41 = vsyncpa [#allocation5], 0
    %s42 = scalar_lea.sflag [#allocation5], 1
    %43 = vsyncpa %s42, 0
    loop: start=0, step=1, limit=6
    $region2: #{transformer_decoder.1} parent=1 // loop_pre_header
      _
    $region3: #{transformer_decoder.1} parent=1 // loop_header
      %s45 = sphi 0, %s49
      %p46 = scmp.ge.s32.totalorder %s45, 6
      %s52 = sphi 0, %s64
      %s53 = sphi 0, %s60
      %s54 = sphi 0, %s52
      %s55 = sphi 0, %s53
      %s56 = sphi 0, %s54
      %s57 = sphi 0, %s55
      %s67 = sphi 0, %s69
      %s70 = sphi 0, %s67
      %s71 = sphi 0, %s70
      %s87 = sphi 0, %s71
      %s93 = sphi 0, %s95
      %s96 = sphi 0, %s93
      %s97 = sphi 0, %s96
      %s113 = sphi 0, %s97
      %s119 = sphi 0, %s121
      %s122 = sphi 0, %s119
      %s123 = sphi 0, %s122
      %s139 = sphi 0, %s123
      %s145 = sphi 0, %s147
      %s148 = sphi 0, %s145
      %s149 = sphi 0, %s148
      %s165 = sphi 0, %s149
      %s171 = sphi 0, %s173
      %s174 = sphi 0, %s171
      %s175 = sphi 0, %s174
      %s191 = sphi 0, %s175
      %s197 = sphi 0, %s199
      %s200 = sphi 0, %s197
      %s201 = sphi 0, %s200
      %s217 = sphi 0, %s201
      %s223 = sphi 0, %s225
      %s226 = sphi 0, %s223
      %s227 = sphi 0, %s226
      %s243 = sphi 0, %s227
      %s249 = sphi 0, %s251
      %s252 = sphi 0, %s249
      %s253 = sphi 0, %s252
      %s269 = sphi 0, %s253
      %s275 = sphi 0, %s277
      %s278 = sphi 0, %s275
      %s279 = sphi 0, %s278
      %s295 = sphi 0, %s279
      %s301 = sphi 0, %s303
      %s304 = sphi 0, %s301
      %s305 = sphi 0, %s304
      %s321 = sphi 0, %s305
      %s327 = sphi 0, %s329
      %s330 = sphi 0, %s327
      %s331 = sphi 0, %s330
      %s347 = sphi 0, %s331
      %s353 = sphi 0, %s355
      %s356 = sphi 0, %s353
      %s357 = sphi 0, %s356
      %s373 = sphi 0, %s357
      %s379 = sphi 0, %s381
      %s382 = sphi 0, %s379
      %s383 = sphi 0, %s382
      %s399 = sphi 0, %s383
      %s405 = sphi 0, %s407
      %s408 = sphi 0, %s405
      %s409 = sphi 0, %s408
      %s425 = sphi 0, %s409
      %s431 = sphi 0, %s433
      %s434 = sphi 0, %s431
      %s435 = sphi 0, %s434
      %s451 = sphi 0, %s435
      %s457 = sphi 0, %s459
      %s460 = sphi 0, %s457
      %s461 = sphi 0, %s460
      %s477 = sphi 0, %s461
      %s481 = sphi 0, %s481
      %s483 = sphi 0, %s481
      %s484 = sphi 0, %s483
      %s498 = sphi 0, %s484
      %s502 = sphi 0, %s502
      %s504 = sphi 0, %s502
      %s505 = sphi 0, %s504
      %s519 = sphi 0, %s505
      %s525 = sphi 0, %s527
      %s528 = sphi 0, %s525
      %s529 = sphi 0, %s528
      %s545 = sphi 0, %s529
    $region4: #{transformer_decoder.1} parent=1 // loop_header_branch
      %48 = sbr.rel (%p46) target = $region8
    $region5: #{transformer_decoder.1} parent=1 // loop_body
      %s50 = ssub.s32 %s45, 1
      %s51 = ssub.s32 %s45, 2
      %s58 = sadd.s32 1, %s53
      %p59 = scmp.ge.s32.totalorder %s58, 2
      %s60 = scalar_select %p59, 0, %s58
      %s61 = sadd.s32 1, %s52
      %s62 = scalar_select %p59, %s61, %s52
      %p63 = scmp.ge.s32.totalorder %s62, 2
      %s64 = scalar_select %p63, 0, %s62
      %s65 = ssub.s32 %s52, %s64
      %p66 = scmp.eq.s32.totalorder %s65, 0
      %s68 = sadd.s32 %s67, 1
      %s69 = scalar_select %p66, %s67, %s68
      %p72 = pneg %p66
      %p73 = scmp.eq.s32.totalorder %s45, 3
      %p74 = por %p72, %p73
      %p75 = scmp.ne.s32.totalorder %s67, %s70
      %p76 = scmp.eq.s32.totalorder %s45, 0
      %p77 = por %p75, %p76
      %p78 = scmp.ne.s32.totalorder %s67, %s70
      %p79 = scmp.eq.s32.totalorder %s50, 3
      %p80 = por %p78, %p79
      %p81 = scmp.ne.s32.totalorder %s70, %s71
      %p82 = scmp.eq.s32.totalorder %s50, 0
      %p83 = por %p81, %p82
      %p84 = scmp.ne.s32.totalorder %s70, %s71
      %p85 = scmp.eq.s32.totalorder %s51, 3
      %p86 = por %p84, %p85
      %p88 = scmp.ne.s32.totalorder %s71, %s87
      %p89 = scmp.eq.s32.totalorder %s51, 0
      %p90 = por %p88, %p89
      %s91 = ssub.s32 %s52, %s64
      %p92 = scmp.eq.s32.totalorder %s91, 0
      %s94 = sadd.s32 %s93, 1
      %s95 = scalar_select %p92, %s93, %s94
      %p98 = pneg %p92
      %p99 = scmp.eq.s32.totalorder %s45, 3
      %p100 = por %p98, %p99
      %p101 = scmp.ne.s32.totalorder %s93, %s96
      %p102 = scmp.eq.s32.totalorder %s45, 0
      %p103 = por %p101, %p102
      %p104 = scmp.ne.s32.totalorder %s93, %s96
      %p105 = scmp.eq.s32.totalorder %s50, 3
      %p106 = por %p104, %p105
      %p107 = scmp.ne.s32.totalorder %s96, %s97
      %p108 = scmp.eq.s32.totalorder %s50, 0
      %p109 = por %p107, %p108
      %p110 = scmp.ne.s32.totalorder %s96, %s97
      %p111 = scmp.eq.s32.totalorder %s51, 3
      %p112 = por %p110, %p111
      %p114 = scmp.ne.s32.totalorder %s97, %s113
      %p115 = scmp.eq.s32.totalorder %s51, 0
      %p116 = por %p114, %p115
      %s117 = ssub.s32 %s53, %s60
      %p118 = scmp.eq.s32.totalorder %s117, 0
      %s120 = sadd.s32 %s119, 1
      %s121 = scalar_select %p118, %s119, %s120
      %p124 = pneg %p118
      %p125 = scmp.eq.s32.totalorder %s45, 3
      %p126 = por %p124, %p125
      %p127 = scmp.ne.s32.totalorder %s119, %s122
      %p128 = scmp.eq.s32.totalorder %s45, 0
      %p129 = por %p127, %p128
      %p130 = scmp.ne.s32.totalorder %s119, %s122
      %p131 = scmp.eq.s32.totalorder %s50, 3
      %p132 = por %p130, %p131
      %p133 = scmp.ne.s32.totalorder %s122, %s123
      %p134 = scmp.eq.s32.totalorder %s50, 0
      %p135 = por %p133, %p134
      %p136 = scmp.ne.s32.totalorder %s122, %s123
      %p137 = scmp.eq.s32.totalorder %s51, 3
      %p138 = por %p136, %p137
      %p140 = scmp.ne.s32.totalorder %s123, %s139
      %p141 = scmp.eq.s32.totalorder %s51, 0
      %p142 = por %p140, %p141
      %s143 = ssub.s32 %s53, %s60
      %p144 = scmp.eq.s32.totalorder %s143, 0
      %s146 = sadd.s32 %s145, 1
      %s147 = scalar_select %p144, %s145, %s146
      %p150 = pneg %p144
      %p151 = scmp.eq.s32.totalorder %s45, 3
      %p152 = por %p150, %p151
      %p153 = scmp.ne.s32.totalorder %s145, %s148
      %p154 = scmp.eq.s32.totalorder %s45, 0
      %p155 = por %p153, %p154
      %p156 = scmp.ne.s32.totalorder %s145, %s148
      %p157 = scmp.eq.s32.totalorder %s50, 3
      %p158 = por %p156, %p157
      %p159 = scmp.ne.s32.totalorder %s148, %s149
      %p160 = scmp.eq.s32.totalorder %s50, 0
      %p161 = por %p159, %p160
      %p162 = scmp.ne.s32.totalorder %s148, %s149
      %p163 = scmp.eq.s32.totalorder %s51, 3
      %p164 = por %p162, %p163
      %p166 = scmp.ne.s32.totalorder %s149, %s165
      %p167 = scmp.eq.s32.totalorder %s51, 0
      %p168 = por %p166, %p167
      %s169 = ssub.s32 %s53, %s60
      %p170 = scmp.eq.s32.totalorder %s169, 0
      %s172 = sadd.s32 %s171, 1
      %s173 = scalar_select %p170, %s171, %s172
      %p176 = pneg %p170
      %p177 = scmp.eq.s32.totalorder %s45, 3
      %p178 = por %p176, %p177
      %p179 = scmp.ne.s32.totalorder %s171, %s174
      %p180 = scmp.eq.s32.totalorder %s45, 0
      %p181 = por %p179, %p180
      %p182 = scmp.ne.s32.totalorder %s171, %s174
      %p183 = scmp.eq.s32.totalorder %s50, 3
      %p184 = por %p182, %p183
      %p185 = scmp.ne.s32.totalorder %s174, %s175
      %p186 = scmp.eq.s32.totalorder %s50, 0
      %p187 = por %p185, %p186
      %p188 = scmp.ne.s32.totalorder %s174, %s175
      %p189 = scmp.eq.s32.totalorder %s51, 3
      %p190 = por %p188, %p189
      %p192 = scmp.ne.s32.totalorder %s175, %s191
      %p193 = scmp.eq.s32.totalorder %s51, 0
      %p194 = por %p192, %p193
      %s195 = ssub.s32 %s53, %s60
      %p196 = scmp.eq.s32.totalorder %s195, 0
      %s198 = sadd.s32 %s197, 1
      %s199 = scalar_select %p196, %s197, %s198
      %p202 = pneg %p196
      %p203 = scmp.eq.s32.totalorder %s45, 3
      %p204 = por %p202, %p203
      %p205 = scmp.ne.s32.totalorder %s197, %s200
      %p206 = scmp.eq.s32.totalorder %s45, 0
      %p207 = por %p205, %p206
      %p208 = scmp.ne.s32.totalorder %s197, %s200
      %p209 = scmp.eq.s32.totalorder %s50, 3
      %p210 = por %p208, %p209
      %p211 = scmp.ne.s32.totalorder %s200, %s201
      %p212 = scmp.eq.s32.totalorder %s50, 0
      %p213 = por %p211, %p212
      %p214 = scmp.ne.s32.totalorder %s200, %s201
      %p215 = scmp.eq.s32.totalorder %s51, 3
      %p216 = por %p214, %p215
      %p218 = scmp.ne.s32.totalorder %s201, %s217
      %p219 = scmp.eq.s32.totalorder %s51, 0
      %p220 = por %p218, %p219
      %s221 = ssub.s32 %s53, %s60
      %p222 = scmp.eq.s32.totalorder %s221, 0
      %s224 = sadd.s32 %s223, 1
      %s225 = scalar_select %p222, %s223, %s224
      %p228 = pneg %p222
      %p229 = scmp.eq.s32.totalorder %s45, 3
      %p230 = por %p228, %p229
      %p231 = scmp.ne.s32.totalorder %s223, %s226
      %p232 = scmp.eq.s32.totalorder %s45, 0
      %p233 = por %p231, %p232
      %p234 = scmp.ne.s32.totalorder %s223, %s226
      %p235 = scmp.eq.s32.totalorder %s50, 3
      %p236 = por %p234, %p235
      %p237 = scmp.ne.s32.totalorder %s226, %s227
      %p238 = scmp.eq.s32.totalorder %s50, 0
      %p239 = por %p237, %p238
      %p240 = scmp.ne.s32.totalorder %s226, %s227
      %p241 = scmp.eq.s32.totalorder %s51, 3
      %p242 = por %p240, %p241
      %p244 = scmp.ne.s32.totalorder %s227, %s243
      %p245 = scmp.eq.s32.totalorder %s51, 0
      %p246 = por %p244, %p245
      %s247 = ssub.s32 %s53, %s60
      %p248 = scmp.eq.s32.totalorder %s247, 0
      %s250 = sadd.s32 %s249, 1
      %s251 = scalar_select %p248, %s249, %s250
      %p254 = pneg %p248
      %p255 = scmp.eq.s32.totalorder %s45, 3
      %p256 = por %p254, %p255
      %p257 = scmp.ne.s32.totalorder %s249, %s252
      %p258 = scmp.eq.s32.totalorder %s45, 0
      %p259 = por %p257, %p258
      %p260 = scmp.ne.s32.totalorder %s249, %s252
      %p261 = scmp.eq.s32.totalorder %s50, 3
      %p262 = por %p260, %p261
      %p263 = scmp.ne.s32.totalorder %s252, %s253
      %p264 = scmp.eq.s32.totalorder %s50, 0
      %p265 = por %p263, %p264
      %p266 = scmp.ne.s32.totalorder %s252, %s253
      %p267 = scmp.eq.s32.totalorder %s51, 3
      %p268 = por %p266, %p267
      %p270 = scmp.ne.s32.totalorder %s253, %s269
      %p271 = scmp.eq.s32.totalorder %s51, 0
      %p272 = por %p270, %p271
      %s273 = ssub.s32 %s53, %s60
      %p274 = scmp.eq.s32.totalorder %s273, 0
      %s276 = sadd.s32 %s275, 1
      %s277 = scalar_select %p274, %s275, %s276
      %p280 = pneg %p274
      %p281 = scmp.eq.s32.totalorder %s45, 3
      %p282 = por %p280, %p281
      %p283 = scmp.ne.s32.totalorder %s275, %s278
      %p284 = scmp.eq.s32.totalorder %s45, 0
      %p285 = por %p283, %p284
      %p286 = scmp.ne.s32.totalorder %s275, %s278
      %p287 = scmp.eq.s32.totalorder %s50, 3
      %p288 = por %p286, %p287
      %p289 = scmp.ne.s32.totalorder %s278, %s279
      %p290 = scmp.eq.s32.totalorder %s50, 0
      %p291 = por %p289, %p290
      %p292 = scmp.ne.s32.totalorder %s278, %s279
      %p293 = scmp.eq.s32.totalorder %s51, 3
      %p294 = por %p292, %p293
      %p296 = scmp.ne.s32.totalorder %s279, %s295
      %p297 = scmp.eq.s32.totalorder %s51, 0
      %p298 = por %p296, %p297
      %s299 = ssub.s32 %s53, %s60
      %p300 = scmp.eq.s32.totalorder %s299, 0
      %s302 = sadd.s32 %s301, 1
      %s303 = scalar_select %p300, %s301, %s302
      %p306 = pneg %p300
      %p307 = scmp.eq.s32.totalorder %s45, 3
      %p308 = por %p306, %p307
      %p309 = scmp.ne.s32.totalorder %s301, %s304
      %p310 = scmp.eq.s32.totalorder %s45, 0
      %p311 = por %p309, %p310
      %p312 = scmp.ne.s32.totalorder %s301, %s304
      %p313 = scmp.eq.s32.totalorder %s50, 3
      %p314 = por %p312, %p313
      %p315 = scmp.ne.s32.totalorder %s304, %s305
      %p316 = scmp.eq.s32.totalorder %s50, 0
      %p317 = por %p315, %p316
      %p318 = scmp.ne.s32.totalorder %s304, %s305
      %p319 = scmp.eq.s32.totalorder %s51, 3
      %p320 = por %p318, %p319
      %p322 = scmp.ne.s32.totalorder %s305, %s321
      %p323 = scmp.eq.s32.totalorder %s51, 0
      %p324 = por %p322, %p323
      %s325 = ssub.s32 %s53, %s60
      %p326 = scmp.eq.s32.totalorder %s325, 0
      %s328 = sadd.s32 %s327, 1
      %s329 = scalar_select %p326, %s327, %s328
      %p332 = pneg %p326
      %p333 = scmp.eq.s32.totalorder %s45, 3
      %p334 = por %p332, %p333
      %p335 = scmp.ne.s32.totalorder %s327, %s330
      %p336 = scmp.eq.s32.totalorder %s45, 0
      %p337 = por %p335, %p336
      %p338 = scmp.ne.s32.totalorder %s327, %s330
      %p339 = scmp.eq.s32.totalorder %s50, 3
      %p340 = por %p338, %p339
      %p341 = scmp.ne.s32.totalorder %s330, %s331
      %p342 = scmp.eq.s32.totalorder %s50, 0
      %p343 = por %p341, %p342
      %p344 = scmp.ne.s32.totalorder %s330, %s331
      %p345 = scmp.eq.s32.totalorder %s51, 3
      %p346 = por %p344, %p345
      %p348 = scmp.ne.s32.totalorder %s331, %s347
      %p349 = scmp.eq.s32.totalorder %s51, 0
      %p350 = por %p348, %p349
      %s351 = ssub.s32 %s53, %s60
      %p352 = scmp.eq.s32.totalorder %s351, 0
      %s354 = sadd.s32 %s353, 1
      %s355 = scalar_select %p352, %s353, %s354
      %p358 = pneg %p352
      %p359 = scmp.eq.s32.totalorder %s45, 3
      %p360 = por %p358, %p359
      %p361 = scmp.ne.s32.totalorder %s353, %s356
      %p362 = scmp.eq.s32.totalorder %s45, 0
      %p363 = por %p361, %p362
      %p364 = scmp.ne.s32.totalorder %s353, %s356
      %p365 = scmp.eq.s32.totalorder %s50, 3
      %p366 = por %p364, %p365
      %p367 = scmp.ne.s32.totalorder %s356, %s357
      %p368 = scmp.eq.s32.totalorder %s50, 0
      %p369 = por %p367, %p368
      %p370 = scmp.ne.s32.totalorder %s356, %s357
      %p371 = scmp.eq.s32.totalorder %s51, 3
      %p372 = por %p370, %p371
      %p374 = scmp.ne.s32.totalorder %s357, %s373
      %p375 = scmp.eq.s32.totalorder %s51, 0
      %p376 = por %p374, %p375
      %s377 = ssub.s32 %s53, %s60
      %p378 = scmp.eq.s32.totalorder %s377, 0
      %s380 = sadd.s32 %s379, 1
      %s381 = scalar_select %p378, %s379, %s380
      %p384 = pneg %p378
      %p385 = scmp.eq.s32.totalorder %s45, 3
      %p386 = por %p384, %p385
      %p387 = scmp.ne.s32.totalorder %s379, %s382
      %p388 = scmp.eq.s32.totalorder %s45, 0
      %p389 = por %p387, %p388
      %p390 = scmp.ne.s32.totalorder %s379, %s382
      %p391 = scmp.eq.s32.totalorder %s50, 3
      %p392 = por %p390, %p391
      %p393 = scmp.ne.s32.totalorder %s382, %s383
      %p394 = scmp.eq.s32.totalorder %s50, 0
      %p395 = por %p393, %p394
      %p396 = scmp.ne.s32.totalorder %s382, %s383
      %p397 = scmp.eq.s32.totalorder %s51, 3
      %p398 = por %p396, %p397
      %p400 = scmp.ne.s32.totalorder %s383, %s399
      %p401 = scmp.eq.s32.totalorder %s51, 0
      %p402 = por %p400, %p401
      %s403 = ssub.s32 %s53, %s60
      %p404 = scmp.eq.s32.totalorder %s403, 0
      %s406 = sadd.s32 %s405, 1
      %s407 = scalar_select %p404, %s405, %s406
      %p410 = pneg %p404
      %p411 = scmp.eq.s32.totalorder %s45, 3
      %p412 = por %p410, %p411
      %p413 = scmp.ne.s32.totalorder %s405, %s408
      %p414 = scmp.eq.s32.totalorder %s45, 0
      %p415 = por %p413, %p414
      %p416 = scmp.ne.s32.totalorder %s405, %s408
      %p417 = scmp.eq.s32.totalorder %s50, 3
      %p418 = por %p416, %p417
      %p419 = scmp.ne.s32.totalorder %s408, %s409
      %p420 = scmp.eq.s32.totalorder %s50, 0
      %p421 = por %p419, %p420
      %p422 = scmp.ne.s32.totalorder %s408, %s409
      %p423 = scmp.eq.s32.totalorder %s51, 3
      %p424 = por %p422, %p423
      %p426 = scmp.ne.s32.totalorder %s409, %s425
      %p427 = scmp.eq.s32.totalorder %s51, 0
      %p428 = por %p426, %p427
      %s429 = ssub.s32 %s53, %s60
      %p430 = scmp.eq.s32.totalorder %s429, 0
      %s432 = sadd.s32 %s431, 1
      %s433 = scalar_select %p430, %s431, %s432
      %p436 = pneg %p430
      %p437 = scmp.eq.s32.totalorder %s45, 3
      %p438 = por %p436, %p437
      %p439 = scmp.ne.s32.totalorder %s431, %s434
      %p440 = scmp.eq.s32.totalorder %s45, 0
      %p441 = por %p439, %p440
      %p442 = scmp.ne.s32.totalorder %s431, %s434
      %p443 = scmp.eq.s32.totalorder %s50, 3
      %p444 = por %p442, %p443
      %p445 = scmp.ne.s32.totalorder %s434, %s435
      %p446 = scmp.eq.s32.totalorder %s50, 0
      %p447 = por %p445, %p446
      %p448 = scmp.ne.s32.totalorder %s434, %s435
      %p449 = scmp.eq.s32.totalorder %s51, 3
      %p450 = por %p448, %p449
      %p452 = scmp.ne.s32.totalorder %s435, %s451
      %p453 = scmp.eq.s32.totalorder %s51, 0
      %p454 = por %p452, %p453
      %s455 = ssub.s32 %s53, %s60
      %p456 = scmp.eq.s32.totalorder %s455, 0
      %s458 = sadd.s32 %s457, 1
      %s459 = scalar_select %p456, %s457, %s458
      %p462 = pneg %p456
      %p463 = scmp.eq.s32.totalorder %s45, 3
      %p464 = por %p462, %p463
      %p465 = scmp.ne.s32.totalorder %s457, %s460
      %p466 = scmp.eq.s32.totalorder %s45, 0
      %p467 = por %p465, %p466
      %p468 = scmp.ne.s32.totalorder %s457, %s460
      %p469 = scmp.eq.s32.totalorder %s50, 3
      %p470 = por %p468, %p469
      %p471 = scmp.ne.s32.totalorder %s460, %s461
      %p472 = scmp.eq.s32.totalorder %s50, 0
      %p473 = por %p471, %p472
      %p474 = scmp.ne.s32.totalorder %s460, %s461
      %p475 = scmp.eq.s32.totalorder %s51, 3
      %p476 = por %p474, %p475
      %p478 = scmp.ne.s32.totalorder %s461, %s477
      %p479 = scmp.eq.s32.totalorder %s51, 0
      %p480 = por %p478, %p479
      %s482 = sadd.s32 %s481, 1
      %p485 = scmp.eq.s32.totalorder %s45, 3
      %p486 = scmp.ne.s32.totalorder %s481, %s483
      %p487 = scmp.eq.s32.totalorder %s45, 0
      %p488 = por %p486, %p487
      %p489 = scmp.ne.s32.totalorder %s481, %s483
      %p490 = scmp.eq.s32.totalorder %s50, 3
      %p491 = por %p489, %p490
      %p492 = scmp.ne.s32.totalorder %s483, %s484
      %p493 = scmp.eq.s32.totalorder %s50, 0
      %p494 = por %p492, %p493
      %p495 = scmp.ne.s32.totalorder %s483, %s484
      %p496 = scmp.eq.s32.totalorder %s51, 3
      %p497 = por %p495, %p496
      %p499 = scmp.ne.s32.totalorder %s484, %s498
      %p500 = scmp.eq.s32.totalorder %s51, 0
      %p501 = por %p499, %p500
      %s503 = sadd.s32 %s502, 1
      %p506 = scmp.eq.s32.totalorder %s45, 3
      %p507 = scmp.ne.s32.totalorder %s502, %s504
      %p508 = scmp.eq.s32.totalorder %s45, 0
      %p509 = por %p507, %p508
      %p510 = scmp.ne.s32.totalorder %s502, %s504
      %p511 = scmp.eq.s32.totalorder %s50, 3
      %p512 = por %p510, %p511
      %p513 = scmp.ne.s32.totalorder %s504, %s505
      %p514 = scmp.eq.s32.totalorder %s50, 0
      %p515 = por %p513, %p514
      %p516 = scmp.ne.s32.totalorder %s504, %s505
      %p517 = scmp.eq.s32.totalorder %s51, 3
      %p518 = por %p516, %p517
      %p520 = scmp.ne.s32.totalorder %s505, %s519
      %p521 = scmp.eq.s32.totalorder %s51, 0
      %p522 = por %p520, %p521
      %s523 = ssub.s32 %s52, %s64
      %p524 = scmp.eq.s32.totalorder %s523, 0
      %s526 = sadd.s32 %s525, 1
      %s527 = scalar_select %p524, %s525, %s526
      %p530 = pneg %p524
      %p531 = scmp.eq.s32.totalorder %s45, 3
      %p532 = por %p530, %p531
      %p533 = scmp.ne.s32.totalorder %s525, %s528
      %p534 = scmp.eq.s32.totalorder %s45, 0
      %p535 = por %p533, %p534
      %p536 = scmp.ne.s32.totalorder %s525, %s528
      %p537 = scmp.eq.s32.totalorder %s50, 3
      %p538 = por %p536, %p537
      %p539 = scmp.ne.s32.totalorder %s528, %s529
      %p540 = scmp.eq.s32.totalorder %s50, 0
      %p541 = por %p539, %p540
      %p542 = scmp.ne.s32.totalorder %s528, %s529
      %p543 = scmp.eq.s32.totalorder %s51, 3
      %p544 = por %p542, %p543
      %p546 = scmp.ne.s32.totalorder %s529, %s545
      %p547 = scmp.eq.s32.totalorder %s51, 0
      %p548 = por %p546, %p547
      %p549 = scmp.le.s32.totalorder 1, %s45
      %p550 = scmp.lt.s32.totalorder %s45, 5
      %p551 = pnand %p549, %p550
      %p552 = pneg %p551
      // Predicated region
      $region9: #{transformer_decoder.1} parent=5 // pred_check
        _
      $region10: #{transformer_decoder.1} parent=5 // pred_check_branch
        %554 = sbr.rel (%p551) target = $region12
      $region11: #{transformer_decoder.1} parent=5 // pred_region
        %s555 = ssub.s32 %s45, 1
        // Predicated region
        $region13: #{transformer_decoder.1} parent=11 // pred_check
          %p556 = pneg %p494
        $region14: #{transformer_decoder.1} parent=11 // pred_check_branch
          %558 = sbr.rel (%p556) target = $region16
        $region15: #{transformer_decoder.1} parent=11 // pred_region
          _
        $region16: #{transformer_decoder.1} parent=11 // pred_fallthru
          _
        // Predicated region
        $region17: #{transformer_decoder.1} parent=11 // pred_check
          %p559 = pneg %p515
        $region18: #{transformer_decoder.1} parent=11 // pred_check_branch
          %561 = sbr.rel (%p559) target = $region20
        $region19: #{transformer_decoder.1} parent=11 // pred_region
          %s563 = ssub.s32 16, 16
          %564 = vsyncadd [#allocation19], %s563
          %s566 = sshll.u32 [#allocation20], 4
          %s567 = int_to_ptr.vmem [resolvable:$true] %s566
          %569 = dma.hbm_to_vmem [thread:$0]  %s17, 16, %s567, [#allocation19]
        $region20: #{transformer_decoder.1} parent=11 // pred_fallthru
          _
      $region12: #{transformer_decoder.1} parent=5 // pred_fallthru
        _
      %p570 = scmp.lt.s32.totalorder %s45, 4
      // Predicated region
      $region21: #{transformer_decoder.1} parent=5 // pred_check
        %p571 = pneg %p570
      $region22: #{transformer_decoder.1} parent=5 // pred_check_branch
        %573 = sbr.rel (%p571) target = $region24
      $region23: #{transformer_decoder.1} parent=5 // pred_region
        // Predicated region
        $region25: #{transformer_decoder.1} parent=23 // pred_check
          %p574 = pneg %p77
        $region26: #{transformer_decoder.1} parent=23 // pred_check_branch
          %576 = sbr.rel (%p574) target = $region28
        $region27: #{transformer_decoder.1} parent=23 // pred_region
          %s577 = sand.u32 %s67, 1
          %s578 = scalar_lea.sflag [#allocation4], %s577
          %s579 = sand.u32 %s67, 1
          %s580 = smul.addr %s579, 8
          %s581 = scalar_lea.vmem [#allocation3], %s580
          %s583 = ssub.s32 128, 128
          %584 = vsyncadd %s578, %s583
          %s585 = smul.addr %s52, 128
          %s586 = scalar_lea.hbm %s0, %s585
          %s588 = sshll.u32 %s581, 4
          %s589 = int_to_ptr.vmem [resolvable:$true] %s588
          %591 = dma.hbm_to_vmem [thread:$0]  %s586, 128, %s589, %s578
        $region28: #{transformer_decoder.1} parent=23 // pred_fallthru
          _
        // Predicated region
        $region29: #{transformer_decoder.1} parent=23 // pred_check
          %p592 = pneg %p103
        $region30: #{transformer_decoder.1} parent=23 // pred_check_branch
          %594 = sbr.rel (%p592) target = $region32
        $region31: #{transformer_decoder.1} parent=23 // pred_region
          %s595 = sand.u32 %s45, 1
          %s596 = scalar_lea.sflag [#allocation7], %s595
          %s597 = sand.u32 %s93, 1
          %s598 = smul.addr %s597, 16
          %s599 = scalar_lea.vmem [#allocation6], %s598
          %s601 = ssub.s32 256, 256
          %602 = vsyncadd %s596, %s601
          %s603 = smul.addr %s52, 2
          %s604 = smul.addr %s603, 128
          %s605 = scalar_lea.hbm %s1, %s604
          %s606 = sshll.u32 %s599, 4
          %s607 = int_to_ptr.vmem [resolvable:$true] %s606
          %612 = dma.hbm_to_vmem [thread:$0]  %s605, 256, %s607, %s596, 128, 128, 8
        $region32: #{transformer_decoder.1} parent=23 // pred_fallthru
          _
        // Predicated region
        $region33: #{transformer_decoder.1} parent=23 // pred_check
          %p613 = pneg %p129
        $region34: #{transformer_decoder.1} parent=23 // pred_check_branch
          %615 = sbr.rel (%p613) target = $region36
        $region35: #{transformer_decoder.1} parent=23 // pred_region
          %p616 = scmp.lt.s32.totalorder %s53, 1
          %s617 = scalar_select %p616, %s53, 1
          %s618 = smul.addr %s617, 4
          %s619 = smul.addr %s618, 8
          %s620 = scalar_lea.vmem %s2, %s619
        $region36: #{transformer_decoder.1} parent=23 // pred_fallthru
          _
        // Predicated region
        $region37: #{transformer_decoder.1} parent=23 // pred_check
          %p621 = pneg %p155
        $region38: #{transformer_decoder.1} parent=23 // pred_check_branch
          %623 = sbr.rel (%p621) target = $region40
        $region39: #{transformer_decoder.1} parent=23 // pred_region
          %p624 = scmp.lt.s32.totalorder %s53, 1
          %s625 = scalar_select %p624, %s53, 1
          %s626 = scalar_lea.vmem %s3, %s625
        $region40: #{transformer_decoder.1} parent=23 // pred_fallthru
          _
        // Predicated region
        $region41: #{transformer_decoder.1} parent=23 // pred_check
          %p627 = pneg %p181
        $region42: #{transformer_decoder.1} parent=23 // pred_check_branch
          %629 = sbr.rel (%p627) target = $region44
        $region43: #{transformer_decoder.1} parent=23 // pred_region
          %p630 = scmp.lt.s32.totalorder %s53, 1
          %s631 = scalar_select %p630, %s53, 1
          %s632 = smul.addr %s631, 4
          %s633 = smul.addr %s632, 8
          %s634 = scalar_lea.vmem %s4, %s633
        $region44: #{transformer_decoder.1} parent=23 // pred_fallthru
          _
        // Predicated region
        $region45: #{transformer_decoder.1} parent=23 // pred_check
          %p635 = pneg %p207
        $region46: #{transformer_decoder.1} parent=23 // pred_check_branch
          %637 = sbr.rel (%p635) target = $region48
        $region47: #{transformer_decoder.1} parent=23 // pred_region
          %s638 = sand.u32 %s45, 1
          %s639 = scalar_lea.sflag [#allocation7], %s638
          %s640 = sand.u32 %s197, 1
          %s641 = scalar_lea.vmem [#allocation8], %s640
          %s643 = ssub.s32 16, 16
          %644 = vsyncadd %s639, %s643
          %s645 = smul.addr %s53, 16
          %s646 = scalar_lea.hbm %s5, %s645
          %s648 = sshll.u32 %s641, 4
          %s649 = int_to_ptr.vmem [resolvable:$true] %s648
          %651 = dma.hbm_to_vmem [thread:$0]  %s646, 16, %s649, %s639
        $region48: #{transformer_decoder.1} parent=23 // pred_fallthru
          _
        // Predicated region
        $region49: #{transformer_decoder.1} parent=23 // pred_check
          %p652 = pneg %p233
        $region50: #{transformer_decoder.1} parent=23 // pred_check_branch
          %654 = sbr.rel (%p652) target = $region52
        $region51: #{transformer_decoder.1} parent=23 // pred_region
          %p655 = scmp.lt.s32.totalorder %s53, 1
          %s656 = scalar_select %p655, %s53, 1
          %s657 = smul.addr %s656, 4
          %s658 = smul.addr %s657, 8
          %s659 = scalar_lea.vmem %s6, %s658
        $region52: #{transformer_decoder.1} parent=23 // pred_fallthru
          _
        // Predicated region
        $region53: #{transformer_decoder.1} parent=23 // pred_check
          %p660 = pneg %p259
        $region54: #{transformer_decoder.1} parent=23 // pred_check_branch
          %662 = sbr.rel (%p660) target = $region56
        $region55: #{transformer_decoder.1} parent=23 // pred_region
          %s663 = sand.u32 %s45, 1
          %s664 = scalar_lea.sflag [#allocation10], %s663
          %s665 = sand.u32 %s249, 1
          %s666 = scalar_lea.vmem [#allocation9], %s665
          %s668 = ssub.s32 16, 16
          %669 = vsyncadd %s664, %s668
          %s670 = smul.addr %s53, 16
          %s671 = scalar_lea.hbm %s7, %s670
          %s673 = sshll.u32 %s666, 4
          %s674 = int_to_ptr.vmem [resolvable:$true] %s673
          %676 = dma.hbm_to_vmem [thread:$0]  %s671, 16, %s674, %s664
        $region56: #{transformer_decoder.1} parent=23 // pred_fallthru
          _
        // Predicated region
        $region57: #{transformer_decoder.1} parent=23 // pred_check
          %p677 = pneg %p285
        $region58: #{transformer_decoder.1} parent=23 // pred_check_branch
          %679 = sbr.rel (%p677) target = $region60
        $region59: #{transformer_decoder.1} parent=23 // pred_region
          %s680 = sand.u32 %s45, 1
          %s681 = scalar_lea.sflag [#allocation10], %s680
          %s682 = sand.u32 %s275, 1
          %s683 = scalar_lea.vmem [#allocation11], %s682
          %s685 = ssub.s32 16, 16
          %686 = vsyncadd %s681, %s685
          %s687 = smul.addr %s53, 16
          %s688 = scalar_lea.hbm %s8, %s687
          %s690 = sshll.u32 %s683, 4
          %s691 = int_to_ptr.vmem [resolvable:$true] %s690
          %693 = dma.hbm_to_vmem [thread:$0]  %s688, 16, %s691, %s681
        $region60: #{transformer_decoder.1} parent=23 // pred_fallthru
          _
        // Predicated region
        $region61: #{transformer_decoder.1} parent=23 // pred_check
          %p694 = pneg %p311
        $region62: #{transformer_decoder.1} parent=23 // pred_check_branch
          %696 = sbr.rel (%p694) target = $region64
        $region63: #{transformer_decoder.1} parent=23 // pred_region
          %s697 = sand.u32 %s45, 1
          %s698 = scalar_lea.sflag [#allocation13], %s697
          %s699 = sand.u32 %s301, 1
          %s700 = scalar_lea.vmem [#allocation12], %s699
          %s702 = ssub.s32 16, 16
          %703 = vsyncadd %s698, %s702
          %s704 = smul.addr %s53, 16
          %s705 = scalar_lea.hbm %s9, %s704
          %s707 = sshll.u32 %s700, 4
          %s708 = int_to_ptr.vmem [resolvable:$true] %s707
          %710 = dma.hbm_to_vmem [thread:$0]  %s705, 16, %s708, %s698
        $region64: #{transformer_decoder.1} parent=23 // pred_fallthru
          _
        // Predicated region
        $region65: #{transformer_decoder.1} parent=23 // pred_check
          %p711 = pneg %p337
        $region66: #{transformer_decoder.1} parent=23 // pred_check_branch
          %713 = sbr.rel (%p711) target = $region68
        $region67: #{transformer_decoder.1} parent=23 // pred_region
          %s714 = sand.u32 %s45, 1
          %s715 = scalar_lea.sflag [#allocation13], %s714
          %s716 = sand.u32 %s327, 1
          %s717 = smul.addr %s716, 32
          %s718 = scalar_lea.vmem [#allocation14], %s717
          %s720 = ssub.s32 512, 512
          %721 = vsyncadd %s715, %s720
          %s722 = smul.addr %s53, 4
          %s723 = smul.addr %s722, 128
          %s724 = scalar_lea.hbm %s10, %s723
          %s725 = sshll.u32 %s718, 4
          %s726 = int_to_ptr.vmem [resolvable:$true] %s725
          %731 = dma.hbm_to_vmem [thread:$0]  %s724, 512, %s726, %s715, 128, 128, 8
        $region68: #{transformer_decoder.1} parent=23 // pred_fallthru
          _
        // Predicated region
        $region69: #{transformer_decoder.1} parent=23 // pred_check
          %p732 = pneg %p363
        $region70: #{transformer_decoder.1} parent=23 // pred_check_branch
          %734 = sbr.rel (%p732) target = $region72
        $region71: #{transformer_decoder.1} parent=23 // pred_region
          %s735 = sand.u32 %s45, 1
          %s736 = scalar_lea.sflag [#allocation16], %s735
          %s737 = sand.u32 %s353, 1
          %s738 = scalar_lea.vmem [#allocation15], %s737
          %s740 = ssub.s32 16, 16
          %741 = vsyncadd %s736, %s740
          %s742 = smul.addr %s53, 16
          %s743 = scalar_lea.hbm %s11, %s742
          %s745 = sshll.u32 %s738, 4
          %s746 = int_to_ptr.vmem [resolvable:$true] %s745
          %748 = dma.hbm_to_vmem [thread:$0]  %s743, 16, %s746, %s736
        $region72: #{transformer_decoder.1} parent=23 // pred_fallthru
          _
        // Predicated region
        $region73: #{transformer_decoder.1} parent=23 // pred_check
          %p749 = pneg %p389
        $region74: #{transformer_decoder.1} parent=23 // pred_check_branch
          %751 = sbr.rel (%p749) target = $region76
        $region75: #{transformer_decoder.1} parent=23 // pred_region
          %p752 = scmp.lt.s32.totalorder %s53, 1
          %s753 = scalar_select %p752, %s53, 1
          %s754 = smul.addr %s753, 8
          %s755 = smul.addr %s754, 8
          %s756 = scalar_lea.vmem %s12, %s755
        $region76: #{transformer_decoder.1} parent=23 // pred_fallthru
          _
        // Predicated region
        $region77: #{transformer_decoder.1} parent=23 // pred_check
          %p757 = pneg %p415
        $region78: #{transformer_decoder.1} parent=23 // pred_check_branch
          %759 = sbr.rel (%p757) target = $region80
        $region79: #{transformer_decoder.1} parent=23 // pred_region
          %s760 = sand.u32 %s45, 1
          %s761 = scalar_lea.sflag [#allocation16], %s760
          %s762 = sand.u32 %s405, 1
          %s763 = scalar_lea.vmem [#allocation17], %s762
          %s765 = ssub.s32 16, 16
          %766 = vsyncadd %s761, %s765
          %s767 = smul.addr %s53, 16
          %s768 = scalar_lea.hbm %s13, %s767
          %s770 = sshll.u32 %s763, 4
          %s771 = int_to_ptr.vmem [resolvable:$true] %s770
          %773 = dma.hbm_to_vmem [thread:$0]  %s768, 16, %s771, %s761
        $region80: #{transformer_decoder.1} parent=23 // pred_fallthru
          _
        // Predicated region
        $region81: #{transformer_decoder.1} parent=23 // pred_check
          %p774 = pneg %p441
        $region82: #{transformer_decoder.1} parent=23 // pred_check_branch
          %776 = sbr.rel (%p774) target = $region84
        $region83: #{transformer_decoder.1} parent=23 // pred_region
          %p777 = scmp.lt.s32.totalorder %s53, 1
          %s778 = scalar_select %p777, %s53, 1
          %s779 = scalar_lea.vmem %s14, %s778
        $region84: #{transformer_decoder.1} parent=23 // pred_fallthru
          _
        // Predicated region
        $region85: #{transformer_decoder.1} parent=23 // pred_check
          %p780 = pneg %p467
        $region86: #{transformer_decoder.1} parent=23 // pred_check_branch
          %782 = sbr.rel (%p780) target = $region88
        $region87: #{transformer_decoder.1} parent=23 // pred_region
          %s783 = sand.u32 %s45, 1
          %s784 = scalar_lea.sflag [#allocation19], %s783
          %s785 = sand.u32 %s457, 1
          %s786 = scalar_lea.vmem [#allocation18], %s785
          %s788 = ssub.s32 16, 16
          %789 = vsyncadd %s784, %s788
          %s790 = smul.addr %s53, 16
          %s791 = scalar_lea.hbm %s15, %s790
          %s793 = sshll.u32 %s786, 4
          %s794 = int_to_ptr.vmem [resolvable:$true] %s793
          %796 = dma.hbm_to_vmem [thread:$0]  %s791, 16, %s794, %s784
        $region88: #{transformer_decoder.1} parent=23 // pred_fallthru
          _
      $region24: #{transformer_decoder.1} parent=5 // pred_fallthru
        _
      %p797 = scmp.le.s32.totalorder 1, %s45
      %p798 = scmp.lt.s32.totalorder %s45, 5
      %p799 = pnand %p797, %p798
      %p800 = pneg %p799
      // Predicated region
      $region89: #{transformer_decoder.1} parent=5 // pred_check
        _
      $region90: #{transformer_decoder.1} parent=5 // pred_check_branch
        %802 = sbr.rel (%p799) target = $region92
      $region91: #{transformer_decoder.1} parent=5 // pred_region
        %s803 = ssub.s32 %s45, 1
        %s804 = sand.u32 %s70, 1
        %s805 = scalar_lea.sflag [#allocation4], %s804
        %s806 = sand.u32 %s70, 1
        %s807 = smul.addr %s806, 8
        %s808 = scalar_lea.vmem [#allocation3], %s807
        // Predicated region
        $region93: #{transformer_decoder.1} parent=91 // pred_check
          %p809 = pneg %p83
        $region94: #{transformer_decoder.1} parent=91 // pred_check_branch
          %811 = sbr.rel (%p809) target = $region96
        $region95: #{transformer_decoder.1} parent=91 // pred_region
          %812 = dma.done %s805, 128
        $region96: #{transformer_decoder.1} parent=91 // pred_fallthru
          _
        %s813 = sand.u32 %s50, 1
        %s814 = scalar_lea.sflag [#allocation7], %s813
        %s815 = sand.u32 %s96, 1
        %s816 = smul.addr %s815, 16
        %s817 = scalar_lea.vmem [#allocation6], %s816
        // Predicated region
        $region97: #{transformer_decoder.1} parent=91 // pred_check
          %p818 = pneg %p109
        $region98: #{transformer_decoder.1} parent=91 // pred_check_branch
          %820 = sbr.rel (%p818) target = $region100
        $region99: #{transformer_decoder.1} parent=91 // pred_region
          %821 = dma.done %s814, 256
        $region100: #{transformer_decoder.1} parent=91 // pred_fallthru
          _
        %s822 = sand.u32 %s50, 1
        %s823 = scalar_lea.sflag [#allocation7], %s822
        %s824 = sand.u32 %s200, 1
        %s825 = scalar_lea.vmem [#allocation8], %s824
        // Predicated region
        $region101: #{transformer_decoder.1} parent=91 // pred_check
          %p826 = pneg %p213
        $region102: #{transformer_decoder.1} parent=91 // pred_check_branch
          %828 = sbr.rel (%p826) target = $region104
        $region103: #{transformer_decoder.1} parent=91 // pred_region
          %829 = dma.done %s823, 16
        $region104: #{transformer_decoder.1} parent=91 // pred_fallthru
          _
        %s830 = sand.u32 %s50, 1
        %s831 = scalar_lea.sflag [#allocation10], %s830
        %s832 = sand.u32 %s252, 1
        %s833 = scalar_lea.vmem [#allocation9], %s832
        // Predicated region
        $region105: #{transformer_decoder.1} parent=91 // pred_check
          %p834 = pneg %p265
        $region106: #{transformer_decoder.1} parent=91 // pred_check_branch
          %836 = sbr.rel (%p834) target = $region108
        $region107: #{transformer_decoder.1} parent=91 // pred_region
          %837 = dma.done %s831, 16
        $region108: #{transformer_decoder.1} parent=91 // pred_fallthru
          _
        %s838 = sand.u32 %s50, 1
        %s839 = scalar_lea.sflag [#allocation10], %s838
        %s840 = sand.u32 %s278, 1
        %s841 = scalar_lea.vmem [#allocation11], %s840
        // Predicated region
        $region109: #{transformer_decoder.1} parent=91 // pred_check
          %p842 = pneg %p291
        $region110: #{transformer_decoder.1} parent=91 // pred_check_branch
          %844 = sbr.rel (%p842) target = $region112
        $region111: #{transformer_decoder.1} parent=91 // pred_region
          %845 = dma.done %s839, 16
        $region112: #{transformer_decoder.1} parent=91 // pred_fallthru
          _
        %s846 = sand.u32 %s50, 1
        %s847 = scalar_lea.sflag [#allocation13], %s846
        %s848 = sand.u32 %s304, 1
        %s849 = scalar_lea.vmem [#allocation12], %s848
        // Predicated region
        $region113: #{transformer_decoder.1} parent=91 // pred_check
          %p850 = pneg %p317
        $region114: #{transformer_decoder.1} parent=91 // pred_check_branch
          %852 = sbr.rel (%p850) target = $region116
        $region115: #{transformer_decoder.1} parent=91 // pred_region
          %853 = dma.done %s847, 16
        $region116: #{transformer_decoder.1} parent=91 // pred_fallthru
          _
        %s854 = sand.u32 %s50, 1
        %s855 = scalar_lea.sflag [#allocation13], %s854
        %s856 = sand.u32 %s330, 1
        %s857 = smul.addr %s856, 32
        %s858 = scalar_lea.vmem [#allocation14], %s857
        // Predicated region
        $region117: #{transformer_decoder.1} parent=91 // pred_check
          %p859 = pneg %p343
        $region118: #{transformer_decoder.1} parent=91 // pred_check_branch
          %861 = sbr.rel (%p859) target = $region120
        $region119: #{transformer_decoder.1} parent=91 // pred_region
          %862 = dma.done %s855, 512
        $region120: #{transformer_decoder.1} parent=91 // pred_fallthru
          _
        %s863 = sand.u32 %s50, 1
        %s864 = scalar_lea.sflag [#allocation16], %s863
        %s865 = sand.u32 %s356, 1
        %s866 = scalar_lea.vmem [#allocation15], %s865
        // Predicated region
        $region121: #{transformer_decoder.1} parent=91 // pred_check
          %p867 = pneg %p369
        $region122: #{transformer_decoder.1} parent=91 // pred_check_branch
          %869 = sbr.rel (%p867) target = $region124
        $region123: #{transformer_decoder.1} parent=91 // pred_region
          %870 = dma.done %s864, 16
        $region124: #{transformer_decoder.1} parent=91 // pred_fallthru
          _
        %s871 = sand.u32 %s50, 1
        %s872 = scalar_lea.sflag [#allocation16], %s871
        %s873 = sand.u32 %s408, 1
        %s874 = scalar_lea.vmem [#allocation17], %s873
        // Predicated region
        $region125: #{transformer_decoder.1} parent=91 // pred_check
          %p875 = pneg %p421
        $region126: #{transformer_decoder.1} parent=91 // pred_check_branch
          %877 = sbr.rel (%p875) target = $region128
        $region127: #{transformer_decoder.1} parent=91 // pred_region
          %878 = dma.done %s872, 16
        $region128: #{transformer_decoder.1} parent=91 // pred_fallthru
          _
        %s879 = sand.u32 %s50, 1
        %s880 = scalar_lea.sflag [#allocation19], %s879
        %s881 = sand.u32 %s460, 1
        %s882 = scalar_lea.vmem [#allocation18], %s881
        // Predicated region
        $region129: #{transformer_decoder.1} parent=91 // pred_check
          %p883 = pneg %p473
        $region130: #{transformer_decoder.1} parent=91 // pred_check_branch
          %885 = sbr.rel (%p883) target = $region132
        $region131: #{transformer_decoder.1} parent=91 // pred_region
          %886 = dma.done %s880, 16
        $region132: #{transformer_decoder.1} parent=91 // pred_fallthru
          _
        // Predicated region
        $region133: #{transformer_decoder.1} parent=91 // pred_check
          %p887 = pneg %p515
        $region134: #{transformer_decoder.1} parent=91 // pred_check_branch
          %889 = sbr.rel (%p887) target = $region136
        $region135: #{transformer_decoder.1} parent=91 // pred_region
          %890 = dma.done [#allocation19], 16
        $region136: #{transformer_decoder.1} parent=91 // pred_fallthru
          _
        %s891 = sand.u32 %s70, 1
        %s892 = scalar_lea.sflag [#allocation4], %s891
        %s893 = sand.u32 %s70, 1
        %s894 = smul.addr %s893, 8
        %s895 = scalar_lea.vmem [#allocation3], %s894
        %p896 = pneg %p83
        %p897 = pneg %p80
        %s898 = sand.u32 %s50, 1
        %s899 = scalar_lea.sflag [#allocation7], %s898
        %s900 = sand.u32 %s96, 1
        %s901 = smul.addr %s900, 16
        %s902 = scalar_lea.vmem [#allocation6], %s901
        %p903 = pneg %p109
        %p904 = pneg %p106
        %p905 = scmp.lt.s32.totalorder %s55, 1
        %s906 = scalar_select %p905, %s55, 1
        %s907 = smul.addr %s906, 4
        %s908 = smul.addr %s907, 8
        %s909 = scalar_lea.vmem %s2, %s908
        %p910 = pneg %p135
        %p911 = pneg %p132
        %p912 = scmp.lt.s32.totalorder %s55, 1
        %s913 = scalar_select %p912, %s55, 1
        %s914 = scalar_lea.vmem %s3, %s913
        %p915 = pneg %p161
        %p916 = pneg %p158
        %p917 = scmp.lt.s32.totalorder %s55, 1
        %s918 = scalar_select %p917, %s55, 1
        %s919 = smul.addr %s918, 4
        %s920 = smul.addr %s919, 8
        %s921 = scalar_lea.vmem %s4, %s920
        %p922 = pneg %p187
        %p923 = pneg %p184
        %s924 = sand.u32 %s50, 1
        %s925 = scalar_lea.sflag [#allocation7], %s924
        %s926 = sand.u32 %s200, 1
        %s927 = scalar_lea.vmem [#allocation8], %s926
        %p928 = pneg %p213
        %p929 = pneg %p210
        %p930 = scmp.lt.s32.totalorder %s55, 1
        %s931 = scalar_select %p930, %s55, 1
        %s932 = smul.addr %s931, 4
        %s933 = smul.addr %s932, 8
        %s934 = scalar_lea.vmem %s6, %s933
        %p935 = pneg %p239
        %p936 = pneg %p236
        %s937 = sand.u32 %s50, 1
        %s938 = scalar_lea.sflag [#allocation10], %s937
        %s939 = sand.u32 %s252, 1
        %s940 = scalar_lea.vmem [#allocation9], %s939
        %p941 = pneg %p265
        %p942 = pneg %p262
        %s943 = sand.u32 %s50, 1
        %s944 = scalar_lea.sflag [#allocation10], %s943
        %s945 = sand.u32 %s278, 1
        %s946 = scalar_lea.vmem [#allocation11], %s945
        %p947 = pneg %p291
        %p948 = pneg %p288
        %s949 = sand.u32 %s50, 1
        %s950 = scalar_lea.sflag [#allocation13], %s949
        %s951 = sand.u32 %s304, 1
        %s952 = scalar_lea.vmem [#allocation12], %s951
        %p953 = pneg %p317
        %p954 = pneg %p314
        %s955 = sand.u32 %s50, 1
        %s956 = scalar_lea.sflag [#allocation13], %s955
        %s957 = sand.u32 %s330, 1
        %s958 = smul.addr %s957, 32
        %s959 = scalar_lea.vmem [#allocation14], %s958
        %p960 = pneg %p343
        %p961 = pneg %p340
        %s962 = sand.u32 %s50, 1
        %s963 = scalar_lea.sflag [#allocation16], %s962
        %s964 = sand.u32 %s356, 1
        %s965 = scalar_lea.vmem [#allocation15], %s964
        %p966 = pneg %p369
        %p967 = pneg %p366
        %p968 = scmp.lt.s32.totalorder %s55, 1
        %s969 = scalar_select %p968, %s55, 1
        %s970 = smul.addr %s969, 8
        %s971 = smul.addr %s970, 8
        %s972 = scalar_lea.vmem %s12, %s971
        %p973 = pneg %p395
        %p974 = pneg %p392
        %s975 = sand.u32 %s50, 1
        %s976 = scalar_lea.sflag [#allocation16], %s975
        %s977 = sand.u32 %s408, 1
        %s978 = scalar_lea.vmem [#allocation17], %s977
        %p979 = pneg %p421
        %p980 = pneg %p418
        %p981 = scmp.lt.s32.totalorder %s55, 1
        %s982 = scalar_select %p981, %s55, 1
        %s983 = scalar_lea.vmem %s14, %s982
        %p984 = pneg %p447
        %p985 = pneg %p444
        %s986 = sand.u32 %s50, 1
        %s987 = scalar_lea.sflag [#allocation19], %s986
        %s988 = sand.u32 %s460, 1
        %s989 = scalar_lea.vmem [#allocation18], %s988
        %p990 = pneg %p473
        %p991 = pneg %p470
        %p992 = pneg %p494
        %p993 = pneg %p491
        %p994 = pneg %p515
        %p995 = pneg %p512
        %p996 = pneg %p541
        %p997 = pneg %p538
        %s998 = sand.u32 %s528, 1
        %s999 = scalar_lea.sflag [#allocation5], %s998
        %s1000 = sand.u32 %s528, 1
        %s1001 = smul.addr %s1000, 8
        %s1002 = scalar_lea.vmem [#allocation21], %s1001
        %p1003 = scmp.lt.s32.totalorder %s55, 1
        %s1004 = scalar_select %p1003, %s55, 1
        %s1005 = smul.addr %s1004, 4
        %s1006 = smul.addr %s1005, 8
        %s1007 = scalar_lea.vmem %s2, %s1006
        %p1008 = scmp.lt.s32.totalorder %s55, 1
        %s1009 = scalar_select %p1008, %s55, 1
        %s1010 = scalar_lea.vmem %s3, %s1009
        %p1011 = scmp.lt.s32.totalorder %s55, 1
        %s1012 = scalar_select %p1011, %s55, 1
        %s1013 = smul.addr %s1012, 4
        %s1014 = smul.addr %s1013, 8
        %s1015 = scalar_lea.vmem %s4, %s1014
        %p1016 = scmp.lt.s32.totalorder %s55, 1
        %s1017 = scalar_select %p1016, %s55, 1
        %s1018 = smul.addr %s1017, 4
        %s1019 = smul.addr %s1018, 8
        %s1020 = scalar_lea.vmem %s6, %s1019
        %p1021 = scmp.lt.s32.totalorder %s55, 1
        %s1022 = scalar_select %p1021, %s55, 1
        %s1023 = smul.addr %s1022, 8
        %s1024 = smul.addr %s1023, 8
        %s1025 = scalar_lea.vmem %s12, %s1024
        %p1026 = scmp.lt.s32.totalorder %s55, 1
        %s1027 = scalar_select %p1026, %s55, 1
        %s1028 = scalar_lea.vmem %s14, %s1027
        %p1029 = scmp.eq.s32.totalorder %s55, 0
        // Predicated region
        $region137: #{transformer_decoder.1} parent=91 // pred_check
          %p1030 = pneg %p1029
        $region138: #{transformer_decoder.1} parent=91 // pred_check_branch
          %1032 = sbr.rel (%p1030) target = $region140
        $region139: #{transformer_decoder.1} parent=91 // pred_region
          %v1033 = vld [vmem:[%s808] sm:$0xff]
          %vm1034 = vcmask 261120
          %1035 = vst.msk [vmem:[#allocation2] sm:$0xff] %vm1034, %v1033
        $region140: #{transformer_decoder.1} parent=91 // pred_fallthru
          _
        %v1036 = vld [vmem:[#allocation2] sm:$0xff]
        %v1037 = vld [vmem:[%s817] sm:$0xff]
        %v1038 = vld [vmem:[%s817 + $0x8] sm:$0xff]
        %v1039 = vld [vmem:[%s1007] sm:$0xff]
        %v1040 = vld [vmem:[%s1007 + $0x8] sm:$0xff]
        %v1041 = vld [vmem:[%s1007 + $0x10] sm:$0xff]
        %v1042 = vld [vmem:[%s1007 + $0x18] sm:$0xff]
        %v1043 = vld [vmem:[%s1010] sm:$0x1]
        %v1045 = vlaneseq
        %v1046 = vshrl.u32 %v1045, 7
        %v1047 = vsub.s32 0, %v1046
        %v1048 = vrot.slane %v1043, %v1047
        %vm1050 = vcmask 261120
        %v1052 = vsel %vm1050, %v1036, 0
        %1054 = vmatprep.subr.mxu0 0.0
        %1055 = vmatpush1.msra.mxu0 %v1039
        %1056 = vmatprep.subr.mxu0 0.0
        %1057 = vmatpush1.msra.mxu0 %v1040
        %1058 = vmatprep.subr.mxu0 0.0
        %1059 = vmatpush1.msra.mxu0 %v1041
        %1060 = vmatprep.subr.mxu0 0.0
        %1061 = vmatpush1.msra.mxu0 %v1042
        %1062 = vmatprep.subr.mxu0 0.0
        %1063 = vmatpush1.msra.mxu0 0.0
        %1064 = vmatprep.subr.mxu0 0.0
        %1065 = vmatpush1.msra.mxu0 0.0
        %1066 = vmatprep.subr.mxu0 0.0
        %1067 = vmatpush1.msra.mxu0 0.0
        %1068 = vmatprep.subr.mxu0 0.0
        %1069 = vmatpush1.msra.mxu0 0.0
        %1070 = vmatprep.subr.mxu0 0.0
        %1071 = vmatpush1.msra.mxu0 0.0
        %1072 = vmatprep.subr.mxu0 0.0
        %1073 = vmatpush1.msra.mxu0 0.0
        %1074 = vmatprep.subr.mxu0 0.0
        %1075 = vmatpush1.msra.mxu0 0.0
        %1076 = vmatprep.subr.mxu0 0.0
        %1077 = vmatpush1.msra.mxu0 0.0
        %1078 = vmatprep.subr.mxu0 0.0
        %1079 = vmatpush1.msra.mxu0 0.0
        %1080 = vmatprep.subr.mxu0 0.0
        %1081 = vmatpush1.msra.mxu0 0.0
        %1082 = vmatprep.subr.mxu0 0.0
        %1083 = vmatpush1.msra.mxu0 0.0
        %1084 = vmatprep.subr.mxu0 0.0
        %1085 = vmatpush1.msra.mxu0 0.0
        %1086 = vmatprep.subr.mxu0 0.0
        %1087 = vmatpush1.msra.mxu0 0.0
        %1088 = vmatprep.subr.mxu0 0.0
        %1089 = vmatpush1.msra.mxu0 0.0
        %1090 = vmatprep.subr.mxu0 0.0
        %1091 = vmatpush1.msra.mxu0 0.0
        %1092 = vmatprep.subr.mxu0 0.0
        %1093 = vmatpush1.msra.mxu0 0.0
        %1094 = vmatprep.subr.mxu0 0.0
        %1095 = vmatpush1.msra.mxu0 0.0
        %1096 = vmatprep.subr.mxu0 0.0
        %1097 = vmatpush1.msra.mxu0 0.0
        %1098 = vmatprep.subr.mxu0 0.0
        %1099 = vmatpush1.msra.mxu0 0.0
        %1100 = vmatprep.subr.mxu0 0.0
        %1101 = vmatpush1.msra.mxu0 0.0
        %1102 = vmatprep.subr.mxu0 0.0
        %1103 = vmatpush1.msra.mxu0 0.0
        %1104 = vmatprep.subr.mxu0 0.0
        %1105 = vmatpush1.msra.mxu0 0.0
        %1106 = vmatprep.subr.mxu0 0.0
        %1107 = vmatpush1.msra.mxu0 0.0
        %1108 = vmatprep.subr.mxu0 0.0
        %1109 = vmatpush1.msra.mxu0 0.0
        %1110 = vmatprep.subr.mxu0 0.0
        %1111 = vmatpush1.msra.mxu0 0.0
        %1112 = vmatprep.subr.mxu0 0.0
        %1113 = vmatpush1.msra.mxu0 0.0
        %1114 = vmatprep.subr.mxu0 0.0
        %1115 = vmatpush1.msra.mxu0 0.0
        %1116 = vmatprep.subr.mxu0 0.0
        %1117 = vmatpush1.msra.mxu0 0.0
        %1118 = vmatprep.mubr.f32.mxu0 0.0
        %1119 = vmatmul.mubr.f32.gmra.mrb[0].mxu0 %v1052
        %v1120 = vpop.f32.mrb[0].mxu0
        %v1121 = vadd.f32 %v1048, %v1120
        %v1122 = vpop.f32.mrb[0].mxu0
        %1123 = vdwg.mxu0
        %v1124 = vld [vmem:[%s1015] sm:$0xff]
        %v1125 = vld [vmem:[%s1015 + $0x8] sm:$0xff]
        %v1126 = vld [vmem:[%s1015 + $0x10] sm:$0xff]
        %v1127 = vld [vmem:[%s1015 + $0x18] sm:$0xff]
        %v1128 = vld [vmem:[%s825] sm:$0x1]
        %v1130 = vlaneseq
        %v1131 = vshrl.u32 %v1130, 7
        %v1132 = vsub.s32 0, %v1131
        %v1133 = vrot.slane %v1128, %v1132
        %v1136 = vsel %vm1050, %v1037, 0
        %v1139 = vsel %vm1050, %v1038, 0
        %1141 = vmatprep.subr.mxu0 0.0
        %1142 = vmatpush1.msra.mxu0 %v1124
        %1143 = vmatprep.subr.mxu0 0.0
        %1144 = vmatpush1.msra.mxu0 %v1125
        %1145 = vmatprep.subr.mxu0 0.0
        %1146 = vmatpush1.msra.mxu0 %v1126
        %1147 = vmatprep.subr.mxu0 0.0
        %1148 = vmatpush1.msra.mxu0 %v1127
        %1149 = vmatprep.subr.mxu0 0.0
        %1150 = vmatpush1.msra.mxu0 0.0
        %1151 = vmatprep.subr.mxu0 0.0
        %1152 = vmatpush1.msra.mxu0 0.0
        %1153 = vmatprep.subr.mxu0 0.0
        %1154 = vmatpush1.msra.mxu0 0.0
        %1155 = vmatprep.subr.mxu0 0.0
        %1156 = vmatpush1.msra.mxu0 0.0
        %1157 = vmatprep.subr.mxu0 0.0
        %1158 = vmatpush1.msra.mxu0 0.0
        %1159 = vmatprep.subr.mxu0 0.0
        %1160 = vmatpush1.msra.mxu0 0.0
        %1161 = vmatprep.subr.mxu0 0.0
        %1162 = vmatpush1.msra.mxu0 0.0
        %1163 = vmatprep.subr.mxu0 0.0
        %1164 = vmatpush1.msra.mxu0 0.0
        %1165 = vmatprep.subr.mxu0 0.0
        %1166 = vmatpush1.msra.mxu0 0.0
        %1167 = vmatprep.subr.mxu0 0.0
        %1168 = vmatpush1.msra.mxu0 0.0
        %1169 = vmatprep.subr.mxu0 0.0
        %1170 = vmatpush1.msra.mxu0 0.0
        %1171 = vmatprep.subr.mxu0 0.0
        %1172 = vmatpush1.msra.mxu0 0.0
        %1173 = vmatprep.subr.mxu0 0.0
        %1174 = vmatpush1.msra.mxu0 0.0
        %1175 = vmatprep.subr.mxu0 0.0
        %1176 = vmatpush1.msra.mxu0 0.0
        %1177 = vmatprep.subr.mxu0 0.0
        %1178 = vmatpush1.msra.mxu0 0.0
        %1179 = vmatprep.subr.mxu0 0.0
        %1180 = vmatpush1.msra.mxu0 0.0
        %1181 = vmatprep.subr.mxu0 0.0
        %1182 = vmatpush1.msra.mxu0 0.0
        %1183 = vmatprep.subr.mxu0 0.0
        %1184 = vmatpush1.msra.mxu0 0.0
        %1185 = vmatprep.subr.mxu0 0.0
        %1186 = vmatpush1.msra.mxu0 0.0
        %1187 = vmatprep.subr.mxu0 0.0
        %1188 = vmatpush1.msra.mxu0 0.0
        %1189 = vmatprep.subr.mxu0 0.0
        %1190 = vmatpush1.msra.mxu0 0.0
        %1191 = vmatprep.subr.mxu0 0.0
        %1192 = vmatpush1.msra.mxu0 0.0
        %1193 = vmatprep.subr.mxu0 0.0
        %1194 = vmatpush1.msra.mxu0 0.0
        %1195 = vmatprep.subr.mxu0 0.0
        %1196 = vmatpush1.msra.mxu0 0.0
        %1197 = vmatprep.subr.mxu0 0.0
        %1198 = vmatpush1.msra.mxu0 0.0
        %1199 = vmatprep.subr.mxu0 0.0
        %1200 = vmatpush1.msra.mxu0 0.0
        %1201 = vmatprep.subr.mxu0 0.0
        %1202 = vmatpush1.msra.mxu0 0.0
        %1203 = vmatprep.subr.mxu0 0.0
        %1204 = vmatpush1.msra.mxu0 0.0
        %1205 = vmatprep.mubr.f32.mxu0 0.0
        %1206 = vmatmul.mubr.f32.gmra.mrb[0].mxu0 %v1136
        %v1207 = vpop.f32.mrb[0].mxu0
        %v1208 = vadd.f32 %v1133, %v1207
        %v1209 = vpop.f32.mrb[0].mxu0
        %1210 = vmatprep.mubr.f32.mxu0 0.0
        %1211 = vmatmul.mubr.f32.gmra.mrb[0].mxu0 %v1139
        %v1212 = vpop.f32.mrb[0].mxu0
        %v1213 = vadd.f32 %v1133, %v1212
        %v1214 = vpop.f32.mrb[0].mxu0
        %1215 = vdwg.mxu0
        %v1216 = vld [vmem:[%s1020] sm:$0xff]
        %v1217 = vld [vmem:[%s1020 + $0x8] sm:$0xff]
        %v1218 = vld [vmem:[%s1020 + $0x10] sm:$0xff]
        %v1219 = vld [vmem:[%s1020 + $0x18] sm:$0xff]
        %vm1220 = vcmask 64512
        %v1222 = vsel %vm1220, %v1121, 0
        %v1225 = vsel %vm1220, %v1208, 0
        %v1228 = vsel %vm1220, %v1213, 0
        %1230 = vmatprep.subr.mxu0 0.0
        %1231 = vmatpush1.xpose.msra.mxu0 %v1225
        %1232 = vmatprep.subr.mxu0 0.0
        %1233 = vmatpush1.xpose.msra.mxu0 %v1228
        %1234 = vmatprep.subr.mxu0 0.0
        %1235 = vmatpush1.xpose.msra.mxu0 0.0
        %1236 = vmatprep.subr.mxu0 0.0
        %1237 = vmatpush1.xpose.msra.mxu0 0.0
        %1238 = vmatprep.subr.mxu0 0.0
        %1239 = vmatpush1.xpose.msra.mxu0 0.0
        %1240 = vmatprep.subr.mxu0 0.0
        %1241 = vmatpush1.xpose.msra.mxu0 0.0
        %1242 = vmatprep.subr.mxu0 0.0
        %1243 = vmatpush1.xpose.msra.mxu0 0.0
        %1244 = vmatprep.subr.mxu0 0.0
        %1245 = vmatpush1.xpose.msra.mxu0 0.0
        %1246 = vmatprep.subr.mxu0 0.0
        %1247 = vmatpush1.xpose.msra.mxu0 0.0
        %1248 = vmatprep.subr.mxu0 0.0
        %1249 = vmatpush1.xpose.msra.mxu0 0.0
        %1250 = vmatprep.subr.mxu0 0.0
        %1251 = vmatpush1.xpose.msra.mxu0 0.0
        %1252 = vmatprep.subr.mxu0 0.0
        %1253 = vmatpush1.xpose.msra.mxu0 0.0
        %1254 = vmatprep.subr.mxu0 0.0
        %1255 = vmatpush1.xpose.msra.mxu0 0.0
        %1256 = vmatprep.subr.mxu0 0.0
        %1257 = vmatpush1.xpose.msra.mxu0 0.0
        %1258 = vmatprep.subr.mxu0 0.0
        %1259 = vmatpush1.xpose.msra.mxu0 0.0
        %1260 = vmatprep.subr.mxu0 0.0
        %1261 = vmatpush1.xpose.msra.mxu0 0.0
        %1262 = vmatprep.subr.mxu0 0.0
        %1263 = vmatpush1.xpose.msra.mxu0 0.0
        %1264 = vmatprep.subr.mxu0 0.0
        %1265 = vmatpush1.xpose.msra.mxu0 0.0
        %1266 = vmatprep.subr.mxu0 0.0
        %1267 = vmatpush1.xpose.msra.mxu0 0.0
        %1268 = vmatprep.subr.mxu0 0.0
        %1269 = vmatpush1.xpose.msra.mxu0 0.0
        %1270 = vmatprep.subr.mxu0 0.0
        %1271 = vmatpush1.xpose.msra.mxu0 0.0
        %1272 = vmatprep.subr.mxu0 0.0
        %1273 = vmatpush1.xpose.msra.mxu0 0.0
        %1274 = vmatprep.subr.mxu0 0.0
        %1275 = vmatpush1.xpose.msra.mxu0 0.0
        %1276 = vmatprep.subr.mxu0 0.0
        %1277 = vmatpush1.xpose.msra.mxu0 0.0
        %1278 = vmatprep.subr.mxu0 0.0
        %1279 = vmatpush1.xpose.msra.mxu0 0.0
        %1280 = vmatprep.subr.mxu0 0.0
        %1281 = vmatpush1.xpose.msra.mxu0 0.0
        %1282 = vmatprep.subr.mxu0 0.0
        %1283 = vmatpush1.xpose.msra.mxu0 0.0
        %1284 = vmatprep.subr.mxu0 0.0
        %1285 = vmatpush1.xpose.msra.mxu0 0.0
        %1286 = vmatprep.subr.mxu0 0.0
        %1287 = vmatpush1.xpose.msra.mxu0 0.0
        %1288 = vmatprep.subr.mxu0 0.0
        %1289 = vmatpush1.xpose.msra.mxu0 0.0
        %1290 = vmatprep.subr.mxu0 0.0
        %1291 = vmatpush1.xpose.msra.mxu0 0.0
        %1292 = vmatprep.subr.mxu0 0.0
        %1293 = vmatpush1.xpose.msra.mxu0 0.0
        %1294 = vmatprep.mubr.f32.mxu0 0.0
        %1295 = vmatmul.mubr.f32.gmra.mrb[0].mxu0 %v1222
        %v1296 = vpop.f32.mrb[0].mxu0
        %v1297 = vadd.f32 0.0, %v1296
        %v1298 = vpop.f32.mrb[0].mxu0
        %1299 = vdwg.mxu0
        %v1300 = vmul.f32 %v1297, 0.35355338
        %vm1301 = vcmask 130048
        %v1302 = vsel %vm1301, %v1300, -inf
        %1303 = vmax.xlane.f32.xlu0 %v1302
        %v1304 = vpop.xlane.xlu0 %1303
        %v1305 = vsub.f32 %v1300, %v1304
        %v1306 = vmul.f32 %v1305, 1.442695
        %v1307 = vpow.pop %v1306
        %v1308 = vsel %vm1301, %v1307, 0.0
        %1309 = vadd.xlane.f32.xlu0 %v1308
        %v1310 = vpop.xlane.xlu0 %1309
        %v1311 = vrcp.pop %v1310
        %v1312 = vmul.f32 %v1307, %v1311
        %1313 = vrot.lane.b32.xlu0 %v1208, 96
        %v1314 = vpop.permute.xlu0 %1313
        %1315 = vrot.lane.b32.xlu0 %v1213, 96
        %v1316 = vpop.permute.xlu0 %1315
        %v1320 = vsel %vm1301, %v1312, 0
        %1322 = vmatprep.subr.mxu0 0.0
        %1323 = vmatpush1.msra.mxu0 %v1314
        %1324 = vmatprep.subr.mxu0 0.0
        %1325 = vmatpush1.msra.mxu0 %v1316
        %1326 = vmatprep.subr.mxu0 0.0
        %1327 = vmatpush1.msra.mxu0 0.0
        %1328 = vmatprep.subr.mxu0 0.0
        %1329 = vmatpush1.msra.mxu0 0.0
        %1330 = vmatprep.subr.mxu0 0.0
        %1331 = vmatpush1.msra.mxu0 0.0
        %1332 = vmatprep.subr.mxu0 0.0
        %1333 = vmatpush1.msra.mxu0 0.0
        %1334 = vmatprep.subr.mxu0 0.0
        %1335 = vmatpush1.msra.mxu0 0.0
        %1336 = vmatprep.subr.mxu0 0.0
        %1337 = vmatpush1.msra.mxu0 0.0
        %1338 = vmatprep.subr.mxu0 0.0
        %1339 = vmatpush1.msra.mxu0 0.0
        %1340 = vmatprep.subr.mxu0 0.0
        %1341 = vmatpush1.msra.mxu0 0.0
        %1342 = vmatprep.subr.mxu0 0.0
        %1343 = vmatpush1.msra.mxu0 0.0
        %1344 = vmatprep.subr.mxu0 0.0
        %1345 = vmatpush1.msra.mxu0 0.0
        %1346 = vmatprep.subr.mxu0 0.0
        %1347 = vmatpush1.msra.mxu0 0.0
        %1348 = vmatprep.subr.mxu0 0.0
        %1349 = vmatpush1.msra.mxu0 0.0
        %1350 = vmatprep.subr.mxu0 0.0
        %1351 = vmatpush1.msra.mxu0 0.0
        %1352 = vmatprep.subr.mxu0 0.0
        %1353 = vmatpush1.msra.mxu0 0.0
        %1354 = vmatprep.subr.mxu0 0.0
        %1355 = vmatpush1.msra.mxu0 0.0
        %1356 = vmatprep.subr.mxu0 0.0
        %1357 = vmatpush1.msra.mxu0 0.0
        %1358 = vmatprep.subr.mxu0 0.0
        %1359 = vmatpush1.msra.mxu0 0.0
        %1360 = vmatprep.subr.mxu0 0.0
        %1361 = vmatpush1.msra.mxu0 0.0
        %1362 = vmatprep.subr.mxu0 0.0
        %1363 = vmatpush1.msra.mxu0 0.0
        %1364 = vmatprep.subr.mxu0 0.0
        %1365 = vmatpush1.msra.mxu0 0.0
        %1366 = vmatprep.subr.mxu0 0.0
        %1367 = vmatpush1.msra.mxu0 0.0
        %1368 = vmatprep.subr.mxu0 0.0
        %1369 = vmatpush1.msra.mxu0 0.0
        %1370 = vmatprep.subr.mxu0 0.0
        %1371 = vmatpush1.msra.mxu0 0.0
        %1372 = vmatprep.subr.mxu0 0.0
        %1373 = vmatpush1.msra.mxu0 0.0
        %1374 = vmatprep.subr.mxu0 0.0
        %1375 = vmatpush1.msra.mxu0 0.0
        %1376 = vmatprep.subr.mxu0 0.0
        %1377 = vmatpush1.msra.mxu0 0.0
        %1378 = vmatprep.subr.mxu0 0.0
        %1379 = vmatpush1.msra.mxu0 0.0
        %1380 = vmatprep.subr.mxu0 0.0
        %1381 = vmatpush1.msra.mxu0 0.0
        %1382 = vmatprep.subr.mxu0 0.0
        %1383 = vmatpush1.msra.mxu0 0.0
        %1384 = vmatprep.subr.mxu0 0.0
        %1385 = vmatpush1.msra.mxu0 0.0
        %1386 = vmatprep.mubr.f32.mxu0 0.0
        %1387 = vmatmul.mubr.f32.gmra.mrb[0].mxu0 %v1320
        %v1388 = vpop.f32.mrb[0].mxu0
        %v1389 = vadd.f32 0.0, %v1388
        %v1390 = vpop.f32.mrb[0].mxu0
        %1391 = vdwg.mxu0
        %1392 = vrot.lane.b32.xlu0 %v1121, 120
        %v1393 = vpop.permute.xlu0 %1392
        %1394 = vrot.lane.b32.xlu0 %v1208, 120
        %v1395 = vpop.permute.xlu0 %1394
        %1396 = vrot.lane.b32.xlu0 %v1213, 120
        %v1397 = vpop.permute.xlu0 %1396
        %v1398 = vsel %vm1220, %v1393, 0
        %v1400 = vsel %vm1220, %v1395, 0
        %v1402 = vsel %vm1220, %v1397, 0
        %1404 = vmatprep.subr.mxu0 0.0
        %1405 = vmatpush1.xpose.msra.mxu0 %v1400
        %1406 = vmatprep.subr.mxu0 0.0
        %1407 = vmatpush1.xpose.msra.mxu0 %v1402
        %1408 = vmatprep.subr.mxu0 0.0
        %1409 = vmatpush1.xpose.msra.mxu0 0.0
        %1410 = vmatprep.subr.mxu0 0.0
        %1411 = vmatpush1.xpose.msra.mxu0 0.0
        %1412 = vmatprep.subr.mxu0 0.0
        %1413 = vmatpush1.xpose.msra.mxu0 0.0
        %1414 = vmatprep.subr.mxu0 0.0
        %1415 = vmatpush1.xpose.msra.mxu0 0.0
        %1416 = vmatprep.subr.mxu0 0.0
        %1417 = vmatpush1.xpose.msra.mxu0 0.0
        %1418 = vmatprep.subr.mxu0 0.0
        %1419 = vmatpush1.xpose.msra.mxu0 0.0
        %1420 = vmatprep.subr.mxu0 0.0
        %1421 = vmatpush1.xpose.msra.mxu0 0.0
        %1422 = vmatprep.subr.mxu0 0.0
        %1423 = vmatpush1.xpose.msra.mxu0 0.0
        %1424 = vmatprep.subr.mxu0 0.0
        %1425 = vmatpush1.xpose.msra.mxu0 0.0
        %1426 = vmatprep.subr.mxu0 0.0
        %1427 = vmatpush1.xpose.msra.mxu0 0.0
        %1428 = vmatprep.subr.mxu0 0.0
        %1429 = vmatpush1.xpose.msra.mxu0 0.0
        %1430 = vmatprep.subr.mxu0 0.0
        %1431 = vmatpush1.xpose.msra.mxu0 0.0
        %1432 = vmatprep.subr.mxu0 0.0
        %1433 = vmatpush1.xpose.msra.mxu0 0.0
        %1434 = vmatprep.subr.mxu0 0.0
        %1435 = vmatpush1.xpose.msra.mxu0 0.0
        %1436 = vmatprep.subr.mxu0 0.0
        %1437 = vmatpush1.xpose.msra.mxu0 0.0
        %1438 = vmatprep.subr.mxu0 0.0
        %1439 = vmatpush1.xpose.msra.mxu0 0.0
        %1440 = vmatprep.subr.mxu0 0.0
        %1441 = vmatpush1.xpose.msra.mxu0 0.0
        %1442 = vmatprep.subr.mxu0 0.0
        %1443 = vmatpush1.xpose.msra.mxu0 0.0
        %1444 = vmatprep.subr.mxu0 0.0
        %1445 = vmatpush1.xpose.msra.mxu0 0.0
        %1446 = vmatprep.subr.mxu0 0.0
        %1447 = vmatpush1.xpose.msra.mxu0 0.0
        %1448 = vmatprep.subr.mxu0 0.0
        %1449 = vmatpush1.xpose.msra.mxu0 0.0
        %1450 = vmatprep.subr.mxu0 0.0
        %1451 = vmatpush1.xpose.msra.mxu0 0.0
        %1452 = vmatprep.subr.mxu0 0.0
        %1453 = vmatpush1.xpose.msra.mxu0 0.0
        %1454 = vmatprep.subr.mxu0 0.0
        %1455 = vmatpush1.xpose.msra.mxu0 0.0
        %1456 = vmatprep.subr.mxu0 0.0
        %1457 = vmatpush1.xpose.msra.mxu0 0.0
        %1458 = vmatprep.subr.mxu0 0.0
        %1459 = vmatpush1.xpose.msra.mxu0 0.0
        %1460 = vmatprep.subr.mxu0 0.0
        %1461 = vmatpush1.xpose.msra.mxu0 0.0
        %1462 = vmatprep.subr.mxu0 0.0
        %1463 = vmatpush1.xpose.msra.mxu0 0.0
        %1464 = vmatprep.subr.mxu0 0.0
        %1465 = vmatpush1.xpose.msra.mxu0 0.0
        %1466 = vmatprep.subr.mxu0 0.0
        %1467 = vmatpush1.xpose.msra.mxu0 0.0
        %1468 = vmatprep.mubr.f32.mxu0 0.0
        %1469 = vmatmul.mubr.f32.gmra.mrb[0].mxu0 %v1398
        %v1470 = vpop.f32.mrb[0].mxu0
        %v1471 = vadd.f32 0.0, %v1470
        %v1472 = vpop.f32.mrb[0].mxu0
        %1473 = vdwg.mxu0
        %v1474 = vmul.f32 %v1471, 0.35355338
        %v1475 = vsel %vm1301, %v1474, -inf
        %1476 = vmax.xlane.f32.xlu0 %v1475
        %v1477 = vpop.xlane.xlu0 %1476
        %v1478 = vsub.f32 %v1474, %v1477
        %v1479 = vmul.f32 %v1478, 1.442695
        %v1480 = vpow.pop %v1479
        %v1481 = vsel %vm1301, %v1480, 0.0
        %1482 = vadd.xlane.f32.xlu0 %v1481
        %v1483 = vpop.xlane.xlu0 %1482
        %v1484 = vrcp.pop %v1483
        %v1485 = vmul.f32 %v1480, %v1484
        %1486 = vrot.lane.b32.xlu0 %v1208, 88
        %v1487 = vpop.permute.xlu0 %1486
        %1488 = vrot.lane.b32.xlu0 %v1213, 88
        %v1489 = vpop.permute.xlu0 %1488
        %v1493 = vsel %vm1301, %v1485, 0
        %1495 = vmatprep.subr.mxu0 0.0
        %1496 = vmatpush1.msra.mxu0 %v1487
        %1497 = vmatprep.subr.mxu0 0.0
        %1498 = vmatpush1.msra.mxu0 %v1489
        %1499 = vmatprep.subr.mxu0 0.0
        %1500 = vmatpush1.msra.mxu0 0.0
        %1501 = vmatprep.subr.mxu0 0.0
        %1502 = vmatpush1.msra.mxu0 0.0
        %1503 = vmatprep.subr.mxu0 0.0
        %1504 = vmatpush1.msra.mxu0 0.0
        %1505 = vmatprep.subr.mxu0 0.0
        %1506 = vmatpush1.msra.mxu0 0.0
        %1507 = vmatprep.subr.mxu0 0.0
        %1508 = vmatpush1.msra.mxu0 0.0
        %1509 = vmatprep.subr.mxu0 0.0
        %1510 = vmatpush1.msra.mxu0 0.0
        %1511 = vmatprep.subr.mxu0 0.0
        %1512 = vmatpush1.msra.mxu0 0.0
        %1513 = vmatprep.subr.mxu0 0.0
        %1514 = vmatpush1.msra.mxu0 0.0
        %1515 = vmatprep.subr.mxu0 0.0
        %1516 = vmatpush1.msra.mxu0 0.0
        %1517 = vmatprep.subr.mxu0 0.0
        %1518 = vmatpush1.msra.mxu0 0.0
        %1519 = vmatprep.subr.mxu0 0.0
        %1520 = vmatpush1.msra.mxu0 0.0
        %1521 = vmatprep.subr.mxu0 0.0
        %1522 = vmatpush1.msra.mxu0 0.0
        %1523 = vmatprep.subr.mxu0 0.0
        %1524 = vmatpush1.msra.mxu0 0.0
        %1525 = vmatprep.subr.mxu0 0.0
        %1526 = vmatpush1.msra.mxu0 0.0
        %1527 = vmatprep.subr.mxu0 0.0
        %1528 = vmatpush1.msra.mxu0 0.0
        %1529 = vmatprep.subr.mxu0 0.0
        %1530 = vmatpush1.msra.mxu0 0.0
        %1531 = vmatprep.subr.mxu0 0.0
        %1532 = vmatpush1.msra.mxu0 0.0
        %1533 = vmatprep.subr.mxu0 0.0
        %1534 = vmatpush1.msra.mxu0 0.0
        %1535 = vmatprep.subr.mxu0 0.0
        %1536 = vmatpush1.msra.mxu0 0.0
        %1537 = vmatprep.subr.mxu0 0.0
        %1538 = vmatpush1.msra.mxu0 0.0
        %1539 = vmatprep.subr.mxu0 0.0
        %1540 = vmatpush1.msra.mxu0 0.0
        %1541 = vmatprep.subr.mxu0 0.0
        %1542 = vmatpush1.msra.mxu0 0.0
        %1543 = vmatprep.subr.mxu0 0.0
        %1544 = vmatpush1.msra.mxu0 0.0
        %1545 = vmatprep.subr.mxu0 0.0
        %1546 = vmatpush1.msra.mxu0 0.0
        %1547 = vmatprep.subr.mxu0 0.0
        %1548 = vmatpush1.msra.mxu0 0.0
        %1549 = vmatprep.subr.mxu0 0.0
        %1550 = vmatpush1.msra.mxu0 0.0
        %1551 = vmatprep.subr.mxu0 0.0
        %1552 = vmatpush1.msra.mxu0 0.0
        %1553 = vmatprep.subr.mxu0 0.0
        %1554 = vmatpush1.msra.mxu0 0.0
        %1555 = vmatprep.subr.mxu0 0.0
        %1556 = vmatpush1.msra.mxu0 0.0
        %1557 = vmatprep.subr.mxu0 0.0
        %1558 = vmatpush1.msra.mxu0 0.0
        %1559 = vmatprep.mubr.f32.mxu0 0.0
        %1560 = vmatmul.mubr.f32.gmra.mrb[0].mxu0 %v1493
        %v1561 = vpop.f32.mrb[0].mxu0
        %v1562 = vadd.f32 0.0, %v1561
        %v1563 = vpop.f32.mrb[0].mxu0
        %1564 = vdwg.mxu0
        %v1566 = vsel %vm1220, %v1562, 0
        %1568 = vmatprep.subr.mxu0 0.0
        %1569 = vmatpush1.msra.mxu0 %v1217
        %1570 = vmatprep.subr.mxu0 0.0
        %1571 = vmatpush1.msra.mxu0 0.0
        %1572 = vmatprep.subr.mxu0 0.0
        %1573 = vmatpush1.msra.mxu0 0.0
        %1574 = vmatprep.subr.mxu0 0.0
        %1575 = vmatpush1.msra.mxu0 0.0
        %1576 = vmatprep.subr.mxu0 0.0
        %1577 = vmatpush1.msra.mxu0 0.0
        %1578 = vmatprep.subr.mxu0 0.0
        %1579 = vmatpush1.msra.mxu0 0.0
        %1580 = vmatprep.subr.mxu0 0.0
        %1581 = vmatpush1.msra.mxu0 0.0
        %1582 = vmatprep.subr.mxu0 0.0
        %1583 = vmatpush1.msra.mxu0 0.0
        %1584 = vmatprep.subr.mxu0 0.0
        %1585 = vmatpush1.msra.mxu0 0.0
        %1586 = vmatprep.subr.mxu0 0.0
        %1587 = vmatpush1.msra.mxu0 0.0
        %1588 = vmatprep.subr.mxu0 0.0
        %1589 = vmatpush1.msra.mxu0 0.0
        %1590 = vmatprep.subr.mxu0 0.0
        %1591 = vmatpush1.msra.mxu0 0.0
        %1592 = vmatprep.subr.mxu0 0.0
        %1593 = vmatpush1.msra.mxu0 0.0
        %1594 = vmatprep.subr.mxu0 0.0
        %1595 = vmatpush1.msra.mxu0 0.0
        %1596 = vmatprep.subr.mxu0 0.0
        %1597 = vmatpush1.msra.mxu0 0.0
        %1598 = vmatprep.subr.mxu0 0.0
        %1599 = vmatpush1.msra.mxu0 0.0
        %1600 = vmatprep.subr.mxu0 0.0
        %1601 = vmatpush1.msra.mxu0 0.0
        %1602 = vmatprep.subr.mxu0 0.0
        %1603 = vmatpush1.msra.mxu0 0.0
        %1604 = vmatprep.subr.mxu0 0.0
        %1605 = vmatpush1.msra.mxu0 0.0
        %1606 = vmatprep.subr.mxu0 0.0
        %1607 = vmatpush1.msra.mxu0 0.0
        %1608 = vmatprep.subr.mxu0 0.0
        %1609 = vmatpush1.msra.mxu0 0.0
        %1610 = vmatprep.subr.mxu0 0.0
        %1611 = vmatpush1.msra.mxu0 0.0
        %1612 = vmatprep.subr.mxu0 0.0
        %1613 = vmatpush1.msra.mxu0 0.0
        %1614 = vmatprep.subr.mxu0 0.0
        %1615 = vmatpush1.msra.mxu0 0.0
        %1616 = vmatprep.subr.mxu0 0.0
        %1617 = vmatpush1.msra.mxu0 0.0
        %1618 = vmatprep.subr.mxu0 0.0
        %1619 = vmatpush1.msra.mxu0 0.0
        %1620 = vmatprep.subr.mxu0 0.0
        %1621 = vmatpush1.msra.mxu0 0.0
        %1622 = vmatprep.subr.mxu0 0.0
        %1623 = vmatpush1.msra.mxu0 0.0
        %1624 = vmatprep.subr.mxu0 0.0
        %1625 = vmatpush1.msra.mxu0 0.0
        %1626 = vmatprep.subr.mxu0 0.0
        %1627 = vmatpush1.msra.mxu0 0.0
        %1628 = vmatprep.subr.mxu0 0.0
        %1629 = vmatpush1.msra.mxu0 0.0
        %1630 = vmatprep.subr.mxu0 0.0
        %1631 = vmatpush1.msra.mxu0 0.0
        %1632 = vmatprep.mubr.f32.mxu0 0.0
        %1633 = vmatmul.mubr.f32.gmra.mrb[0].mxu0 %v1566
        %v1634 = vpop.f32.mrb[0].mxu0
        %v1635 = vadd.f32 0.0, %v1634
        %v1636 = vpop.f32.mrb[0].mxu0
        %1637 = vdwg.mxu0
        %v1639 = vsel %vm1220, %v1389, 0
        %1641 = vmatprep.subr.mxu0 0.0
        %1642 = vmatpush1.msra.mxu0 %v1216
        %1643 = vmatprep.subr.mxu0 0.0
        %1644 = vmatpush1.msra.mxu0 0.0
        %1645 = vmatprep.subr.mxu0 0.0
        %1646 = vmatpush1.msra.mxu0 0.0
        %1647 = vmatprep.subr.mxu0 0.0
        %1648 = vmatpush1.msra.mxu0 0.0
        %1649 = vmatprep.subr.mxu0 0.0
        %1650 = vmatpush1.msra.mxu0 0.0
        %1651 = vmatprep.subr.mxu0 0.0
        %1652 = vmatpush1.msra.mxu0 0.0
        %1653 = vmatprep.subr.mxu0 0.0
        %1654 = vmatpush1.msra.mxu0 0.0
        %1655 = vmatprep.subr.mxu0 0.0
        %1656 = vmatpush1.msra.mxu0 0.0
        %1657 = vmatprep.subr.mxu0 0.0
        %1658 = vmatpush1.msra.mxu0 0.0
        %1659 = vmatprep.subr.mxu0 0.0
        %1660 = vmatpush1.msra.mxu0 0.0
        %1661 = vmatprep.subr.mxu0 0.0
        %1662 = vmatpush1.msra.mxu0 0.0
        %1663 = vmatprep.subr.mxu0 0.0
        %1664 = vmatpush1.msra.mxu0 0.0
        %1665 = vmatprep.subr.mxu0 0.0
        %1666 = vmatpush1.msra.mxu0 0.0
        %1667 = vmatprep.subr.mxu0 0.0
        %1668 = vmatpush1.msra.mxu0 0.0
        %1669 = vmatprep.subr.mxu0 0.0
        %1670 = vmatpush1.msra.mxu0 0.0
        %1671 = vmatprep.subr.mxu0 0.0
        %1672 = vmatpush1.msra.mxu0 0.0
        %1673 = vmatprep.subr.mxu0 0.0
        %1674 = vmatpush1.msra.mxu0 0.0
        %1675 = vmatprep.subr.mxu0 0.0
        %1676 = vmatpush1.msra.mxu0 0.0
        %1677 = vmatprep.subr.mxu0 0.0
        %1678 = vmatpush1.msra.mxu0 0.0
        %1679 = vmatprep.subr.mxu0 0.0
        %1680 = vmatpush1.msra.mxu0 0.0
        %1681 = vmatprep.subr.mxu0 0.0
        %1682 = vmatpush1.msra.mxu0 0.0
        %1683 = vmatprep.subr.mxu0 0.0
        %1684 = vmatpush1.msra.mxu0 0.0
        %1685 = vmatprep.subr.mxu0 0.0
        %1686 = vmatpush1.msra.mxu0 0.0
        %1687 = vmatprep.subr.mxu0 0.0
        %1688 = vmatpush1.msra.mxu0 0.0
        %1689 = vmatprep.subr.mxu0 0.0
        %1690 = vmatpush1.msra.mxu0 0.0
        %1691 = vmatprep.subr.mxu0 0.0
        %1692 = vmatpush1.msra.mxu0 0.0
        %1693 = vmatprep.subr.mxu0 0.0
        %1694 = vmatpush1.msra.mxu0 0.0
        %1695 = vmatprep.subr.mxu0 0.0
        %1696 = vmatpush1.msra.mxu0 0.0
        %1697 = vmatprep.subr.mxu0 0.0
        %1698 = vmatpush1.msra.mxu0 0.0
        %1699 = vmatprep.subr.mxu0 0.0
        %1700 = vmatpush1.msra.mxu0 0.0
        %1701 = vmatprep.subr.mxu0 0.0
        %1702 = vmatpush1.msra.mxu0 0.0
        %1703 = vmatprep.subr.mxu0 0.0
        %1704 = vmatpush1.msra.mxu0 0.0
        %1705 = vmatprep.mubr.f32.mxu0 0.0
        %1706 = vmatmul.mubr.f32.gmra.mrb[0].mxu0 %v1639
        %v1707 = vpop.f32.mrb[0].mxu0
        %v1708 = vadd.f32 %v1635, %v1707
        %v1709 = vpop.f32.mrb[0].mxu0
        %1710 = vdwg.mxu0
        %1711 = vrot.lane.b32.xlu0 %v1121, 112
        %v1712 = vpop.permute.xlu0 %1711
        %1713 = vrot.lane.b32.xlu0 %v1208, 112
        %v1714 = vpop.permute.xlu0 %1713
        %1715 = vrot.lane.b32.xlu0 %v1213, 112
        %v1716 = vpop.permute.xlu0 %1715
        %v1717 = vsel %vm1220, %v1712, 0
        %v1719 = vsel %vm1220, %v1714, 0
        %v1721 = vsel %vm1220, %v1716, 0
        %1723 = vmatprep.subr.mxu0 0.0
        %1724 = vmatpush1.xpose.msra.mxu0 %v1719
        %1725 = vmatprep.subr.mxu0 0.0
        %1726 = vmatpush1.xpose.msra.mxu0 %v1721
        %1727 = vmatprep.subr.mxu0 0.0
        %1728 = vmatpush1.xpose.msra.mxu0 0.0
        %1729 = vmatprep.subr.mxu0 0.0
        %1730 = vmatpush1.xpose.msra.mxu0 0.0
        %1731 = vmatprep.subr.mxu0 0.0
        %1732 = vmatpush1.xpose.msra.mxu0 0.0
        %1733 = vmatprep.subr.mxu0 0.0
        %1734 = vmatpush1.xpose.msra.mxu0 0.0
        %1735 = vmatprep.subr.mxu0 0.0
        %1736 = vmatpush1.xpose.msra.mxu0 0.0
        %1737 = vmatprep.subr.mxu0 0.0
        %1738 = vmatpush1.xpose.msra.mxu0 0.0
        %1739 = vmatprep.subr.mxu0 0.0
        %1740 = vmatpush1.xpose.msra.mxu0 0.0
        %1741 = vmatprep.subr.mxu0 0.0
        %1742 = vmatpush1.xpose.msra.mxu0 0.0
        %1743 = vmatprep.subr.mxu0 0.0
        %1744 = vmatpush1.xpose.msra.mxu0 0.0
        %1745 = vmatprep.subr.mxu0 0.0
        %1746 = vmatpush1.xpose.msra.mxu0 0.0
        %1747 = vmatprep.subr.mxu0 0.0
        %1748 = vmatpush1.xpose.msra.mxu0 0.0
        %1749 = vmatprep.subr.mxu0 0.0
        %1750 = vmatpush1.xpose.msra.mxu0 0.0
        %1751 = vmatprep.subr.mxu0 0.0
        %1752 = vmatpush1.xpose.msra.mxu0 0.0
        %1753 = vmatprep.subr.mxu0 0.0
        %1754 = vmatpush1.xpose.msra.mxu0 0.0
        %1755 = vmatprep.subr.mxu0 0.0
        %1756 = vmatpush1.xpose.msra.mxu0 0.0
        %1757 = vmatprep.subr.mxu0 0.0
        %1758 = vmatpush1.xpose.msra.mxu0 0.0
        %1759 = vmatprep.subr.mxu0 0.0
        %1760 = vmatpush1.xpose.msra.mxu0 0.0
        %1761 = vmatprep.subr.mxu0 0.0
        %1762 = vmatpush1.xpose.msra.mxu0 0.0
        %1763 = vmatprep.subr.mxu0 0.0
        %1764 = vmatpush1.xpose.msra.mxu0 0.0
        %1765 = vmatprep.subr.mxu0 0.0
        %1766 = vmatpush1.xpose.msra.mxu0 0.0
        %1767 = vmatprep.subr.mxu0 0.0
        %1768 = vmatpush1.xpose.msra.mxu0 0.0
        %1769 = vmatprep.subr.mxu0 0.0
        %1770 = vmatpush1.xpose.msra.mxu0 0.0
        %1771 = vmatprep.subr.mxu0 0.0
        %1772 = vmatpush1.xpose.msra.mxu0 0.0
        %1773 = vmatprep.subr.mxu0 0.0
        %1774 = vmatpush1.xpose.msra.mxu0 0.0
        %1775 = vmatprep.subr.mxu0 0.0
        %1776 = vmatpush1.xpose.msra.mxu0 0.0
        %1777 = vmatprep.subr.mxu0 0.0
        %1778 = vmatpush1.xpose.msra.mxu0 0.0
        %1779 = vmatprep.subr.mxu0 0.0
        %1780 = vmatpush1.xpose.msra.mxu0 0.0
        %1781 = vmatprep.subr.mxu0 0.0
        %1782 = vmatpush1.xpose.msra.mxu0 0.0
        %1783 = vmatprep.subr.mxu0 0.0
        %1784 = vmatpush1.xpose.msra.mxu0 0.0
        %1785 = vmatprep.subr.mxu0 0.0
        %1786 = vmatpush1.xpose.msra.mxu0 0.0
        %1787 = vmatprep.mubr.f32.mxu0 0.0
        %1788 = vmatmul.mubr.f32.gmra.mrb[0].mxu0 %v1717
        %v1789 = vpop.f32.mrb[0].mxu0
        %v1790 = vadd.f32 0.0, %v1789
        %v1791 = vpop.f32.mrb[0].mxu0
        %1792 = vdwg.mxu0
        %v1793 = vmul.f32 %v1790, 0.35355338
        %v1794 = vsel %vm1301, %v1793, -inf
        %1795 = vmax.xlane.f32.xlu0 %v1794
        %v1796 = vpop.xlane.xlu0 %1795
        %v1797 = vsub.f32 %v1793, %v1796
        %v1798 = vmul.f32 %v1797, 1.442695
        %v1799 = vpow.pop %v1798
        %v1800 = vsel %vm1301, %v1799, 0.0
        %1801 = vadd.xlane.f32.xlu0 %v1800
        %v1802 = vpop.xlane.xlu0 %1801
        %v1803 = vrcp.pop %v1802
        %v1804 = vmul.f32 %v1799, %v1803
        %1805 = vrot.lane.b32.xlu0 %v1208, 80
        %v1806 = vpop.permute.xlu0 %1805
        %1807 = vrot.lane.b32.xlu0 %v1213, 80
        %v1808 = vpop.permute.xlu0 %1807
        %v1812 = vsel %vm1301, %v1804, 0
        %1814 = vmatprep.subr.mxu0 0.0
        %1815 = vmatpush1.msra.mxu0 %v1806
        %1816 = vmatprep.subr.mxu0 0.0
        %1817 = vmatpush1.msra.mxu0 %v1808
        %1818 = vmatprep.subr.mxu0 0.0
        %1819 = vmatpush1.msra.mxu0 0.0
        %1820 = vmatprep.subr.mxu0 0.0
        %1821 = vmatpush1.msra.mxu0 0.0
        %1822 = vmatprep.subr.mxu0 0.0
        %1823 = vmatpush1.msra.mxu0 0.0
        %1824 = vmatprep.subr.mxu0 0.0
        %1825 = vmatpush1.msra.mxu0 0.0
        %1826 = vmatprep.subr.mxu0 0.0
        %1827 = vmatpush1.msra.mxu0 0.0
        %1828 = vmatprep.subr.mxu0 0.0
        %1829 = vmatpush1.msra.mxu0 0.0
        %1830 = vmatprep.subr.mxu0 0.0
        %1831 = vmatpush1.msra.mxu0 0.0
        %1832 = vmatprep.subr.mxu0 0.0
        %1833 = vmatpush1.msra.mxu0 0.0
        %1834 = vmatprep.subr.mxu0 0.0
        %1835 = vmatpush1.msra.mxu0 0.0
        %1836 = vmatprep.subr.mxu0 0.0
        %1837 = vmatpush1.msra.mxu0 0.0
        %1838 = vmatprep.subr.mxu0 0.0
        %1839 = vmatpush1.msra.mxu0 0.0
        %1840 = vmatprep.subr.mxu0 0.0
        %1841 = vmatpush1.msra.mxu0 0.0
        %1842 = vmatprep.subr.mxu0 0.0
        %1843 = vmatpush1.msra.mxu0 0.0
        %1844 = vmatprep.subr.mxu0 0.0
        %1845 = vmatpush1.msra.mxu0 0.0
        %1846 = vmatprep.subr.mxu0 0.0
        %1847 = vmatpush1.msra.mxu0 0.0
        %1848 = vmatprep.subr.mxu0 0.0
        %1849 = vmatpush1.msra.mxu0 0.0
        %1850 = vmatprep.subr.mxu0 0.0
        %1851 = vmatpush1.msra.mxu0 0.0
        %1852 = vmatprep.subr.mxu0 0.0
        %1853 = vmatpush1.msra.mxu0 0.0
        %1854 = vmatprep.subr.mxu0 0.0
        %1855 = vmatpush1.msra.mxu0 0.0
        %1856 = vmatprep.subr.mxu0 0.0
        %1857 = vmatpush1.msra.mxu0 0.0
        %1858 = vmatprep.subr.mxu0 0.0
        %1859 = vmatpush1.msra.mxu0 0.0
        %1860 = vmatprep.subr.mxu0 0.0
        %1861 = vmatpush1.msra.mxu0 0.0
        %1862 = vmatprep.subr.mxu0 0.0
        %1863 = vmatpush1.msra.mxu0 0.0
        %1864 = vmatprep.subr.mxu0 0.0
        %1865 = vmatpush1.msra.mxu0 0.0
        %1866 = vmatprep.subr.mxu0 0.0
        %1867 = vmatpush1.msra.mxu0 0.0
        %1868 = vmatprep.subr.mxu0 0.0
        %1869 = vmatpush1.msra.mxu0 0.0
        %1870 = vmatprep.subr.mxu0 0.0
        %1871 = vmatpush1.msra.mxu0 0.0
        %1872 = vmatprep.subr.mxu0 0.0
        %1873 = vmatpush1.msra.mxu0 0.0
        %1874 = vmatprep.subr.mxu0 0.0
        %1875 = vmatpush1.msra.mxu0 0.0
        %1876 = vmatprep.subr.mxu0 0.0
        %1877 = vmatpush1.msra.mxu0 0.0
        %1878 = vmatprep.mubr.f32.mxu0 0.0
        %1879 = vmatmul.mubr.f32.gmra.mrb[0].mxu0 %v1812
        %v1880 = vpop.f32.mrb[0].mxu0
        %v1881 = vadd.f32 0.0, %v1880
        %v1882 = vpop.f32.mrb[0].mxu0
        %1883 = vdwg.mxu0
        %v1885 = vsel %vm1220, %v1881, 0
        %1887 = vmatprep.subr.mxu0 0.0
        %1888 = vmatpush1.msra.mxu0 %v1218
        %1889 = vmatprep.subr.mxu0 0.0
        %1890 = vmatpush1.msra.mxu0 0.0
        %1891 = vmatprep.subr.mxu0 0.0
        %1892 = vmatpush1.msra.mxu0 0.0
        %1893 = vmatprep.subr.mxu0 0.0
        %1894 = vmatpush1.msra.mxu0 0.0
        %1895 = vmatprep.subr.mxu0 0.0
        %1896 = vmatpush1.msra.mxu0 0.0
        %1897 = vmatprep.subr.mxu0 0.0
        %1898 = vmatpush1.msra.mxu0 0.0
        %1899 = vmatprep.subr.mxu0 0.0
        %1900 = vmatpush1.msra.mxu0 0.0
        %1901 = vmatprep.subr.mxu0 0.0
        %1902 = vmatpush1.msra.mxu0 0.0
        %1903 = vmatprep.subr.mxu0 0.0
        %1904 = vmatpush1.msra.mxu0 0.0
        %1905 = vmatprep.subr.mxu0 0.0
        %1906 = vmatpush1.msra.mxu0 0.0
        %1907 = vmatprep.subr.mxu0 0.0
        %1908 = vmatpush1.msra.mxu0 0.0
        %1909 = vmatprep.subr.mxu0 0.0
        %1910 = vmatpush1.msra.mxu0 0.0
        %1911 = vmatprep.subr.mxu0 0.0
        %1912 = vmatpush1.msra.mxu0 0.0
        %1913 = vmatprep.subr.mxu0 0.0
        %1914 = vmatpush1.msra.mxu0 0.0
        %1915 = vmatprep.subr.mxu0 0.0
        %1916 = vmatpush1.msra.mxu0 0.0
        %1917 = vmatprep.subr.mxu0 0.0
        %1918 = vmatpush1.msra.mxu0 0.0
        %1919 = vmatprep.subr.mxu0 0.0
        %1920 = vmatpush1.msra.mxu0 0.0
        %1921 = vmatprep.subr.mxu0 0.0
        %1922 = vmatpush1.msra.mxu0 0.0
        %1923 = vmatprep.subr.mxu0 0.0
        %1924 = vmatpush1.msra.mxu0 0.0
        %1925 = vmatprep.subr.mxu0 0.0
        %1926 = vmatpush1.msra.mxu0 0.0
        %1927 = vmatprep.subr.mxu0 0.0
        %1928 = vmatpush1.msra.mxu0 0.0
        %1929 = vmatprep.subr.mxu0 0.0
        %1930 = vmatpush1.msra.mxu0 0.0
        %1931 = vmatprep.subr.mxu0 0.0
        %1932 = vmatpush1.msra.mxu0 0.0
        %1933 = vmatprep.subr.mxu0 0.0
        %1934 = vmatpush1.msra.mxu0 0.0
        %1935 = vmatprep.subr.mxu0 0.0
        %1936 = vmatpush1.msra.mxu0 0.0
        %1937 = vmatprep.subr.mxu0 0.0
        %1938 = vmatpush1.msra.mxu0 0.0
        %1939 = vmatprep.subr.mxu0 0.0
        %1940 = vmatpush1.msra.mxu0 0.0
        %1941 = vmatprep.subr.mxu0 0.0
        %1942 = vmatpush1.msra.mxu0 0.0
        %1943 = vmatprep.subr.mxu0 0.0
        %1944 = vmatpush1.msra.mxu0 0.0
        %1945 = vmatprep.subr.mxu0 0.0
        %1946 = vmatpush1.msra.mxu0 0.0
        %1947 = vmatprep.subr.mxu0 0.0
        %1948 = vmatpush1.msra.mxu0 0.0
        %1949 = vmatprep.subr.mxu0 0.0
        %1950 = vmatpush1.msra.mxu0 0.0
        %1951 = vmatprep.mubr.f32.mxu0 0.0
        %1952 = vmatmul.mubr.f32.gmra.mrb[0].mxu0 %v1885
        %v1953 = vpop.f32.mrb[0].mxu0
        %v1954 = vadd.f32 0.0, %v1953
        %v1955 = vpop.f32.mrb[0].mxu0
        %1956 = vdwg.mxu0
        %v1957 = vadd.f32 %v1708, %v1954
        %1958 = vrot.lane.b32.xlu0 %v1121, 104
        %v1959 = vpop.permute.xlu0 %1958
        %1960 = vrot.lane.b32.xlu0 %v1208, 104
        %v1961 = vpop.permute.xlu0 %1960
        %1962 = vrot.lane.b32.xlu0 %v1213, 104
        %v1963 = vpop.permute.xlu0 %1962
        %v1964 = vsel %vm1220, %v1959, 0
        %v1966 = vsel %vm1220, %v1961, 0
        %v1968 = vsel %vm1220, %v1963, 0
        %1970 = vmatprep.subr.mxu0 0.0
        %1971 = vmatpush1.xpose.msra.mxu0 %v1966
        %1972 = vmatprep.subr.mxu0 0.0
        %1973 = vmatpush1.xpose.msra.mxu0 %v1968
        %1974 = vmatprep.subr.mxu0 0.0
        %1975 = vmatpush1.xpose.msra.mxu0 0.0
        %1976 = vmatprep.subr.mxu0 0.0
        %1977 = vmatpush1.xpose.msra.mxu0 0.0
        %1978 = vmatprep.subr.mxu0 0.0
        %1979 = vmatpush1.xpose.msra.mxu0 0.0
        %1980 = vmatprep.subr.mxu0 0.0
        %1981 = vmatpush1.xpose.msra.mxu0 0.0
        %1982 = vmatprep.subr.mxu0 0.0
        %1983 = vmatpush1.xpose.msra.mxu0 0.0
        %1984 = vmatprep.subr.mxu0 0.0
        %1985 = vmatpush1.xpose.msra.mxu0 0.0
        %1986 = vmatprep.subr.mxu0 0.0
        %1987 = vmatpush1.xpose.msra.mxu0 0.0
        %1988 = vmatprep.subr.mxu0 0.0
        %1989 = vmatpush1.xpose.msra.mxu0 0.0
        %1990 = vmatprep.subr.mxu0 0.0
        %1991 = vmatpush1.xpose.msra.mxu0 0.0
        %1992 = vmatprep.subr.mxu0 0.0
        %1993 = vmatpush1.xpose.msra.mxu0 0.0
        %1994 = vmatprep.subr.mxu0 0.0
        %1995 = vmatpush1.xpose.msra.mxu0 0.0
        %1996 = vmatprep.subr.mxu0 0.0
        %1997 = vmatpush1.xpose.msra.mxu0 0.0
        %1998 = vmatprep.subr.mxu0 0.0
        %1999 = vmatpush1.xpose.msra.mxu0 0.0
        %2000 = vmatprep.subr.mxu0 0.0
        %2001 = vmatpush1.xpose.msra.mxu0 0.0
        %2002 = vmatprep.subr.mxu0 0.0
        %2003 = vmatpush1.xpose.msra.mxu0 0.0
        %2004 = vmatprep.subr.mxu0 0.0
        %2005 = vmatpush1.xpose.msra.mxu0 0.0
        %2006 = vmatprep.subr.mxu0 0.0
        %2007 = vmatpush1.xpose.msra.mxu0 0.0
        %2008 = vmatprep.subr.mxu0 0.0
        %2009 = vmatpush1.xpose.msra.mxu0 0.0
        %2010 = vmatprep.subr.mxu0 0.0
        %2011 = vmatpush1.xpose.msra.mxu0 0.0
        %2012 = vmatprep.subr.mxu0 0.0
        %2013 = vmatpush1.xpose.msra.mxu0 0.0
        %2014 = vmatprep.subr.mxu0 0.0
        %2015 = vmatpush1.xpose.msra.mxu0 0.0
        %2016 = vmatprep.subr.mxu0 0.0
        %2017 = vmatpush1.xpose.msra.mxu0 0.0
        %2018 = vmatprep.subr.mxu0 0.0
        %2019 = vmatpush1.xpose.msra.mxu0 0.0
        %2020 = vmatprep.subr.mxu0 0.0
        %2021 = vmatpush1.xpose.msra.mxu0 0.0
        %2022 = vmatprep.subr.mxu0 0.0
        %2023 = vmatpush1.xpose.msra.mxu0 0.0
        %2024 = vmatprep.subr.mxu0 0.0
        %2025 = vmatpush1.xpose.msra.mxu0 0.0
        %2026 = vmatprep.subr.mxu0 0.0
        %2027 = vmatpush1.xpose.msra.mxu0 0.0
        %2028 = vmatprep.subr.mxu0 0.0
        %2029 = vmatpush1.xpose.msra.mxu0 0.0
        %2030 = vmatprep.subr.mxu0 0.0
        %2031 = vmatpush1.xpose.msra.mxu0 0.0
        %2032 = vmatprep.subr.mxu0 0.0
        %2033 = vmatpush1.xpose.msra.mxu0 0.0
        %2034 = vmatprep.mubr.f32.mxu0 0.0
        %2035 = vmatmul.mubr.f32.gmra.mrb[0].mxu0 %v1964
        %v2036 = vpop.f32.mrb[0].mxu0
        %v2037 = vadd.f32 0.0, %v2036
        %v2038 = vpop.f32.mrb[0].mxu0
        %2039 = vdwg.mxu0
        %v2040 = vmul.f32 %v2037, 0.35355338
        %v2041 = vsel %vm1301, %v2040, -inf
        %2042 = vmax.xlane.f32.xlu0 %v2041
        %v2043 = vpop.xlane.xlu0 %2042
        %v2044 = vsub.f32 %v2040, %v2043
        %v2045 = vmul.f32 %v2044, 1.442695
        %v2046 = vpow.pop %v2045
        %v2047 = vsel %vm1301, %v2046, 0.0
        %2048 = vadd.xlane.f32.xlu0 %v2047
        %v2049 = vpop.xlane.xlu0 %2048
        %v2050 = vrcp.pop %v2049
        %v2051 = vmul.f32 %v2046, %v2050
        %2052 = vrot.lane.b32.xlu0 %v1208, 72
        %v2053 = vpop.permute.xlu0 %2052
        %2054 = vrot.lane.b32.xlu0 %v1213, 72
        %v2055 = vpop.permute.xlu0 %2054
        %v2059 = vsel %vm1301, %v2051, 0
        %2061 = vmatprep.subr.mxu0 0.0
        %2062 = vmatpush1.msra.mxu0 %v2053
        %2063 = vmatprep.subr.mxu0 0.0
        %2064 = vmatpush1.msra.mxu0 %v2055
        %2065 = vmatprep.subr.mxu0 0.0
        %2066 = vmatpush1.msra.mxu0 0.0
        %2067 = vmatprep.subr.mxu0 0.0
        %2068 = vmatpush1.msra.mxu0 0.0
        %2069 = vmatprep.subr.mxu0 0.0
        %2070 = vmatpush1.msra.mxu0 0.0
        %2071 = vmatprep.subr.mxu0 0.0
        %2072 = vmatpush1.msra.mxu0 0.0
        %2073 = vmatprep.subr.mxu0 0.0
        %2074 = vmatpush1.msra.mxu0 0.0
        %2075 = vmatprep.subr.mxu0 0.0
        %2076 = vmatpush1.msra.mxu0 0.0
        %2077 = vmatprep.subr.mxu0 0.0
        %2078 = vmatpush1.msra.mxu0 0.0
        %2079 = vmatprep.subr.mxu0 0.0
        %2080 = vmatpush1.msra.mxu0 0.0
        %2081 = vmatprep.subr.mxu0 0.0
        %2082 = vmatpush1.msra.mxu0 0.0
        %2083 = vmatprep.subr.mxu0 0.0
        %2084 = vmatpush1.msra.mxu0 0.0
        %2085 = vmatprep.subr.mxu0 0.0
        %2086 = vmatpush1.msra.mxu0 0.0
        %2087 = vmatprep.subr.mxu0 0.0
        %2088 = vmatpush1.msra.mxu0 0.0
        %2089 = vmatprep.subr.mxu0 0.0
        %2090 = vmatpush1.msra.mxu0 0.0
        %2091 = vmatprep.subr.mxu0 0.0
        %2092 = vmatpush1.msra.mxu0 0.0
        %2093 = vmatprep.subr.mxu0 0.0
        %2094 = vmatpush1.msra.mxu0 0.0
        %2095 = vmatprep.subr.mxu0 0.0
        %2096 = vmatpush1.msra.mxu0 0.0
        %2097 = vmatprep.subr.mxu0 0.0
        %2098 = vmatpush1.msra.mxu0 0.0
        %2099 = vmatprep.subr.mxu0 0.0
        %2100 = vmatpush1.msra.mxu0 0.0
        %2101 = vmatprep.subr.mxu0 0.0
        %2102 = vmatpush1.msra.mxu0 0.0
        %2103 = vmatprep.subr.mxu0 0.0
        %2104 = vmatpush1.msra.mxu0 0.0
        %2105 = vmatprep.subr.mxu0 0.0
        %2106 = vmatpush1.msra.mxu0 0.0
        %2107 = vmatprep.subr.mxu0 0.0
        %2108 = vmatpush1.msra.mxu0 0.0
        %2109 = vmatprep.subr.mxu0 0.0
        %2110 = vmatpush1.msra.mxu0 0.0
        %2111 = vmatprep.subr.mxu0 0.0
        %2112 = vmatpush1.msra.mxu0 0.0
        %2113 = vmatprep.subr.mxu0 0.0
        %2114 = vmatpush1.msra.mxu0 0.0
        %2115 = vmatprep.subr.mxu0 0.0
        %2116 = vmatpush1.msra.mxu0 0.0
        %2117 = vmatprep.subr.mxu0 0.0
        %2118 = vmatpush1.msra.mxu0 0.0
        %2119 = vmatprep.subr.mxu0 0.0
        %2120 = vmatpush1.msra.mxu0 0.0
        %2121 = vmatprep.subr.mxu0 0.0
        %2122 = vmatpush1.msra.mxu0 0.0
        %2123 = vmatprep.subr.mxu0 0.0
        %2124 = vmatpush1.msra.mxu0 0.0
        %2125 = vmatprep.mubr.f32.mxu0 0.0
        %2126 = vmatmul.mubr.f32.gmra.mrb[0].mxu0 %v2059
        %v2127 = vpop.f32.mrb[0].mxu0
        %v2128 = vadd.f32 0.0, %v2127
        %v2129 = vpop.f32.mrb[0].mxu0
        %2130 = vdwg.mxu0
        %v2132 = vsel %vm1220, %v2128, 0
        %2134 = vmatprep.subr.mxu0 0.0
        %2135 = vmatpush1.msra.mxu0 %v1219
        %2136 = vmatprep.subr.mxu0 0.0
        %2137 = vmatpush1.msra.mxu0 0.0
        %2138 = vmatprep.subr.mxu0 0.0
        %2139 = vmatpush1.msra.mxu0 0.0
        %2140 = vmatprep.subr.mxu0 0.0
        %2141 = vmatpush1.msra.mxu0 0.0
        %2142 = vmatprep.subr.mxu0 0.0
        %2143 = vmatpush1.msra.mxu0 0.0
        %2144 = vmatprep.subr.mxu0 0.0
        %2145 = vmatpush1.msra.mxu0 0.0
        %2146 = vmatprep.subr.mxu0 0.0
        %2147 = vmatpush1.msra.mxu0 0.0
        %2148 = vmatprep.subr.mxu0 0.0
        %2149 = vmatpush1.msra.mxu0 0.0
        %2150 = vmatprep.subr.mxu0 0.0
        %2151 = vmatpush1.msra.mxu0 0.0
        %2152 = vmatprep.subr.mxu0 0.0
        %2153 = vmatpush1.msra.mxu0 0.0
        %2154 = vmatprep.subr.mxu0 0.0
        %2155 = vmatpush1.msra.mxu0 0.0
        %2156 = vmatprep.subr.mxu0 0.0
        %2157 = vmatpush1.msra.mxu0 0.0
        %2158 = vmatprep.subr.mxu0 0.0
        %2159 = vmatpush1.msra.mxu0 0.0
        %2160 = vmatprep.subr.mxu0 0.0
        %2161 = vmatpush1.msra.mxu0 0.0
        %2162 = vmatprep.subr.mxu0 0.0
        %2163 = vmatpush1.msra.mxu0 0.0
        %2164 = vmatprep.subr.mxu0 0.0
        %2165 = vmatpush1.msra.mxu0 0.0
        %2166 = vmatprep.subr.mxu0 0.0
        %2167 = vmatpush1.msra.mxu0 0.0
        %2168 = vmatprep.subr.mxu0 0.0
        %2169 = vmatpush1.msra.mxu0 0.0
        %2170 = vmatprep.subr.mxu0 0.0
        %2171 = vmatpush1.msra.mxu0 0.0
        %2172 = vmatprep.subr.mxu0 0.0
        %2173 = vmatpush1.msra.mxu0 0.0
        %2174 = vmatprep.subr.mxu0 0.0
        %2175 = vmatpush1.msra.mxu0 0.0
        %2176 = vmatprep.subr.mxu0 0.0
        %2177 = vmatpush1.msra.mxu0 0.0
        %2178 = vmatprep.subr.mxu0 0.0
        %2179 = vmatpush1.msra.mxu0 0.0
        %2180 = vmatprep.subr.mxu0 0.0
        %2181 = vmatpush1.msra.mxu0 0.0
        %2182 = vmatprep.subr.mxu0 0.0
        %2183 = vmatpush1.msra.mxu0 0.0
        %2184 = vmatprep.subr.mxu0 0.0
        %2185 = vmatpush1.msra.mxu0 0.0
        %2186 = vmatprep.subr.mxu0 0.0
        %2187 = vmatpush1.msra.mxu0 0.0
        %2188 = vmatprep.subr.mxu0 0.0
        %2189 = vmatpush1.msra.mxu0 0.0
        %2190 = vmatprep.subr.mxu0 0.0
        %2191 = vmatpush1.msra.mxu0 0.0
        %2192 = vmatprep.subr.mxu0 0.0
        %2193 = vmatpush1.msra.mxu0 0.0
        %2194 = vmatprep.subr.mxu0 0.0
        %2195 = vmatpush1.msra.mxu0 0.0
        %2196 = vmatprep.subr.mxu0 0.0
        %2197 = vmatpush1.msra.mxu0 0.0
        %2198 = vmatprep.mubr.f32.mxu0 0.0
        %2199 = vmatmul.mubr.f32.gmra.mrb[0].mxu0 %v2132
        %v2200 = vpop.f32.mrb[0].mxu0
        %v2201 = vadd.f32 0.0, %v2200
        %v2202 = vpop.f32.mrb[0].mxu0
        %2203 = vdwg.mxu0
        %v2204 = vadd.f32 %v1957, %v2201
        %v2205 = vld [vmem:[%s833] sm:$0x1]
        %v2207 = vlaneseq
        %v2208 = vshrl.u32 %v2207, 7
        %v2209 = vsub.s32 0, %v2208
        %v2210 = vrot.slane %v2205, %v2209
        %v2212 = vadd.f32 %v2204, %v2210
        %v2213 = vadd.f32 %v1036, %v2212
        %v2214 = vld [vmem:[%s841] sm:$0x1]
        %v2215 = vld [vmem:[%s849] sm:$0x1]
        %v2216 = vsel %vm1050, %v2213, 0.0
        %2217 = vadd.xlane.f32.xlu0 %v2216
        %v2218 = vpop.xlane.xlu0 %2217
        %v2219 = vrcp.pop 32.0
        %v2220 = vmul.f32 %v2218, %v2219
        %v2221 = vsub.f32 %v2213, %v2220
        %v2222 = vmul.f32 %v2221, %v2221
        %v2223 = vsel %vm1050, %v2222, 0.0
        %2224 = vadd.xlane.f32.xlu0 %v2223
        %v2225 = vpop.xlane.xlu0 %2224
        %v2226 = vmul.f32 %v2225, %v2219
        %v2227 = vadd.f32 %v2226, 1e-05
        %v2228 = vrsqrt.pop %v2227
        %v2229 = vmul.f32 %v2221, %v2228
        %v2231 = vlaneseq
        %v2232 = vshrl.u32 %v2231, 7
        %v2233 = vsub.s32 0, %v2232
        %v2234 = vrot.slane %v2214, %v2233
        %v2236 = vmul.f32 %v2229, %v2234
        %v2238 = vlaneseq
        %v2239 = vshrl.u32 %v2238, 7
        %v2240 = vsub.s32 0, %v2239
        %v2241 = vrot.slane %v2215, %v2240
        %v2243 = vadd.f32 %v2236, %v2241
        %v2244 = vld [vmem:[%s858] sm:$0xff]
        %v2245 = vld [vmem:[%s858 + $0x8] sm:$0xff]
        %v2246 = vld [vmem:[%s858 + $0x10] sm:$0xff]
        %v2247 = vld [vmem:[%s858 + $0x18] sm:$0xff]
        %v2248 = vld [vmem:[%s866] sm:$0x1]
        %v2250 = vlaneseq
        %v2251 = vshrl.u32 %v2250, 7
        %v2252 = vsub.s32 0, %v2251
        %v2253 = vrot.slane %v2248, %v2252
        %v2256 = vsel %vm1050, %v2243, 0
        %2258 = vmatprep.subr.mxu0 0.0
        %2259 = vmatpush1.msra.mxu0 %v2244
        %2260 = vmatprep.subr.mxu0 0.0
        %2261 = vmatpush1.msra.mxu0 %v2245
        %2262 = vmatprep.subr.mxu0 0.0
        %2263 = vmatpush1.msra.mxu0 %v2246
        %2264 = vmatprep.subr.mxu0 0.0
        %2265 = vmatpush1.msra.mxu0 %v2247
        %2266 = vmatprep.subr.mxu0 0.0
        %2267 = vmatpush1.msra.mxu0 0.0
        %2268 = vmatprep.subr.mxu0 0.0
        %2269 = vmatpush1.msra.mxu0 0.0
        %2270 = vmatprep.subr.mxu0 0.0
        %2271 = vmatpush1.msra.mxu0 0.0
        %2272 = vmatprep.subr.mxu0 0.0
        %2273 = vmatpush1.msra.mxu0 0.0
        %2274 = vmatprep.subr.mxu0 0.0
        %2275 = vmatpush1.msra.mxu0 0.0
        %2276 = vmatprep.subr.mxu0 0.0
        %2277 = vmatpush1.msra.mxu0 0.0
        %2278 = vmatprep.subr.mxu0 0.0
        %2279 = vmatpush1.msra.mxu0 0.0
        %2280 = vmatprep.subr.mxu0 0.0
        %2281 = vmatpush1.msra.mxu0 0.0
        %2282 = vmatprep.subr.mxu0 0.0
        %2283 = vmatpush1.msra.mxu0 0.0
        %2284 = vmatprep.subr.mxu0 0.0
        %2285 = vmatpush1.msra.mxu0 0.0
        %2286 = vmatprep.subr.mxu0 0.0
        %2287 = vmatpush1.msra.mxu0 0.0
        %2288 = vmatprep.subr.mxu0 0.0
        %2289 = vmatpush1.msra.mxu0 0.0
        %2290 = vmatprep.subr.mxu0 0.0
        %2291 = vmatpush1.msra.mxu0 0.0
        %2292 = vmatprep.subr.mxu0 0.0
        %2293 = vmatpush1.msra.mxu0 0.0
        %2294 = vmatprep.subr.mxu0 0.0
        %2295 = vmatpush1.msra.mxu0 0.0
        %2296 = vmatprep.subr.mxu0 0.0
        %2297 = vmatpush1.msra.mxu0 0.0
        %2298 = vmatprep.subr.mxu0 0.0
        %2299 = vmatpush1.msra.mxu0 0.0
        %2300 = vmatprep.subr.mxu0 0.0
        %2301 = vmatpush1.msra.mxu0 0.0
        %2302 = vmatprep.subr.mxu0 0.0
        %2303 = vmatpush1.msra.mxu0 0.0
        %2304 = vmatprep.subr.mxu0 0.0
        %2305 = vmatpush1.msra.mxu0 0.0
        %2306 = vmatprep.subr.mxu0 0.0
        %2307 = vmatpush1.msra.mxu0 0.0
        %2308 = vmatprep.subr.mxu0 0.0
        %2309 = vmatpush1.msra.mxu0 0.0
        %2310 = vmatprep.subr.mxu0 0.0
        %2311 = vmatpush1.msra.mxu0 0.0
        %2312 = vmatprep.subr.mxu0 0.0
        %2313 = vmatpush1.msra.mxu0 0.0
        %2314 = vmatprep.subr.mxu0 0.0
        %2315 = vmatpush1.msra.mxu0 0.0
        %2316 = vmatprep.subr.mxu0 0.0
        %2317 = vmatpush1.msra.mxu0 0.0
        %2318 = vmatprep.subr.mxu0 0.0
        %2319 = vmatpush1.msra.mxu0 0.0
        %2320 = vmatprep.subr.mxu0 0.0
        %2321 = vmatpush1.msra.mxu0 0.0
        %2322 = vmatprep.mubr.f32.mxu0 0.0
        %2323 = vmatmul.mubr.f32.gmra.mrb[0].mxu0 %v2256
        %v2324 = vpop.f32.mrb[0].mxu0
        %v2325 = vadd.f32 %v2253, %v2324
        %v2326 = vpop.f32.mrb[0].mxu0
        %2327 = vdwg.mxu0
        %v2328 = vmax.f32 %v2325, 0.0
        %v2329 = vld [vmem:[%s1025] sm:$0xff]
        %v2330 = vld [vmem:[%s1025 + $0x8] sm:$0xff]
        %v2331 = vld [vmem:[%s1025 + $0x10] sm:$0xff]
        %v2332 = vld [vmem:[%s1025 + $0x18] sm:$0xff]
        %v2333 = vld [vmem:[%s1025 + $0x20] sm:$0xff]
        %v2334 = vld [vmem:[%s1025 + $0x28] sm:$0xff]
        %v2335 = vld [vmem:[%s1025 + $0x30] sm:$0xff]
        %v2336 = vld [vmem:[%s1025 + $0x38] sm:$0xff]
        %v2337 = vld [vmem:[%s874] sm:$0x1]
        %v2339 = vlaneseq
        %v2340 = vshrl.u32 %v2339, 7
        %v2341 = vsub.s32 0, %v2340
        %v2342 = vrot.slane %v2337, %v2341
        %vm2344 = vcmask 523264
        %v2346 = vsel %vm2344, %v2328, 0
        %2348 = vmatprep.subr.mxu0 0.0
        %2349 = vmatpush1.msra.mxu0 %v2329
        %2350 = vmatprep.subr.mxu0 0.0
        %2351 = vmatpush1.msra.mxu0 %v2330
        %2352 = vmatprep.subr.mxu0 0.0
        %2353 = vmatpush1.msra.mxu0 %v2331
        %2354 = vmatprep.subr.mxu0 0.0
        %2355 = vmatpush1.msra.mxu0 %v2332
        %2356 = vmatprep.subr.mxu0 0.0
        %2357 = vmatpush1.msra.mxu0 %v2333
        %2358 = vmatprep.subr.mxu0 0.0
        %2359 = vmatpush1.msra.mxu0 %v2334
        %2360 = vmatprep.subr.mxu0 0.0
        %2361 = vmatpush1.msra.mxu0 %v2335
        %2362 = vmatprep.subr.mxu0 0.0
        %2363 = vmatpush1.msra.mxu0 %v2336
        %2364 = vmatprep.subr.mxu0 0.0
        %2365 = vmatpush1.msra.mxu0 0.0
        %2366 = vmatprep.subr.mxu0 0.0
        %2367 = vmatpush1.msra.mxu0 0.0
        %2368 = vmatprep.subr.mxu0 0.0
        %2369 = vmatpush1.msra.mxu0 0.0
        %2370 = vmatprep.subr.mxu0 0.0
        %2371 = vmatpush1.msra.mxu0 0.0
        %2372 = vmatprep.subr.mxu0 0.0
        %2373 = vmatpush1.msra.mxu0 0.0
        %2374 = vmatprep.subr.mxu0 0.0
        %2375 = vmatpush1.msra.mxu0 0.0
        %2376 = vmatprep.subr.mxu0 0.0
        %2377 = vmatpush1.msra.mxu0 0.0
        %2378 = vmatprep.subr.mxu0 0.0
        %2379 = vmatpush1.msra.mxu0 0.0
        %2380 = vmatprep.subr.mxu0 0.0
        %2381 = vmatpush1.msra.mxu0 0.0
        %2382 = vmatprep.subr.mxu0 0.0
        %2383 = vmatpush1.msra.mxu0 0.0
        %2384 = vmatprep.subr.mxu0 0.0
        %2385 = vmatpush1.msra.mxu0 0.0
        %2386 = vmatprep.subr.mxu0 0.0
        %2387 = vmatpush1.msra.mxu0 0.0
        %2388 = vmatprep.subr.mxu0 0.0
        %2389 = vmatpush1.msra.mxu0 0.0
        %2390 = vmatprep.subr.mxu0 0.0
        %2391 = vmatpush1.msra.mxu0 0.0
        %2392 = vmatprep.subr.mxu0 0.0
        %2393 = vmatpush1.msra.mxu0 0.0
        %2394 = vmatprep.subr.mxu0 0.0
        %2395 = vmatpush1.msra.mxu0 0.0
        %2396 = vmatprep.subr.mxu0 0.0
        %2397 = vmatpush1.msra.mxu0 0.0
        %2398 = vmatprep.subr.mxu0 0.0
        %2399 = vmatpush1.msra.mxu0 0.0
        %2400 = vmatprep.subr.mxu0 0.0
        %2401 = vmatpush1.msra.mxu0 0.0
        %2402 = vmatprep.subr.mxu0 0.0
        %2403 = vmatpush1.msra.mxu0 0.0
        %2404 = vmatprep.subr.mxu0 0.0
        %2405 = vmatpush1.msra.mxu0 0.0
        %2406 = vmatprep.subr.mxu0 0.0
        %2407 = vmatpush1.msra.mxu0 0.0
        %2408 = vmatprep.subr.mxu0 0.0
        %2409 = vmatpush1.msra.mxu0 0.0
        %2410 = vmatprep.subr.mxu0 0.0
        %2411 = vmatpush1.msra.mxu0 0.0
        %2412 = vmatprep.mubr.f32.mxu0 0.0
        %2413 = vmatmul.mubr.f32.gmra.mrb[0].mxu0 %v2346
        %v2414 = vpop.f32.mrb[0].mxu0
        %v2415 = vadd.f32 %v2342, %v2414
        %v2416 = vpop.f32.mrb[0].mxu0
        %2417 = vdwg.mxu0
        %v2418 = vadd.f32 %v2243, %v2415
        %v2419 = vld [vmem:[%s1028] sm:$0x1]
        %v2420 = vld [vmem:[%s882] sm:$0x1]
        %v2421 = vsel %vm1050, %v2418, 0.0
        %2422 = vadd.xlane.f32.xlu0 %v2421
        %v2423 = vpop.xlane.xlu0 %2422
        %v2424 = vmul.f32 %v2423, %v2219
        %v2425 = vsub.f32 %v2418, %v2424
        %v2426 = vmul.f32 %v2425, %v2425
        %v2427 = vsel %vm1050, %v2426, 0.0
        %2428 = vadd.xlane.f32.xlu0 %v2427
        %v2429 = vpop.xlane.xlu0 %2428
        %v2430 = vmul.f32 %v2429, %v2219
        %v2431 = vadd.f32 %v2430, 1e-05
        %v2432 = vrsqrt.pop %v2431
        %v2433 = vmul.f32 %v2425, %v2432
        %v2435 = vlaneseq
        %v2436 = vshrl.u32 %v2435, 7
        %v2437 = vsub.s32 0, %v2436
        %v2438 = vrot.slane %v2419, %v2437
        %v2440 = vmul.f32 %v2433, %v2438
        %v2442 = vlaneseq
        %v2443 = vshrl.u32 %v2442, 7
        %v2444 = vsub.s32 0, %v2443
        %v2445 = vrot.slane %v2420, %v2444
        %v2447 = vadd.f32 %v2440, %v2445
        %2448 = vst.msk [vmem:[#allocation2] sm:$0xff] %vm1050, %v2447
        %p2449 = scmp.eq.s32.totalorder %s55, 1
        // Predicated region
        $region141: #{transformer_decoder.1} parent=91 // pred_check
          %p2450 = pneg %p2449
        $region142: #{transformer_decoder.1} parent=91 // pred_check_branch
          %2452 = sbr.rel (%p2450) target = $region144
        $region143: #{transformer_decoder.1} parent=91 // pred_region
          %v2453 = vld [vmem:[%s16] sm:$0xff]
          %v2454 = vld [vmem:[%s16 + $0x8] sm:$0xff]
          %v2455 = vld [vmem:[%s16 + $0x10] sm:$0xff]
          %v2456 = vld [vmem:[%s16 + $0x18] sm:$0xff]
          %v2457 = vld [vmem:[#allocation20] sm:$0x1]
          %v2459 = vlaneseq
          %v2460 = vshrl.u32 %v2459, 7
          %v2461 = vsub.s32 0, %v2460
          %v2462 = vrot.slane %v2457, %v2461
          %v2465 = vsel %vm1050, %v2447, 0
          %2467 = vmatprep.subr.mxu0 0.0
          %2468 = vmatpush1.msra.mxu0 %v2453
          %2469 = vmatprep.subr.mxu0 0.0
          %2470 = vmatpush1.msra.mxu0 %v2454
          %2471 = vmatprep.subr.mxu0 0.0
          %2472 = vmatpush1.msra.mxu0 %v2455
          %2473 = vmatprep.subr.mxu0 0.0
          %2474 = vmatpush1.msra.mxu0 %v2456
          %2475 = vmatprep.subr.mxu0 0.0
          %2476 = vmatpush1.msra.mxu0 0.0
          %2477 = vmatprep.subr.mxu0 0.0
          %2478 = vmatpush1.msra.mxu0 0.0
          %2479 = vmatprep.subr.mxu0 0.0
          %2480 = vmatpush1.msra.mxu0 0.0
          %2481 = vmatprep.subr.mxu0 0.0
          %2482 = vmatpush1.msra.mxu0 0.0
          %2483 = vmatprep.subr.mxu0 0.0
          %2484 = vmatpush1.msra.mxu0 0.0
          %2485 = vmatprep.subr.mxu0 0.0
          %2486 = vmatpush1.msra.mxu0 0.0
          %2487 = vmatprep.subr.mxu0 0.0
          %2488 = vmatpush1.msra.mxu0 0.0
          %2489 = vmatprep.subr.mxu0 0.0
          %2490 = vmatpush1.msra.mxu0 0.0
          %2491 = vmatprep.subr.mxu0 0.0
          %2492 = vmatpush1.msra.mxu0 0.0
          %2493 = vmatprep.subr.mxu0 0.0
          %2494 = vmatpush1.msra.mxu0 0.0
          %2495 = vmatprep.subr.mxu0 0.0
          %2496 = vmatpush1.msra.mxu0 0.0
          %2497 = vmatprep.subr.mxu0 0.0
          %2498 = vmatpush1.msra.mxu0 0.0
          %2499 = vmatprep.subr.mxu0 0.0
          %2500 = vmatpush1.msra.mxu0 0.0
          %2501 = vmatprep.subr.mxu0 0.0
          %2502 = vmatpush1.msra.mxu0 0.0
          %2503 = vmatprep.subr.mxu0 0.0
          %2504 = vmatpush1.msra.mxu0 0.0
          %2505 = vmatprep.subr.mxu0 0.0
          %2506 = vmatpush1.msra.mxu0 0.0
          %2507 = vmatprep.subr.mxu0 0.0
          %2508 = vmatpush1.msra.mxu0 0.0
          %2509 = vmatprep.subr.mxu0 0.0
          %2510 = vmatpush1.msra.mxu0 0.0
          %2511 = vmatprep.subr.mxu0 0.0
          %2512 = vmatpush1.msra.mxu0 0.0
          %2513 = vmatprep.subr.mxu0 0.0
          %2514 = vmatpush1.msra.mxu0 0.0
          %2515 = vmatprep.subr.mxu0 0.0
          %2516 = vmatpush1.msra.mxu0 0.0
          %2517 = vmatprep.subr.mxu0 0.0
          %2518 = vmatpush1.msra.mxu0 0.0
          %2519 = vmatprep.subr.mxu0 0.0
          %2520 = vmatpush1.msra.mxu0 0.0
          %2521 = vmatprep.subr.mxu0 0.0
          %2522 = vmatpush1.msra.mxu0 0.0
          %2523 = vmatprep.subr.mxu0 0.0
          %2524 = vmatpush1.msra.mxu0 0.0
          %2525 = vmatprep.subr.mxu0 0.0
          %2526 = vmatpush1.msra.mxu0 0.0
          %2527 = vmatprep.subr.mxu0 0.0
          %2528 = vmatpush1.msra.mxu0 0.0
          %2529 = vmatprep.subr.mxu0 0.0
          %2530 = vmatpush1.msra.mxu0 0.0
          %2531 = vmatprep.mubr.f32.mxu0 0.0
          %2532 = vmatmul.mubr.f32.gmra.mrb[0].mxu0 %v2465
          %v2533 = vpop.f32.mrb[0].mxu0
          %v2534 = vadd.f32 %v2462, %v2533
          %v2535 = vpop.f32.mrb[0].mxu0
          %2536 = vdwg.mxu0
          %2537 = vst.msk [vmem:[%s1002] sm:$0xff] %vm1050, %v2534
        $region144: #{transformer_decoder.1} parent=91 // pred_fallthru
          _
        %s2538 = sand.u32 %s528, 1
        %s2539 = scalar_lea.sflag [#allocation5], %s2538
        %s2540 = sand.u32 %s528, 1
        %s2541 = smul.addr %s2540, 8
        %s2542 = scalar_lea.vmem [#allocation21], %s2541
        // Predicated region
        $region145: #{transformer_decoder.1} parent=91 // pred_check
          %p2543 = pneg %p538
        $region146: #{transformer_decoder.1} parent=91 // pred_check_branch
          %2545 = sbr.rel (%p2543) target = $region148
        $region147: #{transformer_decoder.1} parent=91 // pred_region
          %s2547 = ssub.s32 128, 128
          %2548 = vsyncadd %s2539, %s2547
          %s2549 = smul.addr %s54, 128
          %s2550 = scalar_lea.hbm %s18, %s2549
          %s2552 = sshll.u32 %s2542, 4
          %s2553 = int_to_ptr.vmem [resolvable:$true] %s2552
          %2555 = dma.vmem_to_hbm [thread:$0]  %s2553, 128, %s2550, %s2539
        $region148: #{transformer_decoder.1} parent=91 // pred_fallthru
          _
      $region92: #{transformer_decoder.1} parent=5 // pred_fallthru
        _
      %p2556 = scmp.le.s32.totalorder 2, %s45
      // Predicated region
      $region149: #{transformer_decoder.1} parent=5 // pred_check
        %p2557 = pneg %p2556
      $region150: #{transformer_decoder.1} parent=5 // pred_check_branch
        %2559 = sbr.rel (%p2557) target = $region152
      $region151: #{transformer_decoder.1} parent=5 // pred_region
        %s2560 = ssub.s32 %s45, 2
        // Predicated region
        $region153: #{transformer_decoder.1} parent=151 // pred_check
          %p2561 = pneg %p544
        $region154: #{transformer_decoder.1} parent=151 // pred_check_branch
          %2563 = sbr.rel (%p2561) target = $region156
        $region155: #{transformer_decoder.1} parent=151 // pred_region
          %s2564 = sand.u32 %s529, 1
          %s2565 = scalar_lea.sflag [#allocation5], %s2564
          %s2566 = sand.u32 %s529, 1
          %s2567 = smul.addr %s2566, 8
          %s2568 = scalar_lea.vmem [#allocation21], %s2567
          %2569 = dma.done %s2565, 128
        $region156: #{transformer_decoder.1} parent=151 // pred_fallthru
          _
      $region152: #{transformer_decoder.1} parent=5 // pred_fallthru
        _
    $region6: #{transformer_decoder.1} parent=1 // loop_footer
      %s49 = sadd.s32 1, %s45
    $region7: #{transformer_decoder.1} parent=1 // loop_footer_branch
      %44 = sbr.rel target = $region3
    $region8: #{transformer_decoder.1} parent=1 // loop_exit
      _
    %2570 = vsyncpa [#allocation4], 1
    %s2571 = scalar_lea.sflag [#allocation4], 1
    %2572 = vsyncpa %s2571, 1
    %2573 = vsyncpa [#allocation7], 1
    %s2574 = scalar_lea.sflag [#allocation7], 1
    %2575 = vsyncpa %s2574, 1
    %2576 = vsyncpa [#allocation10], 1
    %s2577 = scalar_lea.sflag [#allocation10], 1
    %2578 = vsyncpa %s2577, 1
    %2579 = vsyncpa [#allocation13], 1
    %s2580 = scalar_lea.sflag [#allocation13], 1
    %2581 = vsyncpa %s2580, 1
    %2582 = vsyncpa [#allocation16], 1
    %s2583 = scalar_lea.sflag [#allocation16], 1
    %2584 = vsyncpa %s2583, 1
    %2585 = vsyncpa [#allocation19], 1
    %s2586 = scalar_lea.sflag [#allocation19], 1
    %2587 = vsyncpa %s2586, 1
    %2588 = vsyncpa [#allocation5], 1
    %s2589 = scalar_lea.sflag [#allocation5], 1
    %2590 = vsyncpa %s2589, 1

</llo_original>
